<compile_context>
chip_gen: v6e
topology: v6e:2x2x1
jax: 0.10.0
libtpu: 0.0.40
codegen_flags: <defaults>
</compile_context>

<pallas_src>
import math
import functools

import jax
import jax.numpy as jnp
from jax.experimental import pallas as pl
from jax.experimental.pallas import tpu as pltpu

BN_EPS = 1e-5


# ----------------------------------------------------------------------------
# Fused GhostConv kernel
# ----------------------------------------------------------------------------
def make_ghostconv_kernel(H, W, C1, CMID, TH):
    """Fused cv1(1x1) + cv2(5x5 depthwise) + channel concat.

    Refs (per grid step (n, i)):
      x_ref:   [1, H, W, C1]        full image for batch n (VMEM-resident)
      w1_ref:  [C1, CMID]           1x1 conv weights (BN folded separately)
      s1/b1:   [1, CMID]            folded BN scale / bias for cv1
      wdw_ref: [25, CMID]           depthwise 5x5 taps, tap-major
      s2/b2:   [1, CMID]            folded BN scale / bias for cv2
      o_ref:   [1, 2, TH, W, CMID]  output tile: group 0 = y, group 1 = cv2(y)
      ypad_ref:[H+4, W+4, CMID]     f32 scratch, y padded by 2 (per image)
    """

    def kernel(x_ref, w1_ref, s1_ref, b1_ref, wdw_ref, s2_ref, b2_ref,
               o_ref, ypad_ref):
        i = pl.program_id(1)

        # ---- once per image: cv1 (1x1 conv + BN + SiLU) into padded scratch
        @pl.when(i == 0)
        def _compute_y():
            ypad_ref[...] = jnp.zeros_like(ypad_ref)        # zero halo border
            xm = x_ref[0].reshape(H * W, C1)
            z = jnp.dot(xm, w1_ref[...], preferred_element_type=jnp.float32)
            z = z * s1_ref[...] + b1_ref[...]
            y = z * jax.nn.sigmoid(z)                        # SiLU
            ypad_ref[pl.ds(2, H), pl.ds(2, W), :] = y.reshape(H, W, CMID)

        # ---- per H-tile: depthwise 5x5 + BN + SiLU on y, then store both halves
        r0 = i * TH                                          # first output row
        w_dw = wdw_ref[...]                                  # [25, CMID]
        acc = jnp.zeros((TH, W, CMID), jnp.float32)
        for dy in range(5):
            # rows r0-2+dy .. r0-2+dy+TH-1 of y == rows r0+dy .. of ypad
            band = ypad_ref[pl.ds(r0 + dy, TH), :, :]        # [TH, W+4, CMID]
            for dx in range(5):
                tap = w_dw[dy * 5 + dx][None, None, :]       # [1, 1, CMID]
                acc = acc + band[:, dx:dx + W, :] * tap
        z2 = acc * s2_ref[...] + b2_ref[...]
        y2 = z2 * jax.nn.sigmoid(z2)                         # SiLU

        y_tile = ypad_ref[pl.ds(r0 + 2, TH), pl.ds(2, W), :]  # [TH, W, CMID]
        o_ref[0, 0] = y_tile.astype(o_ref.dtype)
        o_ref[0, 1] = y2.astype(o_ref.dtype)

    return kernel


def _pick_tile_h(H, W, target_rows=1024):
    """Largest divisor of H with TH*W <= target_rows (falls back to 1)."""
    best = 1
    for th in range(1, H + 1):
        if H % th == 0 and th * W <= target_rows:
            best = th
    return best


# ----------------------------------------------------------------------------
# Wrapper (layout plumbing + pallas_call)
# ----------------------------------------------------------------------------
@functools.partial(jax.jit, static_argnames=("tile_h",))
def ghostconv_forward(params, x_nchw, tile_h=None):
    N, C1, H, W = x_nchw.shape
    w1 = params["cv1"]["w"]
    s1 = params["cv1"]["scale"]
    b1 = params["cv1"]["bias"]
    wdw = params["cv2"]["w"]
    s2 = params["cv2"]["scale"]
    b2 = params["cv2"]["bias"]
    CMID = w1.shape[1]
    C2 = 2 * CMID

    if tile_h is None:
        tile_h = _pick_tile_h(H, W)
    assert H % tile_h == 0, "tile_h must divide H"
    n_tiles = H // tile_h

    x_nhwc = jnp.transpose(x_nchw, (0, 2, 3, 1))

    # Explicit VMEM budget: double-buffered IO blocks + weights + y scratch.
    itemsize = jnp.dtype(x_nchw.dtype).itemsize
    est = (2 * H * W * C1 * itemsize                     # x block (double buf)
           + 2 * 2 * tile_h * W * CMID * itemsize        # out tile (double buf)
           + (H + 4) * (W + 4) * CMID * 4                # y_pad scratch (f32)
           + (C1 * CMID + 25 * CMID + 4 * CMID) * 4)     # weights / scales
    vmem_limit = int(min(max(2 * est, 32 * 1024 * 1024), 64 * 1024 * 1024))

    kernel = make_ghostconv_kernel(H, W, C1, CMID, tile_h)

    out = pl.pallas_call(
        kernel,
        out_shape=jax.ShapeDtypeStruct((N, 2, H, W, CMID), x_nchw.dtype),
        grid_spec=pltpu.PrefetchScalarGridSpec(
            num_scalar_prefetch=0,
            grid=(N, n_tiles),
            in_specs=[
                # Full image per batch; index ignores i => stays VMEM-resident
                # across H-tiles (fetched once per image).
                pl.BlockSpec((1, H, W, C1), lambda n, i: (n, 0, 0, 0)),
                pl.BlockSpec((C1, CMID), lambda n, i: (0, 0)),
                pl.BlockSpec((1, CMID), lambda n, i: (0, 0)),
                pl.BlockSpec((1, CMID), lambda n, i: (0, 0)),
                pl.BlockSpec((25, CMID), lambda n, i: (0, 0)),
                pl.BlockSpec((1, CMID), lambda n, i: (0, 0)),
                pl.BlockSpec((1, CMID), lambda n, i: (0, 0)),
            ],
            out_specs=pl.BlockSpec((1, 2, tile_h, W, CMID),
                                   lambda n, i: (n, 0, i, 0, 0)),
            scratch_shapes=[pltpu.VMEM((H + 4, W + 4, CMID), jnp.float32)],
        ),
        compiler_params=pltpu.CompilerParams(
            dimension_semantics=("parallel", "arbitrary"),
            vmem_limit_bytes=vmem_limit),
    )(x_nhwc, w1, s1, b1, wdw, s2, b2)

    # (N, 2, H, W, CMID) -> (N, 2, CMID, H, W) -> (N, C2, H, W): this single
    # permute realizes both the channel concat and the NHWC->NCHW conversion.
    out = jnp.transpose(out, (0, 1, 4, 2, 3)).reshape(N, C2, H, W)
    return out


# ----------------------------------------------------------------------------
# Parameter init (deterministic, mirrors the PyTorch module shapes)
# ----------------------------------------------------------------------------
def _init_conv_bn(key, c_in, c_out, ksz, groups=1):
    k1, k2, k3, k4, k5 = jax.random.split(key, 5)
    fan_in = (c_in // groups) * ksz * ksz
    w = jax.random.normal(k1, (c_out, c_in // groups, ksz, ksz),
                          jnp.float32) / math.sqrt(fan_in)
    gamma = 1.0 + 0.1 * jax.random.normal(k2, (c_out,), jnp.float32)
    beta = 0.1 * jax.random.normal(k3, (c_out,), jnp.float32)
    mean = 0.1 * jax.random.normal(k4, (c_out,), jnp.float32)
    var = jnp.abs(jax.random.normal(k5, (c_out,), jnp.float32)) + 0.5
    return w, gamma, beta, mean, var


def _fold_bn(gamma, beta, mean, var):
    scale = gamma / jnp.sqrt(var + BN_EPS)
    bias = beta - mean * scale
    return scale.reshape(1, -1), bias.reshape(1, -1)


def init_ghostconv_params(key, c1, c2):
    c_ = c2 // 2
    k1, k2 = jax.random.split(key)

    # cv1: 1x1 conv c1 -> c_ (+ BN)
    w, g, b, m, v = _init_conv_bn(k1, c1, c_, 1)
    scale, bias = _fold_bn(g, b, m, v)
    cv1 = {"w": w[:, :, 0, 0].T, "scale": scale, "bias": bias}   # [C1, C_]

    # cv2: 5x5 depthwise conv c_ -> c_ (groups = c_) (+ BN)
    w2, g2, b2, m2, v2 = _init_conv_bn(k2, c_, c_, 5, groups=c_)  # [c_,1,5,5]
    scale2, bias2 = _fold_bn(g2, b2, m2, v2)
    # tap-major [25, c_]: w_taps[dy*5+dx, c] = w2[c, 0, dy, dx]
    w_taps = jnp.transpose(w2[:, 0, :, :], (1, 2, 0)).reshape(25, c_)
    cv2 = {"w": w_taps, "scale": scale2, "bias": bias2}

    return {"cv1": cv1, "cv2": cv2}


# ----------------------------------------------------------------------------
# Pure-JAX reference (for a sanity check)
# ----------------------------------------------------------------------------
def _ref_forward(params, x_nchw):
    def silu(z):
        return z * jax.nn.sigmoid(z)

    x = jnp.transpose(x_nchw, (0, 2, 3, 1))                       # NHWC
    p1 = params["cv1"]
    y = silu(jnp.einsum("nhwc,cd->nhwd", x, p1["w"]) * p1["scale"][0]
             + p1["bias"][0])

    p2 = params["cv2"]
    c_ = y.shape[-1]
    w_hwio = p2["w"].reshape(5, 5, 1, c_)                         # depthwise
    z = jax.lax.conv_general_dilated(
        y, w_hwio, window_strides=(1, 1), padding="SAME",
        dimension_numbers=("NHWC", "HWIO", "NHWC"),
        feature_group_count=c_)
    y2 = silu(z * p2["scale"][0] + p2["bias"][0])

    out = jnp.concatenate([y, y2], axis=-1)
    return jnp.transpose(out, (0, 3, 1, 2))                       # NCHW


# ----------------------------------------------------------------------------
if __name__ == "__main__":
    c1_in, c2_out = 4, 8
    N, H, W = 2, 16, 16

    key = jax.random.PRNGKey(0)
    kx, kp = jax.random.split(key)
    x = jax.random.normal(kx, (N, c1_in, H, W), jnp.float32)
    params = init_ghostconv_params(kp, c1_in, c2_out)

    # tile_h=8 -> grid (2 batches, 2 H-tiles): exercises the halo / pl.when path.
    out = ghostconv_forward(params, x, tile_h=8)
    out = jax.block_until_ready(out)

    ref = _ref_forward(params, x)
    assert out.shape == (N, c2_out, H, W)
    assert jnp.allclose(out, ref, atol=1e-3, rtol=1e-3), "mismatch vs reference"

    print("KERNEL_OK")
</pallas_src>

<mosaic_0001>
module attributes {stable_mosaic.version = 11 : i64} {
  func.func @kernel(%arg0: i32, %arg1: i32, %arg2: memref<1x16x16x4xf32, #tpu.memory_space<vmem>>, %arg3: memref<4x4xf32, #tpu.memory_space<vmem>>, %arg4: memref<1x4xf32, #tpu.memory_space<vmem>>, %arg5: memref<1x4xf32, #tpu.memory_space<vmem>>, %arg6: memref<25x4xf32, #tpu.memory_space<vmem>>, %arg7: memref<1x4xf32, #tpu.memory_space<vmem>>, %arg8: memref<1x4xf32, #tpu.memory_space<vmem>>, %arg9: memref<1x2x8x16x4xf32, #tpu.memory_space<vmem>>, %arg10: memref<20x20x4xf32, #tpu.memory_space<vmem>>) attributes {dimension_semantics = [#tpu.dimension_semantics<parallel>, #tpu.dimension_semantics<arbitrary>], iteration_bounds = array<i64: 2, 2>, scalar_prefetch = 0 : i64, scratch_operands = 1 : i64, tpu.core_type = #tpu.core_type<tc>, window_params = [{transform_indices = @transform_0, window_bounds = array<i64: 1, 16, 16, 4>}, {pipeline_mode = #tpu.pipeline_mode<synchronous>, transform_indices = @transform_1, window_bounds = array<i64: 4, 4>}, {pipeline_mode = #tpu.pipeline_mode<synchronous>, transform_indices = @transform_2, window_bounds = array<i64: 1, 4>}, {pipeline_mode = #tpu.pipeline_mode<synchronous>, transform_indices = @transform_3, window_bounds = array<i64: 1, 4>}, {pipeline_mode = #tpu.pipeline_mode<synchronous>, transform_indices = @transform_4, window_bounds = array<i64: 25, 4>}, {pipeline_mode = #tpu.pipeline_mode<synchronous>, transform_indices = @transform_5, window_bounds = array<i64: 1, 4>}, {pipeline_mode = #tpu.pipeline_mode<synchronous>, transform_indices = @transform_6, window_bounds = array<i64: 1, 4>}, {transform_indices = @transform_7, window_bounds = array<i64: 1, 2, 8, 16, 4>}]} {
    %c0_i32 = arith.constant 0 : i32
    %0 = arith.cmpi eq, %arg1, %c0_i32 : i32
    %1 = arith.extui %0 : i1 to i32
    %c0_i32_0 = arith.constant 0 : i32
    %2 = arith.cmpi ne, %1, %c0_i32_0 : i32
    scf.if %2 {
      %cst_29 = arith.constant 0.000000e+00 : f32
      %219 = vector.broadcast %cst_29 : f32 to vector<20x20x4xf32>
      %c0_30 = arith.constant 0 : index
      %c0_31 = arith.constant 0 : index
      %c0_32 = arith.constant 0 : index
      %220 = vector.load %arg10[%c0_30, %c0_31, %c0_32] : memref<20x20x4xf32, #tpu.memory_space<vmem>>, vector<20x20x4xf32>
      tpu.vector_store %arg10[%c0_30, %c0_31, %c0_32], %219 {strides = array<i32>} : memref<20x20x4xf32, #tpu.memory_space<vmem>>, vector<20x20x4xf32>,
      %c0_33 = arith.constant 0 : index
      %c0_34 = arith.constant 0 : index
      %c0_35 = arith.constant 0 : index
      %c0_36 = arith.constant 0 : index
      %221 = vector.load %arg2[%c0_33, %c0_34, %c0_35, %c0_36] : memref<1x16x16x4xf32, #tpu.memory_space<vmem>>, vector<1x16x16x4xf32>
      %222 = vector.shape_cast %221 : vector<1x16x16x4xf32> to vector<16x16x4xf32>
      %223 = vector.shape_cast %222 : vector<16x16x4xf32> to vector<256x4xf32>
      %c0_37 = arith.constant 0 : index
      %c0_38 = arith.constant 0 : index
      %224 = vector.load %arg3[%c0_37, %c0_38] : memref<4x4xf32, #tpu.memory_space<vmem>>, vector<4x4xf32>
      %cst_39 = arith.constant dense<0.000000e+00> : vector<256x4xf32>
      %225 = tpu.matmul %223, %224, %cst_39 {dimension_numbers = #tpu.dot_dimension_numbers<[1], [0], [0], [1], [0, 0, 1, 1], [], []>} : vector<256x4xf32>, vector<4x4xf32>, vector<256x4xf32> -> vector<256x4xf32>
      %c0_40 = arith.constant 0 : index
      %c0_41 = arith.constant 0 : index
      %226 = vector.load %arg4[%c0_40, %c0_41] : memref<1x4xf32, #tpu.memory_space<vmem>>, vector<1x4xf32>
      %227 = vector.broadcast %226 : vector<1x4xf32> to vector<256x4xf32>
      %228 = arith.mulf %225, %227 : vector<256x4xf32>
      %c0_42 = arith.constant 0 : index
      %c0_43 = arith.constant 0 : index
      %229 = vector.load %arg5[%c0_42, %c0_43] : memref<1x4xf32, #tpu.memory_space<vmem>>, vector<1x4xf32>
      %230 = vector.broadcast %229 : vector<1x4xf32> to vector<256x4xf32>
      %231 = arith.addf %228, %230 : vector<256x4xf32>
      %232 = arith.negf %231 : vector<256x4xf32>
      %233 = math.exp %232 : vector<256x4xf32>
      %cst_44 = arith.constant 1.000000e+00 : f32
      %234 = vector.broadcast %cst_44 : f32 to vector<256x4xf32>
      %235 = arith.addf %234, %233 : vector<256x4xf32>
      %236 = arith.divf %234, %235 : vector<256x4xf32>
      %237 = arith.mulf %231, %236 : vector<256x4xf32>
      %238 = vector.shape_cast %237 : vector<256x4xf32> to vector<16x16x4xf32>
      %c2_45 = arith.constant 2 : index
      %c2_46 = arith.constant 2 : index
      %c0_47 = arith.constant 0 : index
      %239 = vector.load %arg10[%c2_45, %c2_46, %c0_47] : memref<20x20x4xf32, #tpu.memory_space<vmem>>, vector<16x16x4xf32>
      tpu.vector_store %arg10[%c2_45, %c2_46, %c0_47], %238 {strides = array<i32>} : memref<20x20x4xf32, #tpu.memory_space<vmem>>, vector<16x16x4xf32>,
    } else {
    }
    %c8_i32 = arith.constant 8 : i32
    %3 = arith.muli %arg1, %c8_i32 : i32
    %c0 = arith.constant 0 : index
    %c0_1 = arith.constant 0 : index
    %4 = vector.load %arg6[%c0, %c0_1] : memref<25x4xf32, #tpu.memory_space<vmem>>, vector<25x4xf32>
    %cst = arith.constant 0.000000e+00 : f32
    %5 = vector.broadcast %cst : f32 to vector<8x16x4xf32>
    %c0_i32_2 = arith.constant 0 : i32
    %6 = arith.addi %3, %c0_i32_2 : i32
    %7 = arith.index_cast %6 : i32 to index
    %c0_3 = arith.constant 0 : index
    %c0_4 = arith.constant 0 : index
    %8 = vector.load %arg10[%7, %c0_3, %c0_4] : memref<20x20x4xf32, #tpu.memory_space<vmem>>, vector<8x20x4xf32>
    %9 = vector.extract_strided_slice %4 {offsets = [0, 0], sizes = [1, 4], strides = [1, 1]} : vector<25x4xf32> to vector<1x4xf32>
    %10 = vector.shape_cast %9 : vector<1x4xf32> to vector<4xf32>
    %11 = vector.shape_cast %10 : vector<4xf32> to vector<1x1x4xf32>
    %12 = vector.extract_strided_slice %8 {offsets = [0, 0, 0], sizes = [8, 16, 4], strides = [1, 1, 1]} : vector<8x20x4xf32> to vector<8x16x4xf32>
    %13 = vector.broadcast %11 : vector<1x1x4xf32> to vector<8x16x4xf32>
    %14 = arith.mulf %12, %13 : vector<8x16x4xf32>
    %15 = arith.addf %5, %14 : vector<8x16x4xf32>
    %16 = vector.extract_strided_slice %4 {offsets = [1, 0], sizes = [1, 4], strides = [1, 1]} : vector<25x4xf32> to vector<1x4xf32>
    %17 = vector.shape_cast %16 : vector<1x4xf32> to vector<4xf32>
    %18 = vector.shape_cast %17 : vector<4xf32> to vector<1x1x4xf32>
    %19 = vector.extract_strided_slice %8 {offsets = [0, 1, 0], sizes = [8, 16, 4], strides = [1, 1, 1]} : vector<8x20x4xf32> to vector<8x16x4xf32>
    %20 = vector.broadcast %18 : vector<1x1x4xf32> to vector<8x16x4xf32>
    %21 = arith.mulf %19, %20 : vector<8x16x4xf32>
    %22 = arith.addf %15, %21 : vector<8x16x4xf32>
    %23 = vector.extract_strided_slice %4 {offsets = [2, 0], sizes = [1, 4], strides = [1, 1]} : vector<25x4xf32> to vector<1x4xf32>
    %24 = vector.shape_cast %23 : vector<1x4xf32> to vector<4xf32>
    %25 = vector.shape_cast %24 : vector<4xf32> to vector<1x1x4xf32>
    %26 = vector.extract_strided_slice %8 {offsets = [0, 2, 0], sizes = [8, 16, 4], strides = [1, 1, 1]} : vector<8x20x4xf32> to vector<8x16x4xf32>
    %27 = vector.broadcast %25 : vector<1x1x4xf32> to vector<8x16x4xf32>
    %28 = arith.mulf %26, %27 : vector<8x16x4xf32>
    %29 = arith.addf %22, %28 : vector<8x16x4xf32>
    %30 = vector.extract_strided_slice %4 {offsets = [3, 0], sizes = [1, 4], strides = [1, 1]} : vector<25x4xf32> to vector<1x4xf32>
    %31 = vector.shape_cast %30 : vector<1x4xf32> to vector<4xf32>
    %32 = vector.shape_cast %31 : vector<4xf32> to vector<1x1x4xf32>
    %33 = vector.extract_strided_slice %8 {offsets = [0, 3, 0], sizes = [8, 16, 4], strides = [1, 1, 1]} : vector<8x20x4xf32> to vector<8x16x4xf32>
    %34 = vector.broadcast %32 : vector<1x1x4xf32> to vector<8x16x4xf32>
    %35 = arith.mulf %33, %34 : vector<8x16x4xf32>
    %36 = arith.addf %29, %35 : vector<8x16x4xf32>
    %37 = vector.extract_strided_slice %4 {offsets = [4, 0], sizes = [1, 4], strides = [1, 1]} : vector<25x4xf32> to vector<1x4xf32>
    %38 = vector.shape_cast %37 : vector<1x4xf32> to vector<4xf32>
    %39 = vector.shape_cast %38 : vector<4xf32> to vector<1x1x4xf32>
    %40 = vector.extract_strided_slice %8 {offsets = [0, 4, 0], sizes = [8, 16, 4], strides = [1, 1, 1]} : vector<8x20x4xf32> to vector<8x16x4xf32>
    %41 = vector.broadcast %39 : vector<1x1x4xf32> to vector<8x16x4xf32>
    %42 = arith.mulf %40, %41 : vector<8x16x4xf32>
    %43 = arith.addf %36, %42 : vector<8x16x4xf32>
    %c1_i32 = arith.constant 1 : i32
    %44 = arith.addi %3, %c1_i32 : i32
    %45 = arith.index_cast %44 : i32 to index
    %c0_5 = arith.constant 0 : index
    %c0_6 = arith.constant 0 : index
    %46 = vector.load %arg10[%45, %c0_5, %c0_6] : memref<20x20x4xf32, #tpu.memory_space<vmem>>, vector<8x20x4xf32>
    %47 = vector.extract_strided_slice %4 {offsets = [5, 0], sizes = [1, 4], strides = [1, 1]} : vector<25x4xf32> to vector<1x4xf32>
    %48 = vector.shape_cast %47 : vector<1x4xf32> to vector<4xf32>
    %49 = vector.shape_cast %48 : vector<4xf32> to vector<1x1x4xf32>
    %50 = vector.extract_strided_slice %46 {offsets = [0, 0, 0], sizes = [8, 16, 4], strides = [1, 1, 1]} : vector<8x20x4xf32> to vector<8x16x4xf32>
    %51 = vector.broadcast %49 : vector<1x1x4xf32> to vector<8x16x4xf32>
    %52 = arith.mulf %50, %51 : vector<8x16x4xf32>
    %53 = arith.addf %43, %52 : vector<8x16x4xf32>
    %54 = vector.extract_strided_slice %4 {offsets = [6, 0], sizes = [1, 4], strides = [1, 1]} : vector<25x4xf32> to vector<1x4xf32>
    %55 = vector.shape_cast %54 : vector<1x4xf32> to vector<4xf32>
    %56 = vector.shape_cast %55 : vector<4xf32> to vector<1x1x4xf32>
    %57 = vector.extract_strided_slice %46 {offsets = [0, 1, 0], sizes = [8, 16, 4], strides = [1, 1, 1]} : vector<8x20x4xf32> to vector<8x16x4xf32>
    %58 = vector.broadcast %56 : vector<1x1x4xf32> to vector<8x16x4xf32>
    %59 = arith.mulf %57, %58 : vector<8x16x4xf32>
    %60 = arith.addf %53, %59 : vector<8x16x4xf32>
    %61 = vector.extract_strided_slice %4 {offsets = [7, 0], sizes = [1, 4], strides = [1, 1]} : vector<25x4xf32> to vector<1x4xf32>
    %62 = vector.shape_cast %61 : vector<1x4xf32> to vector<4xf32>
    %63 = vector.shape_cast %62 : vector<4xf32> to vector<1x1x4xf32>
    %64 = vector.extract_strided_slice %46 {offsets = [0, 2, 0], sizes = [8, 16, 4], strides = [1, 1, 1]} : vector<8x20x4xf32> to vector<8x16x4xf32>
    %65 = vector.broadcast %63 : vector<1x1x4xf32> to vector<8x16x4xf32>
    %66 = arith.mulf %64, %65 : vector<8x16x4xf32>
    %67 = arith.addf %60, %66 : vector<8x16x4xf32>
    %68 = vector.extract_strided_slice %4 {offsets = [8, 0], sizes = [1, 4], strides = [1, 1]} : vector<25x4xf32> to vector<1x4xf32>
    %69 = vector.shape_cast %68 : vector<1x4xf32> to vector<4xf32>
    %70 = vector.shape_cast %69 : vector<4xf32> to vector<1x1x4xf32>
    %71 = vector.extract_strided_slice %46 {offsets = [0, 3, 0], sizes = [8, 16, 4], strides = [1, 1, 1]} : vector<8x20x4xf32> to vector<8x16x4xf32>
    %72 = vector.broadcast %70 : vector<1x1x4xf32> to vector<8x16x4xf32>
    %73 = arith.mulf %71, %72 : vector<8x16x4xf32>
    %74 = arith.addf %67, %73 : vector<8x16x4xf32>
    %75 = vector.extract_strided_slice %4 {offsets = [9, 0], sizes = [1, 4], strides = [1, 1]} : vector<25x4xf32> to vector<1x4xf32>
    %76 = vector.shape_cast %75 : vector<1x4xf32> to vector<4xf32>
    %77 = vector.shape_cast %76 : vector<4xf32> to vector<1x1x4xf32>
    %78 = vector.extract_strided_slice %46 {offsets = [0, 4, 0], sizes = [8, 16, 4], strides = [1, 1, 1]} : vector<8x20x4xf32> to vector<8x16x4xf32>
    %79 = vector.broadcast %77 : vector<1x1x4xf32> to vector<8x16x4xf32>
    %80 = arith.mulf %78, %79 : vector<8x16x4xf32>
    %81 = arith.addf %74, %80 : vector<8x16x4xf32>
    %c2_i32 = arith.constant 2 : i32
    %82 = arith.addi %3, %c2_i32 : i32
    %83 = arith.index_cast %82 : i32 to index
    %c0_7 = arith.constant 0 : index
    %c0_8 = arith.constant 0 : index
    %84 = vector.load %arg10[%83, %c0_7, %c0_8] : memref<20x20x4xf32, #tpu.memory_space<vmem>>, vector<8x20x4xf32>
    %85 = vector.extract_strided_slice %4 {offsets = [10, 0], sizes = [1, 4], strides = [1, 1]} : vector<25x4xf32> to vector<1x4xf32>
    %86 = vector.shape_cast %85 : vector<1x4xf32> to vector<4xf32>
    %87 = vector.shape_cast %86 : vector<4xf32> to vector<1x1x4xf32>
    %88 = vector.extract_strided_slice %84 {offsets = [0, 0, 0], sizes = [8, 16, 4], strides = [1, 1, 1]} : vector<8x20x4xf32> to vector<8x16x4xf32>
    %89 = vector.broadcast %87 : vector<1x1x4xf32> to vector<8x16x4xf32>
    %90 = arith.mulf %88, %89 : vector<8x16x4xf32>
    %91 = arith.addf %81, %90 : vector<8x16x4xf32>
    %92 = vector.extract_strided_slice %4 {offsets = [11, 0], sizes = [1, 4], strides = [1, 1]} : vector<25x4xf32> to vector<1x4xf32>
    %93 = vector.shape_cast %92 : vector<1x4xf32> to vector<4xf32>
    %94 = vector.shape_cast %93 : vector<4xf32> to vector<1x1x4xf32>
    %95 = vector.extract_strided_slice %84 {offsets = [0, 1, 0], sizes = [8, 16, 4], strides = [1, 1, 1]} : vector<8x20x4xf32> to vector<8x16x4xf32>
    %96 = vector.broadcast %94 : vector<1x1x4xf32> to vector<8x16x4xf32>
    %97 = arith.mulf %95, %96 : vector<8x16x4xf32>
    %98 = arith.addf %91, %97 : vector<8x16x4xf32>
    %99 = vector.extract_strided_slice %4 {offsets = [12, 0], sizes = [1, 4], strides = [1, 1]} : vector<25x4xf32> to vector<1x4xf32>
    %100 = vector.shape_cast %99 : vector<1x4xf32> to vector<4xf32>
    %101 = vector.shape_cast %100 : vector<4xf32> to vector<1x1x4xf32>
    %102 = vector.extract_strided_slice %84 {offsets = [0, 2, 0], sizes = [8, 16, 4], strides = [1, 1, 1]} : vector<8x20x4xf32> to vector<8x16x4xf32>
    %103 = vector.broadcast %101 : vector<1x1x4xf32> to vector<8x16x4xf32>
    %104 = arith.mulf %102, %103 : vector<8x16x4xf32>
    %105 = arith.addf %98, %104 : vector<8x16x4xf32>
    %106 = vector.extract_strided_slice %4 {offsets = [13, 0], sizes = [1, 4], strides = [1, 1]} : vector<25x4xf32> to vector<1x4xf32>
    %107 = vector.shape_cast %106 : vector<1x4xf32> to vector<4xf32>
    %108 = vector.shape_cast %107 : vector<4xf32> to vector<1x1x4xf32>
    %109 = vector.extract_strided_slice %84 {offsets = [0, 3, 0], sizes = [8, 16, 4], strides = [1, 1, 1]} : vector<8x20x4xf32> to vector<8x16x4xf32>
    %110 = vector.broadcast %108 : vector<1x1x4xf32> to vector<8x16x4xf32>
    %111 = arith.mulf %109, %110 : vector<8x16x4xf32>
    %112 = arith.addf %105, %111 : vector<8x16x4xf32>
    %113 = vector.extract_strided_slice %4 {offsets = [14, 0], sizes = [1, 4], strides = [1, 1]} : vector<25x4xf32> to vector<1x4xf32>
    %114 = vector.shape_cast %113 : vector<1x4xf32> to vector<4xf32>
    %115 = vector.shape_cast %114 : vector<4xf32> to vector<1x1x4xf32>
    %116 = vector.extract_strided_slice %84 {offsets = [0, 4, 0], sizes = [8, 16, 4], strides = [1, 1, 1]} : vector<8x20x4xf32> to vector<8x16x4xf32>
    %117 = vector.broadcast %115 : vector<1x1x4xf32> to vector<8x16x4xf32>
    %118 = arith.mulf %116, %117 : vector<8x16x4xf32>
    %119 = arith.addf %112, %118 : vector<8x16x4xf32>
    %c3_i32 = arith.constant 3 : i32
    %120 = arith.addi %3, %c3_i32 : i32
    %121 = arith.index_cast %120 : i32 to index
    %c0_9 = arith.constant 0 : index
    %c0_10 = arith.constant 0 : index
    %122 = vector.load %arg10[%121, %c0_9, %c0_10] : memref<20x20x4xf32, #tpu.memory_space<vmem>>, vector<8x20x4xf32>
    %123 = vector.extract_strided_slice %4 {offsets = [15, 0], sizes = [1, 4], strides = [1, 1]} : vector<25x4xf32> to vector<1x4xf32>
    %124 = vector.shape_cast %123 : vector<1x4xf32> to vector<4xf32>
    %125 = vector.shape_cast %124 : vector<4xf32> to vector<1x1x4xf32>
    %126 = vector.extract_strided_slice %122 {offsets = [0, 0, 0], sizes = [8, 16, 4], strides = [1, 1, 1]} : vector<8x20x4xf32> to vector<8x16x4xf32>
    %127 = vector.broadcast %125 : vector<1x1x4xf32> to vector<8x16x4xf32>
    %128 = arith.mulf %126, %127 : vector<8x16x4xf32>
    %129 = arith.addf %119, %128 : vector<8x16x4xf32>
    %130 = vector.extract_strided_slice %4 {offsets = [16, 0], sizes = [1, 4], strides = [1, 1]} : vector<25x4xf32> to vector<1x4xf32>
    %131 = vector.shape_cast %130 : vector<1x4xf32> to vector<4xf32>
    %132 = vector.shape_cast %131 : vector<4xf32> to vector<1x1x4xf32>
    %133 = vector.extract_strided_slice %122 {offsets = [0, 1, 0], sizes = [8, 16, 4], strides = [1, 1, 1]} : vector<8x20x4xf32> to vector<8x16x4xf32>
    %134 = vector.broadcast %132 : vector<1x1x4xf32> to vector<8x16x4xf32>
    %135 = arith.mulf %133, %134 : vector<8x16x4xf32>
    %136 = arith.addf %129, %135 : vector<8x16x4xf32>
    %137 = vector.extract_strided_slice %4 {offsets = [17, 0], sizes = [1, 4], strides = [1, 1]} : vector<25x4xf32> to vector<1x4xf32>
    %138 = vector.shape_cast %137 : vector<1x4xf32> to vector<4xf32>
    %139 = vector.shape_cast %138 : vector<4xf32> to vector<1x1x4xf32>
    %140 = vector.extract_strided_slice %122 {offsets = [0, 2, 0], sizes = [8, 16, 4], strides = [1, 1, 1]} : vector<8x20x4xf32> to vector<8x16x4xf32>
    %141 = vector.broadcast %139 : vector<1x1x4xf32> to vector<8x16x4xf32>
    %142 = arith.mulf %140, %141 : vector<8x16x4xf32>
    %143 = arith.addf %136, %142 : vector<8x16x4xf32>
    %144 = vector.extract_strided_slice %4 {offsets = [18, 0], sizes = [1, 4], strides = [1, 1]} : vector<25x4xf32> to vector<1x4xf32>
    %145 = vector.shape_cast %144 : vector<1x4xf32> to vector<4xf32>
    %146 = vector.shape_cast %145 : vector<4xf32> to vector<1x1x4xf32>
    %147 = vector.extract_strided_slice %122 {offsets = [0, 3, 0], sizes = [8, 16, 4], strides = [1, 1, 1]} : vector<8x20x4xf32> to vector<8x16x4xf32>
    %148 = vector.broadcast %146 : vector<1x1x4xf32> to vector<8x16x4xf32>
    %149 = arith.mulf %147, %148 : vector<8x16x4xf32>
    %150 = arith.addf %143, %149 : vector<8x16x4xf32>
    %151 = vector.extract_strided_slice %4 {offsets = [19, 0], sizes = [1, 4], strides = [1, 1]} : vector<25x4xf32> to vector<1x4xf32>
    %152 = vector.shape_cast %151 : vector<1x4xf32> to vector<4xf32>
    %153 = vector.shape_cast %152 : vector<4xf32> to vector<1x1x4xf32>
    %154 = vector.extract_strided_slice %122 {offsets = [0, 4, 0], sizes = [8, 16, 4], strides = [1, 1, 1]} : vector<8x20x4xf32> to vector<8x16x4xf32>
    %155 = vector.broadcast %153 : vector<1x1x4xf32> to vector<8x16x4xf32>
    %156 = arith.mulf %154, %155 : vector<8x16x4xf32>
    %157 = arith.addf %150, %156 : vector<8x16x4xf32>
    %c4_i32 = arith.constant 4 : i32
    %158 = arith.addi %3, %c4_i32 : i32
    %159 = arith.index_cast %158 : i32 to index
    %c0_11 = arith.constant 0 : index
    %c0_12 = arith.constant 0 : index
    %160 = vector.load %arg10[%159, %c0_11, %c0_12] : memref<20x20x4xf32, #tpu.memory_space<vmem>>, vector<8x20x4xf32>
    %161 = vector.extract_strided_slice %4 {offsets = [20, 0], sizes = [1, 4], strides = [1, 1]} : vector<25x4xf32> to vector<1x4xf32>
    %162 = vector.shape_cast %161 : vector<1x4xf32> to vector<4xf32>
    %163 = vector.shape_cast %162 : vector<4xf32> to vector<1x1x4xf32>
    %164 = vector.extract_strided_slice %160 {offsets = [0, 0, 0], sizes = [8, 16, 4], strides = [1, 1, 1]} : vector<8x20x4xf32> to vector<8x16x4xf32>
    %165 = vector.broadcast %163 : vector<1x1x4xf32> to vector<8x16x4xf32>
    %166 = arith.mulf %164, %165 : vector<8x16x4xf32>
    %167 = arith.addf %157, %166 : vector<8x16x4xf32>
    %168 = vector.extract_strided_slice %4 {offsets = [21, 0], sizes = [1, 4], strides = [1, 1]} : vector<25x4xf32> to vector<1x4xf32>
    %169 = vector.shape_cast %168 : vector<1x4xf32> to vector<4xf32>
    %170 = vector.shape_cast %169 : vector<4xf32> to vector<1x1x4xf32>
    %171 = vector.extract_strided_slice %160 {offsets = [0, 1, 0], sizes = [8, 16, 4], strides = [1, 1, 1]} : vector<8x20x4xf32> to vector<8x16x4xf32>
    %172 = vector.broadcast %170 : vector<1x1x4xf32> to vector<8x16x4xf32>
    %173 = arith.mulf %171, %172 : vector<8x16x4xf32>
    %174 = arith.addf %167, %173 : vector<8x16x4xf32>
    %175 = vector.extract_strided_slice %4 {offsets = [22, 0], sizes = [1, 4], strides = [1, 1]} : vector<25x4xf32> to vector<1x4xf32>
    %176 = vector.shape_cast %175 : vector<1x4xf32> to vector<4xf32>
    %177 = vector.shape_cast %176 : vector<4xf32> to vector<1x1x4xf32>
    %178 = vector.extract_strided_slice %160 {offsets = [0, 2, 0], sizes = [8, 16, 4], strides = [1, 1, 1]} : vector<8x20x4xf32> to vector<8x16x4xf32>
    %179 = vector.broadcast %177 : vector<1x1x4xf32> to vector<8x16x4xf32>
    %180 = arith.mulf %178, %179 : vector<8x16x4xf32>
    %181 = arith.addf %174, %180 : vector<8x16x4xf32>
    %182 = vector.extract_strided_slice %4 {offsets = [23, 0], sizes = [1, 4], strides = [1, 1]} : vector<25x4xf32> to vector<1x4xf32>
    %183 = vector.shape_cast %182 : vector<1x4xf32> to vector<4xf32>
    %184 = vector.shape_cast %183 : vector<4xf32> to vector<1x1x4xf32>
    %185 = vector.extract_strided_slice %160 {offsets = [0, 3, 0], sizes = [8, 16, 4], strides = [1, 1, 1]} : vector<8x20x4xf32> to vector<8x16x4xf32>
    %186 = vector.broadcast %184 : vector<1x1x4xf32> to vector<8x16x4xf32>
    %187 = arith.mulf %185, %186 : vector<8x16x4xf32>
    %188 = arith.addf %181, %187 : vector<8x16x4xf32>
    %189 = vector.extract_strided_slice %4 {offsets = [24, 0], sizes = [1, 4], strides = [1, 1]} : vector<25x4xf32> to vector<1x4xf32>
    %190 = vector.shape_cast %189 : vector<1x4xf32> to vector<4xf32>
    %191 = vector.shape_cast %190 : vector<4xf32> to vector<1x1x4xf32>
    %192 = vector.extract_strided_slice %160 {offsets = [0, 4, 0], sizes = [8, 16, 4], strides = [1, 1, 1]} : vector<8x20x4xf32> to vector<8x16x4xf32>
    %193 = vector.broadcast %191 : vector<1x1x4xf32> to vector<8x16x4xf32>
    %194 = arith.mulf %192, %193 : vector<8x16x4xf32>
    %195 = arith.addf %188, %194 : vector<8x16x4xf32>
    %c0_13 = arith.constant 0 : index
    %c0_14 = arith.constant 0 : index
    %196 = vector.load %arg7[%c0_13, %c0_14] : memref<1x4xf32, #tpu.memory_space<vmem>>, vector<1x4xf32>
    %197 = vector.shape_cast %196 : vector<1x4xf32> to vector<1x1x4xf32>
    %198 = vector.broadcast %197 : vector<1x1x4xf32> to vector<8x16x4xf32>
    %199 = arith.mulf %195, %198 : vector<8x16x4xf32>
    %c0_15 = arith.constant 0 : index
    %c0_16 = arith.constant 0 : index
    %200 = vector.load %arg8[%c0_15, %c0_16] : memref<1x4xf32, #tpu.memory_space<vmem>>, vector<1x4xf32>
    %201 = vector.shape_cast %200 : vector<1x4xf32> to vector<1x1x4xf32>
    %202 = vector.broadcast %201 : vector<1x1x4xf32> to vector<8x16x4xf32>
    %203 = arith.addf %199, %202 : vector<8x16x4xf32>
    %204 = arith.negf %203 : vector<8x16x4xf32>
    %205 = math.exp %204 : vector<8x16x4xf32>
    %cst_17 = arith.constant 1.000000e+00 : f32
    %206 = vector.broadcast %cst_17 : f32 to vector<8x16x4xf32>
    %207 = arith.addf %206, %205 : vector<8x16x4xf32>
    %208 = arith.divf %206, %207 : vector<8x16x4xf32>
    %209 = arith.mulf %203, %208 : vector<8x16x4xf32>
    %c2_i32_18 = arith.constant 2 : i32
    %210 = arith.addi %3, %c2_i32_18 : i32
    %211 = arith.index_cast %210 : i32 to index
    %c2 = arith.constant 2 : index
    %c0_19 = arith.constant 0 : index
    %212 = vector.load %arg10[%211, %c2, %c0_19] : memref<20x20x4xf32, #tpu.memory_space<vmem>>, vector<8x16x4xf32>
    %c0_20 = arith.constant 0 : index
    %c0_21 = arith.constant 0 : index
    %c0_22 = arith.constant 0 : index
    %c0_23 = arith.constant 0 : index
    %c0_24 = arith.constant 0 : index
    %213 = vector.load %arg9[%c0_20, %c0_21, %c0_22, %c0_23, %c0_24] : memref<1x2x8x16x4xf32, #tpu.memory_space<vmem>>, vector<1x1x8x16x4xf32>
    %214 = vector.shape_cast %213 : vector<1x1x8x16x4xf32> to vector<8x16x4xf32>
    %215 = vector.shape_cast %212 : vector<8x16x4xf32> to vector<1x1x8x16x4xf32>
    tpu.vector_store %arg9[%c0_20, %c0_21, %c0_22, %c0_23, %c0_24], %215 {strides = array<i32>} : memref<1x2x8x16x4xf32, #tpu.memory_space<vmem>>, vector<1x1x8x16x4xf32>,
    %c0_25 = arith.constant 0 : index
    %c1 = arith.constant 1 : index
    %c0_26 = arith.constant 0 : index
    %c0_27 = arith.constant 0 : index
    %c0_28 = arith.constant 0 : index
    %216 = vector.load %arg9[%c0_25, %c1, %c0_26, %c0_27, %c0_28] : memref<1x2x8x16x4xf32, #tpu.memory_space<vmem>>, vector<1x1x8x16x4xf32>
    %217 = vector.shape_cast %216 : vector<1x1x8x16x4xf32> to vector<8x16x4xf32>
    %218 = vector.shape_cast %209 : vector<8x16x4xf32> to vector<1x1x8x16x4xf32>
    tpu.vector_store %arg9[%c0_25, %c1, %c0_26, %c0_27, %c0_28], %218 {strides = array<i32>} : memref<1x2x8x16x4xf32, #tpu.memory_space<vmem>>, vector<1x1x8x16x4xf32>,
    return
  }
  func.func @transform_0(%arg0: i32, %arg1: i32) -> (i32, i32, i32, i32) {
    %c0_i32 = arith.constant 0 : i32
    %c0_i32_0 = arith.constant 0 : i32
    %c0_i32_1 = arith.constant 0 : i32
    %c0_i32_2 = arith.constant 0 : i32
    return %arg0, %c0_i32, %c0_i32_0, %c0_i32_1 : i32, i32, i32, i32
  }
  func.func @transform_1(%arg0: i32, %arg1: i32) -> (i32, i32) {
    %c0_i32 = arith.constant 0 : i32
    %c0_i32_0 = arith.constant 0 : i32
    %c0_i32_1 = arith.constant 0 : i32
    return %c0_i32, %c0_i32_0 : i32, i32
  }
  func.func @transform_2(%arg0: i32, %arg1: i32) -> (i32, i32) {
    %c0_i32 = arith.constant 0 : i32
    %c0_i32_0 = arith.constant 0 : i32
    %c0_i32_1 = arith.constant 0 : i32
    return %c0_i32, %c0_i32_0 : i32, i32
  }
  func.func @transform_3(%arg0: i32, %arg1: i32) -> (i32, i32) {
    %c0_i32 = arith.constant 0 : i32
    %c0_i32_0 = arith.constant 0 : i32
    %c0_i32_1 = arith.constant 0 : i32
    return %c0_i32, %c0_i32_0 : i32, i32
  }
  func.func @transform_4(%arg0: i32, %arg1: i32) -> (i32, i32) {
    %c0_i32 = arith.constant 0 : i32
    %c0_i32_0 = arith.constant 0 : i32
    %c0_i32_1 = arith.constant 0 : i32
    return %c0_i32, %c0_i32_0 : i32, i32
  }
  func.func @transform_5(%arg0: i32, %arg1: i32) -> (i32, i32) {
    %c0_i32 = arith.constant 0 : i32
    %c0_i32_0 = arith.constant 0 : i32
    %c0_i32_1 = arith.constant 0 : i32
    return %c0_i32, %c0_i32_0 : i32, i32
  }
  func.func @transform_6(%arg0: i32, %arg1: i32) -> (i32, i32) {
    %c0_i32 = arith.constant 0 : i32
    %c0_i32_0 = arith.constant 0 : i32
    %c0_i32_1 = arith.constant 0 : i32
    return %c0_i32, %c0_i32_0 : i32, i32
  }
  func.func @transform_7(%arg0: i32, %arg1: i32) -> (i32, i32, i32, i32, i32) {
    %c0_i32 = arith.constant 0 : i32
    %c0_i32_0 = arith.constant 0 : i32
    %c0_i32_1 = arith.constant 0 : i32
    %c0_i32_2 = arith.constant 0 : i32
    return %arg0, %c0_i32, %arg1, %c0_i32_0, %c0_i32_1 : i32, i32, i32, i32, i32
  }
}

</mosaic_0001>

<llo_original>
// kernel: ghostconv_forward.1
$region0: #{ghostconv_forward.1}
  #allocation0 [shape = 'u32[]', space=smem, size = 0x4, offset = 0x4, fixed_abs, tag = 'smem constant byte address 0x4 - core index']
  #allocation1 [shape = 'u32[144,128]{1,0:T(1,128)}', space=vmem, size = 0x12000, scoped, tag = 'internal scratch']
  #allocation2 [shape = 'f32[20,20,4]{2,1,0:T(8,128)}', space=vmem, size = 0x3c000, scoped, tag = 'scratch operand']
  %s0 = inlined_call_operand.vmem [shape: f32[2,16,16,4], index: 0, kind: input, shape index: {}]
  %s1 = inlined_call_operand.vmem [shape: f32[4,4], index: 1, kind: input, shape index: {}]
  %s2 = inlined_call_operand.vmem [shape: f32[1,4], index: 2, kind: input, shape index: {}]
  %s3 = inlined_call_operand.vmem [shape: f32[1,4], index: 3, kind: input, shape index: {}]
  %s4 = inlined_call_operand.vmem [shape: f32[25,4], index: 4, kind: input, shape index: {}]
  %s5 = inlined_call_operand.vmem [shape: f32[1,4], index: 5, kind: input, shape index: {}]
  %s6 = inlined_call_operand.vmem [shape: f32[1,4], index: 6, kind: input, shape index: {}]
  %s7 = inlined_call_operand.vmem [shape: f32[2,2,16,16,4], index: 7, kind: output, shape index: {}]
  %s8 = sld [smem:[#allocation0]]
  $region99: #{ghostconv_forward.1} parent=0
    _
  %s10 = ssub.s32 1, %s8
  %s11 = scalar_select 0, %s10, %s8
  $region1: #{ghostconv_forward.1} parent=0
    #allocation3 [shape = 'u8[262144]{0}', space=vmem, size = 0x40000, scoped, tag = 'output window, operand 0']
    loop: start=0, step=1, limit=6
    $region2: #{ghostconv_forward.1} parent=1 // loop_pre_header
      _
    $region3: #{ghostconv_forward.1} parent=1 // loop_header
      %s13 = sphi 0, %s17
      %p14 = scmp.ge.s32.totalorder %s13, 6
      %s20 = sphi 0, %s32
      %s21 = sphi 0, %s28
      %s22 = sphi 0, %s20
      %s23 = sphi 0, %s21
      %s24 = sphi 0, %s22
      %s25 = sphi 0, %s23
      %s35 = sphi 0, %s37
      %s38 = sphi 0, %s35
      %s39 = sphi 0, %s38
      %s55 = sphi 0, %s39
      %s59 = sphi 0, %s59
      %s61 = sphi 0, %s59
      %s62 = sphi 0, %s61
      %s76 = sphi 0, %s62
      %s80 = sphi 0, %s80
      %s82 = sphi 0, %s80
      %s83 = sphi 0, %s82
      %s97 = sphi 0, %s83
      %s101 = sphi 0, %s101
      %s103 = sphi 0, %s101
      %s104 = sphi 0, %s103
      %s118 = sphi 0, %s104
      %s122 = sphi 0, %s122
      %s124 = sphi 0, %s122
      %s125 = sphi 0, %s124
      %s139 = sphi 0, %s125
      %s143 = sphi 0, %s143
      %s145 = sphi 0, %s143
      %s146 = sphi 0, %s145
      %s160 = sphi 0, %s146
      %s164 = sphi 0, %s164
      %s166 = sphi 0, %s164
      %s167 = sphi 0, %s166
      %s181 = sphi 0, %s167
      %s189 = sphi 0, %s191
      %s192 = sphi 0, %s189
      %s193 = sphi 0, %s192
      %s209 = sphi 0, %s193
    $region4: #{ghostconv_forward.1} parent=1 // loop_header_branch
      %16 = sbr.rel (%p14) target = $region8
    $region5: #{ghostconv_forward.1} parent=1 // loop_body
      %s18 = ssub.s32 %s13, 1
      %s19 = ssub.s32 %s13, 2
      %s26 = sadd.s32 1, %s21
      %p27 = scmp.ge.s32.totalorder %s26, 2
      %s28 = scalar_select %p27, 0, %s26
      %s29 = sadd.s32 1, %s20
      %s30 = scalar_select %p27, %s29, %s20
      %p31 = scmp.ge.s32.totalorder %s30, 2
      %s32 = scalar_select %p31, 0, %s30
      %s33 = ssub.s32 %s20, %s32
      %p34 = scmp.eq.s32.totalorder %s33, 0
      %s36 = sadd.s32 %s35, 1
      %s37 = scalar_select %p34, %s35, %s36
      %p40 = pneg %p34
      %p41 = scmp.eq.s32.totalorder %s13, 3
      %p42 = por %p40, %p41
      %p43 = scmp.ne.s32.totalorder %s35, %s38
      %p44 = scmp.eq.s32.totalorder %s13, 0
      %p45 = por %p43, %p44
      %p46 = scmp.ne.s32.totalorder %s35, %s38
      %p47 = scmp.eq.s32.totalorder %s18, 3
      %p48 = por %p46, %p47
      %p49 = scmp.ne.s32.totalorder %s38, %s39
      %p50 = scmp.eq.s32.totalorder %s18, 0
      %p51 = por %p49, %p50
      %p52 = scmp.ne.s32.totalorder %s38, %s39
      %p53 = scmp.eq.s32.totalorder %s19, 3
      %p54 = por %p52, %p53
      %p56 = scmp.ne.s32.totalorder %s39, %s55
      %p57 = scmp.eq.s32.totalorder %s19, 0
      %p58 = por %p56, %p57
      %s60 = sadd.s32 %s59, 1
      %p63 = scmp.eq.s32.totalorder %s13, 3
      %p64 = scmp.ne.s32.totalorder %s59, %s61
      %p65 = scmp.eq.s32.totalorder %s13, 0
      %p66 = por %p64, %p65
      %p67 = scmp.ne.s32.totalorder %s59, %s61
      %p68 = scmp.eq.s32.totalorder %s18, 3
      %p69 = por %p67, %p68
      %p70 = scmp.ne.s32.totalorder %s61, %s62
      %p71 = scmp.eq.s32.totalorder %s18, 0
      %p72 = por %p70, %p71
      %p73 = scmp.ne.s32.totalorder %s61, %s62
      %p74 = scmp.eq.s32.totalorder %s19, 3
      %p75 = por %p73, %p74
      %p77 = scmp.ne.s32.totalorder %s62, %s76
      %p78 = scmp.eq.s32.totalorder %s19, 0
      %p79 = por %p77, %p78
      %s81 = sadd.s32 %s80, 1
      %p84 = scmp.eq.s32.totalorder %s13, 3
      %p85 = scmp.ne.s32.totalorder %s80, %s82
      %p86 = scmp.eq.s32.totalorder %s13, 0
      %p87 = por %p85, %p86
      %p88 = scmp.ne.s32.totalorder %s80, %s82
      %p89 = scmp.eq.s32.totalorder %s18, 3
      %p90 = por %p88, %p89
      %p91 = scmp.ne.s32.totalorder %s82, %s83
      %p92 = scmp.eq.s32.totalorder %s18, 0
      %p93 = por %p91, %p92
      %p94 = scmp.ne.s32.totalorder %s82, %s83
      %p95 = scmp.eq.s32.totalorder %s19, 3
      %p96 = por %p94, %p95
      %p98 = scmp.ne.s32.totalorder %s83, %s97
      %p99 = scmp.eq.s32.totalorder %s19, 0
      %p100 = por %p98, %p99
      %s102 = sadd.s32 %s101, 1
      %p105 = scmp.eq.s32.totalorder %s13, 3
      %p106 = scmp.ne.s32.totalorder %s101, %s103
      %p107 = scmp.eq.s32.totalorder %s13, 0
      %p108 = por %p106, %p107
      %p109 = scmp.ne.s32.totalorder %s101, %s103
      %p110 = scmp.eq.s32.totalorder %s18, 3
      %p111 = por %p109, %p110
      %p112 = scmp.ne.s32.totalorder %s103, %s104
      %p113 = scmp.eq.s32.totalorder %s18, 0
      %p114 = por %p112, %p113
      %p115 = scmp.ne.s32.totalorder %s103, %s104
      %p116 = scmp.eq.s32.totalorder %s19, 3
      %p117 = por %p115, %p116
      %p119 = scmp.ne.s32.totalorder %s104, %s118
      %p120 = scmp.eq.s32.totalorder %s19, 0
      %p121 = por %p119, %p120
      %s123 = sadd.s32 %s122, 1
      %p126 = scmp.eq.s32.totalorder %s13, 3
      %p127 = scmp.ne.s32.totalorder %s122, %s124
      %p128 = scmp.eq.s32.totalorder %s13, 0
      %p129 = por %p127, %p128
      %p130 = scmp.ne.s32.totalorder %s122, %s124
      %p131 = scmp.eq.s32.totalorder %s18, 3
      %p132 = por %p130, %p131
      %p133 = scmp.ne.s32.totalorder %s124, %s125
      %p134 = scmp.eq.s32.totalorder %s18, 0
      %p135 = por %p133, %p134
      %p136 = scmp.ne.s32.totalorder %s124, %s125
      %p137 = scmp.eq.s32.totalorder %s19, 3
      %p138 = por %p136, %p137
      %p140 = scmp.ne.s32.totalorder %s125, %s139
      %p141 = scmp.eq.s32.totalorder %s19, 0
      %p142 = por %p140, %p141
      %s144 = sadd.s32 %s143, 1
      %p147 = scmp.eq.s32.totalorder %s13, 3
      %p148 = scmp.ne.s32.totalorder %s143, %s145
      %p149 = scmp.eq.s32.totalorder %s13, 0
      %p150 = por %p148, %p149
      %p151 = scmp.ne.s32.totalorder %s143, %s145
      %p152 = scmp.eq.s32.totalorder %s18, 3
      %p153 = por %p151, %p152
      %p154 = scmp.ne.s32.totalorder %s145, %s146
      %p155 = scmp.eq.s32.totalorder %s18, 0
      %p156 = por %p154, %p155
      %p157 = scmp.ne.s32.totalorder %s145, %s146
      %p158 = scmp.eq.s32.totalorder %s19, 3
      %p159 = por %p157, %p158
      %p161 = scmp.ne.s32.totalorder %s146, %s160
      %p162 = scmp.eq.s32.totalorder %s19, 0
      %p163 = por %p161, %p162
      %s165 = sadd.s32 %s164, 1
      %p168 = scmp.eq.s32.totalorder %s13, 3
      %p169 = scmp.ne.s32.totalorder %s164, %s166
      %p170 = scmp.eq.s32.totalorder %s13, 0
      %p171 = por %p169, %p170
      %p172 = scmp.ne.s32.totalorder %s164, %s166
      %p173 = scmp.eq.s32.totalorder %s18, 3
      %p174 = por %p172, %p173
      %p175 = scmp.ne.s32.totalorder %s166, %s167
      %p176 = scmp.eq.s32.totalorder %s18, 0
      %p177 = por %p175, %p176
      %p178 = scmp.ne.s32.totalorder %s166, %s167
      %p179 = scmp.eq.s32.totalorder %s19, 3
      %p180 = por %p178, %p179
      %p182 = scmp.ne.s32.totalorder %s167, %s181
      %p183 = scmp.eq.s32.totalorder %s19, 0
      %p184 = por %p182, %p183
      %s185 = ssub.s32 %s20, %s32
      %s186 = ssub.s32 %s21, %s28
      %s187 = sor.u32 %s185, %s186
      %p188 = scmp.eq.s32.totalorder %s187, 0
      %s190 = sadd.s32 %s189, 1
      %s191 = scalar_select %p188, %s189, %s190
      %p194 = pneg %p188
      %p195 = scmp.eq.s32.totalorder %s13, 3
      %p196 = por %p194, %p195
      %p197 = scmp.ne.s32.totalorder %s189, %s192
      %p198 = scmp.eq.s32.totalorder %s13, 0
      %p199 = por %p197, %p198
      %p200 = scmp.ne.s32.totalorder %s189, %s192
      %p201 = scmp.eq.s32.totalorder %s18, 3
      %p202 = por %p200, %p201
      %p203 = scmp.ne.s32.totalorder %s192, %s193
      %p204 = scmp.eq.s32.totalorder %s18, 0
      %p205 = por %p203, %p204
      %p206 = scmp.ne.s32.totalorder %s192, %s193
      %p207 = scmp.eq.s32.totalorder %s19, 3
      %p208 = por %p206, %p207
      %p210 = scmp.ne.s32.totalorder %s193, %s209
      %p211 = scmp.eq.s32.totalorder %s19, 0
      %p212 = por %p210, %p211
      %p213 = scmp.le.s32.totalorder 1, %s13
      %p214 = scmp.lt.s32.totalorder %s13, 5
      %p215 = pnand %p213, %p214
      %p216 = pneg %p215
      // Predicated region
      $region9: #{ghostconv_forward.1} parent=5 // pred_check
        _
      $region10: #{ghostconv_forward.1} parent=5 // pred_check_branch
        %218 = sbr.rel (%p215) target = $region12
      $region11: #{ghostconv_forward.1} parent=5 // pred_region
        %s219 = ssub.s32 %s13, 1
        // Predicated region
        $region13: #{ghostconv_forward.1} parent=11 // pred_check
          %p220 = pneg %p72
        $region14: #{ghostconv_forward.1} parent=11 // pred_check_branch
          %222 = sbr.rel (%p220) target = $region16
        $region15: #{ghostconv_forward.1} parent=11 // pred_region
          _
        $region16: #{ghostconv_forward.1} parent=11 // pred_fallthru
          _
        // Predicated region
        $region17: #{ghostconv_forward.1} parent=11 // pred_check
          %p223 = pneg %p93
        $region18: #{ghostconv_forward.1} parent=11 // pred_check_branch
          %225 = sbr.rel (%p223) target = $region20
        $region19: #{ghostconv_forward.1} parent=11 // pred_region
          _
        $region20: #{ghostconv_forward.1} parent=11 // pred_fallthru
          _
        // Predicated region
        $region21: #{ghostconv_forward.1} parent=11 // pred_check
          %p226 = pneg %p114
        $region22: #{ghostconv_forward.1} parent=11 // pred_check_branch
          %228 = sbr.rel (%p226) target = $region24
        $region23: #{ghostconv_forward.1} parent=11 // pred_region
          _
        $region24: #{ghostconv_forward.1} parent=11 // pred_fallthru
          _
        // Predicated region
        $region25: #{ghostconv_forward.1} parent=11 // pred_check
          %p229 = pneg %p135
        $region26: #{ghostconv_forward.1} parent=11 // pred_check_branch
          %231 = sbr.rel (%p229) target = $region28
        $region27: #{ghostconv_forward.1} parent=11 // pred_region
          _
        $region28: #{ghostconv_forward.1} parent=11 // pred_fallthru
          _
        // Predicated region
        $region29: #{ghostconv_forward.1} parent=11 // pred_check
          %p232 = pneg %p156
        $region30: #{ghostconv_forward.1} parent=11 // pred_check_branch
          %234 = sbr.rel (%p232) target = $region32
        $region31: #{ghostconv_forward.1} parent=11 // pred_region
          _
        $region32: #{ghostconv_forward.1} parent=11 // pred_fallthru
          _
        // Predicated region
        $region33: #{ghostconv_forward.1} parent=11 // pred_check
          %p235 = pneg %p177
        $region34: #{ghostconv_forward.1} parent=11 // pred_check_branch
          %237 = sbr.rel (%p235) target = $region36
        $region35: #{ghostconv_forward.1} parent=11 // pred_region
          _
        $region36: #{ghostconv_forward.1} parent=11 // pred_fallthru
          _
      $region12: #{ghostconv_forward.1} parent=5 // pred_fallthru
        _
      %p238 = scmp.lt.s32.totalorder %s13, 4
      // Predicated region
      $region37: #{ghostconv_forward.1} parent=5 // pred_check
        %p239 = pneg %p238
      $region38: #{ghostconv_forward.1} parent=5 // pred_check_branch
        %241 = sbr.rel (%p239) target = $region40
      $region39: #{ghostconv_forward.1} parent=5 // pred_region
        // Predicated region
        $region41: #{ghostconv_forward.1} parent=39 // pred_check
          %p242 = pneg %p45
        $region42: #{ghostconv_forward.1} parent=39 // pred_check_branch
          %244 = sbr.rel (%p242) target = $region44
        $region43: #{ghostconv_forward.1} parent=39 // pred_region
          %p245 = scmp.lt.s32.totalorder %s20, 1
          %s246 = scalar_select %p245, %s20, 1
          %s247 = smul.addr %s246, 32
          %s248 = smul.addr %s247, 8
          %s249 = scalar_lea.vmem %s0, %s248
        $region44: #{ghostconv_forward.1} parent=39 // pred_fallthru
          _
      $region40: #{ghostconv_forward.1} parent=5 // pred_fallthru
        _
      %p250 = scmp.le.s32.totalorder 1, %s13
      %p251 = scmp.lt.s32.totalorder %s13, 5
      %p252 = pnand %p250, %p251
      %p253 = pneg %p252
      // Predicated region
      $region45: #{ghostconv_forward.1} parent=5 // pred_check
        _
      $region46: #{ghostconv_forward.1} parent=5 // pred_check_branch
        %255 = sbr.rel (%p252) target = $region48
      $region47: #{ghostconv_forward.1} parent=5 // pred_region
        %s256 = ssub.s32 %s13, 1
        %p257 = scmp.lt.s32.totalorder %s22, 1
        %s258 = scalar_select %p257, %s22, 1
        %s259 = smul.addr %s258, 32
        %s260 = smul.addr %s259, 8
        %s261 = scalar_lea.vmem %s0, %s260
        %p262 = pneg %p51
        %p263 = pneg %p48
        %p264 = pneg %p72
        %p265 = pneg %p69
        %p266 = pneg %p93
        %p267 = pneg %p90
        %p268 = pneg %p114
        %p269 = pneg %p111
        %p270 = pneg %p135
        %p271 = pneg %p132
        %p272 = pneg %p156
        %p273 = pneg %p153
        %p274 = pneg %p177
        %p275 = pneg %p174
        %p276 = pneg %p205
        %p277 = pneg %p202
        %s278 = sand.u32 %s192, 1
        %s279 = sand.u32 %s192, 1
        %s280 = smul.addr %s279, 256
        %s281 = scalar_lea.vmem [#allocation3], %s280
        %p282 = scmp.lt.s32.totalorder %s22, 1
        %s283 = scalar_select %p282, %s22, 1
        %s284 = smul.addr %s283, 32
        %s285 = smul.addr %s284, 8
        %s286 = scalar_lea.vmem %s0, %s285
        %s287 = smul.u32 8, %s23
        %p288 = scmp.eq.s32.totalorder %s23, 0
        // Predicated region
        $region49: #{ghostconv_forward.1} parent=47 // pred_check
          %p289 = pneg %p288
        $region50: #{ghostconv_forward.1} parent=47 // pred_check_branch
          %291 = sbr.rel (%p289) target = $region52
        $region51: #{ghostconv_forward.1} parent=47 // pred_region
          %vm292 = vcmask 31744
          %293 = vst.msk [vmem:[#allocation2] sm:$0xff] %vm292, 0.0
          %294 = vst.msk [vmem:[#allocation2 + $0x8] sm:$0xff] %vm292, 0.0
          %vm295 = vcmask 27648
          %296 = vst.msk [vmem:[#allocation2 + $0x10] sm:$0xf] %vm295, 0.0
          %297 = vst.msk [vmem:[#allocation2 + $0x18] sm:$0xff] %vm292, 0.0
          %298 = vst.msk [vmem:[#allocation2 + $0x20] sm:$0xff] %vm292, 0.0
          %299 = vst.msk [vmem:[#allocation2 + $0x28] sm:$0xf] %vm295, 0.0
          %300 = vst.msk [vmem:[#allocation2 + $0x30] sm:$0xff] %vm292, 0.0
          %301 = vst.msk [vmem:[#allocation2 + $0x38] sm:$0xff] %vm292, 0.0
          %302 = vst.msk [vmem:[#allocation2 + $0x40] sm:$0xf] %vm295, 0.0
          %303 = vst.msk [vmem:[#allocation2 + $0x48] sm:$0xff] %vm292, 0.0
          %304 = vst.msk [vmem:[#allocation2 + $0x50] sm:$0xff] %vm292, 0.0
          %305 = vst.msk [vmem:[#allocation2 + $0x58] sm:$0xf] %vm295, 0.0
          %306 = vst.msk [vmem:[#allocation2 + $0x60] sm:$0xff] %vm292, 0.0
          %307 = vst.msk [vmem:[#allocation2 + $0x68] sm:$0xff] %vm292, 0.0
          %308 = vst.msk [vmem:[#allocation2 + $0x70] sm:$0xf] %vm295, 0.0
          %309 = vst.msk [vmem:[#allocation2 + $0x78] sm:$0xff] %vm292, 0.0
          %310 = vst.msk [vmem:[#allocation2 + $0x80] sm:$0xff] %vm292, 0.0
          %311 = vst.msk [vmem:[#allocation2 + $0x88] sm:$0xf] %vm295, 0.0
          %312 = vst.msk [vmem:[#allocation2 + $0x90] sm:$0xff] %vm292, 0.0
          %313 = vst.msk [vmem:[#allocation2 + $0x98] sm:$0xff] %vm292, 0.0
          %314 = vst.msk [vmem:[#allocation2 + $0xa0] sm:$0xf] %vm295, 0.0
          %315 = vst.msk [vmem:[#allocation2 + $0xa8] sm:$0xff] %vm292, 0.0
          %316 = vst.msk [vmem:[#allocation2 + $0xb0] sm:$0xff] %vm292, 0.0
          %317 = vst.msk [vmem:[#allocation2 + $0xb8] sm:$0xf] %vm295, 0.0
          %318 = vst.msk [vmem:[#allocation2 + $0xc0] sm:$0xff] %vm292, 0.0
          %319 = vst.msk [vmem:[#allocation2 + $0xc8] sm:$0xff] %vm292, 0.0
          %320 = vst.msk [vmem:[#allocation2 + $0xd0] sm:$0xf] %vm295, 0.0
          %321 = vst.msk [vmem:[#allocation2 + $0xd8] sm:$0xff] %vm292, 0.0
          %322 = vst.msk [vmem:[#allocation2 + $0xe0] sm:$0xff] %vm292, 0.0
          %323 = vst.msk [vmem:[#allocation2 + $0xe8] sm:$0xf] %vm295, 0.0
          %324 = vst.msk [vmem:[#allocation2 + $0xf0] sm:$0xff] %vm292, 0.0
          %325 = vst.msk [vmem:[#allocation2 + $0xf8] sm:$0xff] %vm292, 0.0
          %326 = vst.msk [vmem:[#allocation2 + $0x100] sm:$0xf] %vm295, 0.0
          %327 = vst.msk [vmem:[#allocation2 + $0x108] sm:$0xff] %vm292, 0.0
          %328 = vst.msk [vmem:[#allocation2 + $0x110] sm:$0xff] %vm292, 0.0
          %329 = vst.msk [vmem:[#allocation2 + $0x118] sm:$0xf] %vm295, 0.0
          %330 = vst.msk [vmem:[#allocation2 + $0x120] sm:$0xff] %vm292, 0.0
          %331 = vst.msk [vmem:[#allocation2 + $0x128] sm:$0xff] %vm292, 0.0
          %332 = vst.msk [vmem:[#allocation2 + $0x130] sm:$0xf] %vm295, 0.0
          %333 = vst.msk [vmem:[#allocation2 + $0x138] sm:$0xff] %vm292, 0.0
          %334 = vst.msk [vmem:[#allocation2 + $0x140] sm:$0xff] %vm292, 0.0
          %335 = vst.msk [vmem:[#allocation2 + $0x148] sm:$0xf] %vm295, 0.0
          %336 = vst.msk [vmem:[#allocation2 + $0x150] sm:$0xff] %vm292, 0.0
          %337 = vst.msk [vmem:[#allocation2 + $0x158] sm:$0xff] %vm292, 0.0
          %338 = vst.msk [vmem:[#allocation2 + $0x160] sm:$0xf] %vm295, 0.0
          %339 = vst.msk [vmem:[#allocation2 + $0x168] sm:$0xff] %vm292, 0.0
          %340 = vst.msk [vmem:[#allocation2 + $0x170] sm:$0xff] %vm292, 0.0
          %341 = vst.msk [vmem:[#allocation2 + $0x178] sm:$0xf] %vm295, 0.0
          %342 = vst.msk [vmem:[#allocation2 + $0x180] sm:$0xff] %vm292, 0.0
          %343 = vst.msk [vmem:[#allocation2 + $0x188] sm:$0xff] %vm292, 0.0
          %344 = vst.msk [vmem:[#allocation2 + $0x190] sm:$0xf] %vm295, 0.0
          %345 = vst.msk [vmem:[#allocation2 + $0x198] sm:$0xff] %vm292, 0.0
          %346 = vst.msk [vmem:[#allocation2 + $0x1a0] sm:$0xff] %vm292, 0.0
          %347 = vst.msk [vmem:[#allocation2 + $0x1a8] sm:$0xf] %vm295, 0.0
          %348 = vst.msk [vmem:[#allocation2 + $0x1b0] sm:$0xff] %vm292, 0.0
          %349 = vst.msk [vmem:[#allocation2 + $0x1b8] sm:$0xff] %vm292, 0.0
          %350 = vst.msk [vmem:[#allocation2 + $0x1c0] sm:$0xf] %vm295, 0.0
          %351 = vst.msk [vmem:[#allocation2 + $0x1c8] sm:$0xff] %vm292, 0.0
          %352 = vst.msk [vmem:[#allocation2 + $0x1d0] sm:$0xff] %vm292, 0.0
          %353 = vst.msk [vmem:[#allocation2 + $0x1d8] sm:$0xf] %vm295, 0.0
          %v354 = vld [vmem:[%s286] sm:$0xff]
          %v355 = vld [vmem:[%s286 + $0x8] sm:$0xff]
          %v356 = vld [vmem:[%s286 + $0x10] sm:$0xff]
          %v357 = vld [vmem:[%s286 + $0x18] sm:$0xff]
          %v358 = vld [vmem:[%s286 + $0x20] sm:$0xff]
          %v359 = vld [vmem:[%s286 + $0x28] sm:$0xff]
          %v360 = vld [vmem:[%s286 + $0x30] sm:$0xff]
          %v361 = vld [vmem:[%s286 + $0x38] sm:$0xff]
          %v362 = vld [vmem:[%s286 + $0x40] sm:$0xff]
          %v363 = vld [vmem:[%s286 + $0x48] sm:$0xff]
          %v364 = vld [vmem:[%s286 + $0x50] sm:$0xff]
          %v365 = vld [vmem:[%s286 + $0x58] sm:$0xff]
          %v366 = vld [vmem:[%s286 + $0x60] sm:$0xff]
          %v367 = vld [vmem:[%s286 + $0x68] sm:$0xff]
          %v368 = vld [vmem:[%s286 + $0x70] sm:$0xff]
          %v369 = vld [vmem:[%s286 + $0x78] sm:$0xff]
          %v370 = vld [vmem:[%s286 + $0x80] sm:$0xff]
          %v371 = vld [vmem:[%s286 + $0x88] sm:$0xff]
          %v372 = vld [vmem:[%s286 + $0x90] sm:$0xff]
          %v373 = vld [vmem:[%s286 + $0x98] sm:$0xff]
          %v374 = vld [vmem:[%s286 + $0xa0] sm:$0xff]
          %v375 = vld [vmem:[%s286 + $0xa8] sm:$0xff]
          %v376 = vld [vmem:[%s286 + $0xb0] sm:$0xff]
          %v377 = vld [vmem:[%s286 + $0xb8] sm:$0xff]
          %v378 = vld [vmem:[%s286 + $0xc0] sm:$0xff]
          %v379 = vld [vmem:[%s286 + $0xc8] sm:$0xff]
          %v380 = vld [vmem:[%s286 + $0xd0] sm:$0xff]
          %v381 = vld [vmem:[%s286 + $0xd8] sm:$0xff]
          %v382 = vld [vmem:[%s286 + $0xe0] sm:$0xff]
          %v383 = vld [vmem:[%s286 + $0xe8] sm:$0xff]
          %v384 = vld [vmem:[%s286 + $0xf0] sm:$0xff]
          %v385 = vld [vmem:[%s286 + $0xf8] sm:$0xff]
          %v386 = vld [vmem:[%s1] sm:$0xf]
          %v388 = vsel %vm292, %v354, 0
          %v391 = vsel %vm292, %v355, 0
          %v394 = vsel %vm292, %v356, 0
          %v397 = vsel %vm292, %v357, 0
          %v400 = vsel %vm292, %v358, 0
          %v403 = vsel %vm292, %v359, 0
          %v406 = vsel %vm292, %v360, 0
          %v409 = vsel %vm292, %v361, 0
          %v412 = vsel %vm292, %v362, 0
          %v415 = vsel %vm292, %v363, 0
          %v418 = vsel %vm292, %v364, 0
          %v421 = vsel %vm292, %v365, 0
          %v424 = vsel %vm292, %v366, 0
          %v427 = vsel %vm292, %v367, 0
          %v430 = vsel %vm292, %v368, 0
          %v433 = vsel %vm292, %v369, 0
          %v436 = vsel %vm292, %v370, 0
          %v439 = vsel %vm292, %v371, 0
          %v442 = vsel %vm292, %v372, 0
          %v445 = vsel %vm292, %v373, 0
          %v448 = vsel %vm292, %v374, 0
          %v451 = vsel %vm292, %v375, 0
          %v454 = vsel %vm292, %v376, 0
          %v457 = vsel %vm292, %v377, 0
          %v460 = vsel %vm292, %v378, 0
          %v463 = vsel %vm292, %v379, 0
          %v466 = vsel %vm292, %v380, 0
          %v469 = vsel %vm292, %v381, 0
          %v472 = vsel %vm292, %v382, 0
          %v475 = vsel %vm292, %v383, 0
          %v478 = vsel %vm292, %v384, 0
          %v481 = vsel %vm292, %v385, 0
          %vm483 = vcmask 1043456
          %v485 = vsel %vm483, %v386, 0
          %487 = vmatprep.subr.mxu0 0.0
          %488 = vmatpush1.msra.mxu0 0.0
          %489 = vmatprep.subr.mxu0 0.0
          %490 = vmatpush1.msra.mxu0 0.0
          %491 = vmatprep.subr.mxu0 0.0
          %492 = vmatpush1.msra.mxu0 0.0
          %493 = vmatprep.subr.mxu0 0.0
          %494 = vmatpush1.msra.mxu0 0.0
          %495 = vmatprep.subr.mxu0 0.0
          %496 = vmatpush1.msra.mxu0 0.0
          %497 = vmatprep.subr.mxu0 0.0
          %498 = vmatpush1.msra.mxu0 0.0
          %499 = vmatprep.subr.mxu0 0.0
          %500 = vmatpush1.msra.mxu0 0.0
          %501 = vmatprep.subr.mxu0 0.0
          %502 = vmatpush1.msra.mxu0 0.0
          %503 = vmatprep.subr.mxu0 0.0
          %504 = vmatpush1.msra.mxu0 0.0
          %505 = vmatprep.subr.mxu0 0.0
          %506 = vmatpush1.msra.mxu0 0.0
          %507 = vmatprep.subr.mxu0 0.0
          %508 = vmatpush1.msra.mxu0 0.0
          %509 = vmatprep.subr.mxu0 0.0
          %510 = vmatpush1.msra.mxu0 0.0
          %511 = vmatprep.subr.mxu0 0.0
          %512 = vmatpush1.msra.mxu0 0.0
          %513 = vmatprep.subr.mxu0 0.0
          %514 = vmatpush1.msra.mxu0 0.0
          %515 = vmatprep.subr.mxu0 0.0
          %516 = vmatpush1.msra.mxu0 0.0
          %517 = vmatprep.subr.mxu0 0.0
          %518 = vmatpush1.msra.mxu0 %v485
          %519 = vmatprep.subr.mxu0 0.0
          %520 = vmatpush2.msra.mxu0 0.0
          %521 = vmatprep.subr.mxu0 0.0
          %522 = vmatpush2.msra.mxu0 0.0
          %523 = vmatprep.subr.mxu0 0.0
          %524 = vmatpush2.msra.mxu0 0.0
          %525 = vmatprep.subr.mxu0 0.0
          %526 = vmatpush2.msra.mxu0 0.0
          %527 = vmatprep.subr.mxu0 0.0
          %528 = vmatpush2.msra.mxu0 0.0
          %529 = vmatprep.subr.mxu0 0.0
          %530 = vmatpush2.msra.mxu0 0.0
          %531 = vmatprep.subr.mxu0 0.0
          %532 = vmatpush2.msra.mxu0 0.0
          %533 = vmatprep.subr.mxu0 0.0
          %534 = vmatpush2.msra.mxu0 0.0
          %535 = vmatprep.subr.mxu0 0.0
          %536 = vmatpush2.msra.mxu0 0.0
          %537 = vmatprep.subr.mxu0 0.0
          %538 = vmatpush2.msra.mxu0 0.0
          %539 = vmatprep.subr.mxu0 0.0
          %540 = vmatpush2.msra.mxu0 0.0
          %541 = vmatprep.subr.mxu0 0.0
          %542 = vmatpush2.msra.mxu0 0.0
          %543 = vmatprep.subr.mxu0 0.0
          %544 = vmatpush2.msra.mxu0 0.0
          %545 = vmatprep.subr.mxu0 0.0
          %546 = vmatpush2.msra.mxu0 0.0
          %547 = vmatprep.subr.mxu0 0.0
          %548 = vmatpush2.msra.mxu0 0.0
          %549 = vmatprep.subr.mxu0 0.0
          %550 = vmatpush2.msra.mxu0 0.0
          %551 = vmatprep.mubr.f32.mxu0 0.0
          %552 = vmatmul.mubr.f32.gmra.mxu0 %v388
          %v553 = vpop.f32.mrf.mxu0
          %v554 = vadd.f32 0.0, %v553
          %v555 = vpop.f32.mrf.mxu0
          %556 = vmatprep.mubr.f32.mxu0 0.0
          %557 = vmatmul.mubr.f32.gmra.mxu0 %v391
          %v558 = vpop.f32.mrf.mxu0
          %v559 = vadd.f32 0.0, %v558
          %v560 = vpop.f32.mrf.mxu0
          %561 = vmatprep.mubr.f32.mxu0 0.0
          %562 = vmatmul.mubr.f32.gmra.mxu0 %v394
          %v563 = vpop.f32.mrf.mxu0
          %v564 = vadd.f32 0.0, %v563
          %v565 = vpop.f32.mrf.mxu0
          %566 = vmatprep.mubr.f32.mxu0 0.0
          %567 = vmatmul.mubr.f32.gmra.mxu0 %v397
          %v568 = vpop.f32.mrf.mxu0
          %v569 = vadd.f32 0.0, %v568
          %v570 = vpop.f32.mrf.mxu0
          %571 = vmatprep.mubr.f32.mxu0 0.0
          %572 = vmatmul.mubr.f32.gmra.mxu0 %v400
          %v573 = vpop.f32.mrf.mxu0
          %v574 = vadd.f32 0.0, %v573
          %v575 = vpop.f32.mrf.mxu0
          %576 = vmatprep.mubr.f32.mxu0 0.0
          %577 = vmatmul.mubr.f32.gmra.mxu0 %v403
          %v578 = vpop.f32.mrf.mxu0
          %v579 = vadd.f32 0.0, %v578
          %v580 = vpop.f32.mrf.mxu0
          %581 = vmatprep.mubr.f32.mxu0 0.0
          %582 = vmatmul.mubr.f32.gmra.mxu0 %v406
          %v583 = vpop.f32.mrf.mxu0
          %v584 = vadd.f32 0.0, %v583
          %v585 = vpop.f32.mrf.mxu0
          %586 = vmatprep.mubr.f32.mxu0 0.0
          %587 = vmatmul.mubr.f32.gmra.mxu0 %v409
          %v588 = vpop.f32.mrf.mxu0
          %v589 = vadd.f32 0.0, %v588
          %v590 = vpop.f32.mrf.mxu0
          %591 = vmatprep.mubr.f32.mxu0 0.0
          %592 = vmatmul.mubr.f32.gmra.mxu0 %v412
          %v593 = vpop.f32.mrf.mxu0
          %v594 = vadd.f32 0.0, %v593
          %v595 = vpop.f32.mrf.mxu0
          %596 = vmatprep.mubr.f32.mxu0 0.0
          %597 = vmatmul.mubr.f32.gmra.mxu0 %v415
          %v598 = vpop.f32.mrf.mxu0
          %v599 = vadd.f32 0.0, %v598
          %v600 = vpop.f32.mrf.mxu0
          %601 = vmatprep.mubr.f32.mxu0 0.0
          %602 = vmatmul.mubr.f32.gmra.mxu0 %v418
          %v603 = vpop.f32.mrf.mxu0
          %v604 = vadd.f32 0.0, %v603
          %v605 = vpop.f32.mrf.mxu0
          %606 = vmatprep.mubr.f32.mxu0 0.0
          %607 = vmatmul.mubr.f32.gmra.mxu0 %v421
          %v608 = vpop.f32.mrf.mxu0
          %v609 = vadd.f32 0.0, %v608
          %v610 = vpop.f32.mrf.mxu0
          %611 = vmatprep.mubr.f32.mxu0 0.0
          %612 = vmatmul.mubr.f32.gmra.mxu0 %v424
          %v613 = vpop.f32.mrf.mxu0
          %v614 = vadd.f32 0.0, %v613
          %v615 = vpop.f32.mrf.mxu0
          %616 = vmatprep.mubr.f32.mxu0 0.0
          %617 = vmatmul.mubr.f32.gmra.mxu0 %v427
          %v618 = vpop.f32.mrf.mxu0
          %v619 = vadd.f32 0.0, %v618
          %v620 = vpop.f32.mrf.mxu0
          %621 = vmatprep.mubr.f32.mxu0 0.0
          %622 = vmatmul.mubr.f32.gmra.mxu0 %v430
          %v623 = vpop.f32.mrf.mxu0
          %v624 = vadd.f32 0.0, %v623
          %v625 = vpop.f32.mrf.mxu0
          %626 = vmatprep.mubr.f32.mxu0 0.0
          %627 = vmatmul.mubr.f32.gmra.mxu0 %v433
          %v628 = vpop.f32.mrf.mxu0
          %v629 = vadd.f32 0.0, %v628
          %v630 = vpop.f32.mrf.mxu0
          %631 = vmatprep.mubr.f32.mxu0 0.0
          %632 = vmatmul.mubr.f32.gmra.mxu0 %v436
          %v633 = vpop.f32.mrf.mxu0
          %v634 = vadd.f32 0.0, %v633
          %v635 = vpop.f32.mrf.mxu0
          %636 = vmatprep.mubr.f32.mxu0 0.0
          %637 = vmatmul.mubr.f32.gmra.mxu0 %v439
          %v638 = vpop.f32.mrf.mxu0
          %v639 = vadd.f32 0.0, %v638
          %v640 = vpop.f32.mrf.mxu0
          %641 = vmatprep.mubr.f32.mxu0 0.0
          %642 = vmatmul.mubr.f32.gmra.mxu0 %v442
          %v643 = vpop.f32.mrf.mxu0
          %v644 = vadd.f32 0.0, %v643
          %v645 = vpop.f32.mrf.mxu0
          %646 = vmatprep.mubr.f32.mxu0 0.0
          %647 = vmatmul.mubr.f32.gmra.mxu0 %v445
          %v648 = vpop.f32.mrf.mxu0
          %v649 = vadd.f32 0.0, %v648
          %v650 = vpop.f32.mrf.mxu0
          %651 = vmatprep.mubr.f32.mxu0 0.0
          %652 = vmatmul.mubr.f32.gmra.mxu0 %v448
          %v653 = vpop.f32.mrf.mxu0
          %v654 = vadd.f32 0.0, %v653
          %v655 = vpop.f32.mrf.mxu0
          %656 = vmatprep.mubr.f32.mxu0 0.0
          %657 = vmatmul.mubr.f32.gmra.mxu0 %v451
          %v658 = vpop.f32.mrf.mxu0
          %v659 = vadd.f32 0.0, %v658
          %v660 = vpop.f32.mrf.mxu0
          %661 = vmatprep.mubr.f32.mxu0 0.0
          %662 = vmatmul.mubr.f32.gmra.mxu0 %v454
          %v663 = vpop.f32.mrf.mxu0
          %v664 = vadd.f32 0.0, %v663
          %v665 = vpop.f32.mrf.mxu0
          %666 = vmatprep.mubr.f32.mxu0 0.0
          %667 = vmatmul.mubr.f32.gmra.mxu0 %v457
          %v668 = vpop.f32.mrf.mxu0
          %v669 = vadd.f32 0.0, %v668
          %v670 = vpop.f32.mrf.mxu0
          %671 = vmatprep.mubr.f32.mxu0 0.0
          %672 = vmatmul.mubr.f32.gmra.mxu0 %v460
          %v673 = vpop.f32.mrf.mxu0
          %v674 = vadd.f32 0.0, %v673
          %v675 = vpop.f32.mrf.mxu0
          %676 = vmatprep.mubr.f32.mxu0 0.0
          %677 = vmatmul.mubr.f32.gmra.mxu0 %v463
          %v678 = vpop.f32.mrf.mxu0
          %v679 = vadd.f32 0.0, %v678
          %v680 = vpop.f32.mrf.mxu0
          %681 = vmatprep.mubr.f32.mxu0 0.0
          %682 = vmatmul.mubr.f32.gmra.mxu0 %v466
          %v683 = vpop.f32.mrf.mxu0
          %v684 = vadd.f32 0.0, %v683
          %v685 = vpop.f32.mrf.mxu0
          %686 = vmatprep.mubr.f32.mxu0 0.0
          %687 = vmatmul.mubr.f32.gmra.mxu0 %v469
          %v688 = vpop.f32.mrf.mxu0
          %v689 = vadd.f32 0.0, %v688
          %v690 = vpop.f32.mrf.mxu0
          %691 = vmatprep.mubr.f32.mxu0 0.0
          %692 = vmatmul.mubr.f32.gmra.mxu0 %v472
          %v693 = vpop.f32.mrf.mxu0
          %v694 = vadd.f32 0.0, %v693
          %v695 = vpop.f32.mrf.mxu0
          %696 = vmatprep.mubr.f32.mxu0 0.0
          %697 = vmatmul.mubr.f32.gmra.mxu0 %v475
          %v698 = vpop.f32.mrf.mxu0
          %v699 = vadd.f32 0.0, %v698
          %v700 = vpop.f32.mrf.mxu0
          %701 = vmatprep.mubr.f32.mxu0 0.0
          %702 = vmatmul.mubr.f32.gmra.mxu0 %v478
          %v703 = vpop.f32.mrf.mxu0
          %v704 = vadd.f32 0.0, %v703
          %v705 = vpop.f32.mrf.mxu0
          %706 = vmatprep.mubr.f32.mxu0 0.0
          %707 = vmatmul.mubr.f32.gmra.mxu0 %v481
          %v708 = vpop.f32.mrf.mxu0
          %v709 = vadd.f32 0.0, %v708
          %v710 = vpop.f32.mrf.mxu0
          %711 = vdwg.mxu0
          %v712 = vld [vmem:[%s2] sm:$0x1]
          %v714 = vlaneseq
          %v715 = vshrl.u32 %v714, 7
          %v716 = vsub.s32 0, %v715
          %v717 = vrot.slane %v712, %v716
          %v719 = vmul.f32 %v554, %v717
          %v720 = vmul.f32 %v559, %v717
          %v721 = vmul.f32 %v564, %v717
          %v722 = vmul.f32 %v569, %v717
          %v723 = vmul.f32 %v574, %v717
          %v724 = vmul.f32 %v579, %v717
          %v725 = vmul.f32 %v584, %v717
          %v726 = vmul.f32 %v589, %v717
          %v727 = vmul.f32 %v594, %v717
          %v728 = vmul.f32 %v599, %v717
          %v729 = vmul.f32 %v604, %v717
          %v730 = vmul.f32 %v609, %v717
          %v731 = vmul.f32 %v614, %v717
          %v732 = vmul.f32 %v619, %v717
          %v733 = vmul.f32 %v624, %v717
          %v734 = vmul.f32 %v629, %v717
          %v735 = vmul.f32 %v634, %v717
          %v736 = vmul.f32 %v639, %v717
          %v737 = vmul.f32 %v644, %v717
          %v738 = vmul.f32 %v649, %v717
          %v739 = vmul.f32 %v654, %v717
          %v740 = vmul.f32 %v659, %v717
          %v741 = vmul.f32 %v664, %v717
          %v742 = vmul.f32 %v669, %v717
          %v743 = vmul.f32 %v674, %v717
          %v744 = vmul.f32 %v679, %v717
          %v745 = vmul.f32 %v684, %v717
          %v746 = vmul.f32 %v689, %v717
          %v747 = vmul.f32 %v694, %v717
          %v748 = vmul.f32 %v699, %v717
          %v749 = vmul.f32 %v704, %v717
          %v750 = vmul.f32 %v709, %v717
          %v751 = vld [vmem:[%s3] sm:$0x1]
          %v753 = vlaneseq
          %v754 = vshrl.u32 %v753, 7
          %v755 = vsub.s32 0, %v754
          %v756 = vrot.slane %v751, %v755
          %v758 = vadd.f32 %v719, %v756
          %v759 = vadd.f32 %v720, %v756
          %v760 = vadd.f32 %v721, %v756
          %v761 = vadd.f32 %v722, %v756
          %v762 = vadd.f32 %v723, %v756
          %v763 = vadd.f32 %v724, %v756
          %v764 = vadd.f32 %v725, %v756
          %v765 = vadd.f32 %v726, %v756
          %v766 = vadd.f32 %v727, %v756
          %v767 = vadd.f32 %v728, %v756
          %v768 = vadd.f32 %v729, %v756
          %v769 = vadd.f32 %v730, %v756
          %v770 = vadd.f32 %v731, %v756
          %v771 = vadd.f32 %v732, %v756
          %v772 = vadd.f32 %v733, %v756
          %v773 = vadd.f32 %v734, %v756
          %v774 = vadd.f32 %v735, %v756
          %v775 = vadd.f32 %v736, %v756
          %v776 = vadd.f32 %v737, %v756
          %v777 = vadd.f32 %v738, %v756
          %v778 = vadd.f32 %v739, %v756
          %v779 = vadd.f32 %v740, %v756
          %v780 = vadd.f32 %v741, %v756
          %v781 = vadd.f32 %v742, %v756
          %v782 = vadd.f32 %v743, %v756
          %v783 = vadd.f32 %v744, %v756
          %v784 = vadd.f32 %v745, %v756
          %v785 = vadd.f32 %v746, %v756
          %v786 = vadd.f32 %v747, %v756
          %v787 = vadd.f32 %v748, %v756
          %v788 = vadd.f32 %v749, %v756
          %v789 = vadd.f32 %v750, %v756
          %v790 = vxor.u32 %v758, 2147483648
          %v791 = vxor.u32 %v759, 2147483648
          %v792 = vxor.u32 %v760, 2147483648
          %v793 = vxor.u32 %v761, 2147483648
          %v794 = vxor.u32 %v762, 2147483648
          %v795 = vxor.u32 %v763, 2147483648
          %v796 = vxor.u32 %v764, 2147483648
          %v797 = vxor.u32 %v765, 2147483648
          %v798 = vxor.u32 %v766, 2147483648
          %v799 = vxor.u32 %v767, 2147483648
          %v800 = vxor.u32 %v768, 2147483648
          %v801 = vxor.u32 %v769, 2147483648
          %v802 = vxor.u32 %v770, 2147483648
          %v803 = vxor.u32 %v771, 2147483648
          %v804 = vxor.u32 %v772, 2147483648
          %v805 = vxor.u32 %v773, 2147483648
          %v806 = vxor.u32 %v774, 2147483648
          %v807 = vxor.u32 %v775, 2147483648
          %v808 = vxor.u32 %v776, 2147483648
          %v809 = vxor.u32 %v777, 2147483648
          %v810 = vxor.u32 %v778, 2147483648
          %v811 = vxor.u32 %v779, 2147483648
          %v812 = vxor.u32 %v780, 2147483648
          %v813 = vxor.u32 %v781, 2147483648
          %v814 = vxor.u32 %v782, 2147483648
          %v815 = vxor.u32 %v783, 2147483648
          %v816 = vxor.u32 %v784, 2147483648
          %v817 = vxor.u32 %v785, 2147483648
          %v818 = vxor.u32 %v786, 2147483648
          %v819 = vxor.u32 %v787, 2147483648
          %v820 = vxor.u32 %v788, 2147483648
          %v821 = vxor.u32 %v789, 2147483648
          %v822 = vmul.f32 %v790, 1.442695
          %v823 = vpow.pop %v822
          %v824 = vmul.f32 %v791, 1.442695
          %v825 = vpow.pop %v824
          %v826 = vmul.f32 %v792, 1.442695
          %v827 = vpow.pop %v826
          %v828 = vmul.f32 %v793, 1.442695
          %v829 = vpow.pop %v828
          %v830 = vmul.f32 %v794, 1.442695
          %v831 = vpow.pop %v830
          %v832 = vmul.f32 %v795, 1.442695
          %v833 = vpow.pop %v832
          %v834 = vmul.f32 %v796, 1.442695
          %v835 = vpow.pop %v834
          %v836 = vmul.f32 %v797, 1.442695
          %v837 = vpow.pop %v836
          %v838 = vmul.f32 %v798, 1.442695
          %v839 = vpow.pop %v838
          %v840 = vmul.f32 %v799, 1.442695
          %v841 = vpow.pop %v840
          %v842 = vmul.f32 %v800, 1.442695
          %v843 = vpow.pop %v842
          %v844 = vmul.f32 %v801, 1.442695
          %v845 = vpow.pop %v844
          %v846 = vmul.f32 %v802, 1.442695
          %v847 = vpow.pop %v846
          %v848 = vmul.f32 %v803, 1.442695
          %v849 = vpow.pop %v848
          %v850 = vmul.f32 %v804, 1.442695
          %v851 = vpow.pop %v850
          %v852 = vmul.f32 %v805, 1.442695
          %v853 = vpow.pop %v852
          %v854 = vmul.f32 %v806, 1.442695
          %v855 = vpow.pop %v854
          %v856 = vmul.f32 %v807, 1.442695
          %v857 = vpow.pop %v856
          %v858 = vmul.f32 %v808, 1.442695
          %v859 = vpow.pop %v858
          %v860 = vmul.f32 %v809, 1.442695
          %v861 = vpow.pop %v860
          %v862 = vmul.f32 %v810, 1.442695
          %v863 = vpow.pop %v862
          %v864 = vmul.f32 %v811, 1.442695
          %v865 = vpow.pop %v864
          %v866 = vmul.f32 %v812, 1.442695
          %v867 = vpow.pop %v866
          %v868 = vmul.f32 %v813, 1.442695
          %v869 = vpow.pop %v868
          %v870 = vmul.f32 %v814, 1.442695
          %v871 = vpow.pop %v870
          %v872 = vmul.f32 %v815, 1.442695
          %v873 = vpow.pop %v872
          %v874 = vmul.f32 %v816, 1.442695
          %v875 = vpow.pop %v874
          %v876 = vmul.f32 %v817, 1.442695
          %v877 = vpow.pop %v876
          %v878 = vmul.f32 %v818, 1.442695
          %v879 = vpow.pop %v878
          %v880 = vmul.f32 %v819, 1.442695
          %v881 = vpow.pop %v880
          %v882 = vmul.f32 %v820, 1.442695
          %v883 = vpow.pop %v882
          %v884 = vmul.f32 %v821, 1.442695
          %v885 = vpow.pop %v884
          %v886 = vadd.f32 %v823, 1.0
          %v887 = vadd.f32 %v825, 1.0
          %v888 = vadd.f32 %v827, 1.0
          %v889 = vadd.f32 %v829, 1.0
          %v890 = vadd.f32 %v831, 1.0
          %v891 = vadd.f32 %v833, 1.0
          %v892 = vadd.f32 %v835, 1.0
          %v893 = vadd.f32 %v837, 1.0
          %v894 = vadd.f32 %v839, 1.0
          %v895 = vadd.f32 %v841, 1.0
          %v896 = vadd.f32 %v843, 1.0
          %v897 = vadd.f32 %v845, 1.0
          %v898 = vadd.f32 %v847, 1.0
          %v899 = vadd.f32 %v849, 1.0
          %v900 = vadd.f32 %v851, 1.0
          %v901 = vadd.f32 %v853, 1.0
          %v902 = vadd.f32 %v855, 1.0
          %v903 = vadd.f32 %v857, 1.0
          %v904 = vadd.f32 %v859, 1.0
          %v905 = vadd.f32 %v861, 1.0
          %v906 = vadd.f32 %v863, 1.0
          %v907 = vadd.f32 %v865, 1.0
          %v908 = vadd.f32 %v867, 1.0
          %v909 = vadd.f32 %v869, 1.0
          %v910 = vadd.f32 %v871, 1.0
          %v911 = vadd.f32 %v873, 1.0
          %v912 = vadd.f32 %v875, 1.0
          %v913 = vadd.f32 %v877, 1.0
          %v914 = vadd.f32 %v879, 1.0
          %v915 = vadd.f32 %v881, 1.0
          %v916 = vadd.f32 %v883, 1.0
          %v917 = vadd.f32 %v885, 1.0
          %v918 = vrcp.pop %v886
          %v919 = vmul.f32 1.0, %v918
          %v920 = vrcp.pop %v887
          %v921 = vmul.f32 1.0, %v920
          %v922 = vrcp.pop %v888
          %v923 = vmul.f32 1.0, %v922
          %v924 = vrcp.pop %v889
          %v925 = vmul.f32 1.0, %v924
          %v926 = vrcp.pop %v890
          %v927 = vmul.f32 1.0, %v926
          %v928 = vrcp.pop %v891
          %v929 = vmul.f32 1.0, %v928
          %v930 = vrcp.pop %v892
          %v931 = vmul.f32 1.0, %v930
          %v932 = vrcp.pop %v893
          %v933 = vmul.f32 1.0, %v932
          %v934 = vrcp.pop %v894
          %v935 = vmul.f32 1.0, %v934
          %v936 = vrcp.pop %v895
          %v937 = vmul.f32 1.0, %v936
          %v938 = vrcp.pop %v896
          %v939 = vmul.f32 1.0, %v938
          %v940 = vrcp.pop %v897
          %v941 = vmul.f32 1.0, %v940
          %v942 = vrcp.pop %v898
          %v943 = vmul.f32 1.0, %v942
          %v944 = vrcp.pop %v899
          %v945 = vmul.f32 1.0, %v944
          %v946 = vrcp.pop %v900
          %v947 = vmul.f32 1.0, %v946
          %v948 = vrcp.pop %v901
          %v949 = vmul.f32 1.0, %v948
          %v950 = vrcp.pop %v902
          %v951 = vmul.f32 1.0, %v950
          %v952 = vrcp.pop %v903
          %v953 = vmul.f32 1.0, %v952
          %v954 = vrcp.pop %v904
          %v955 = vmul.f32 1.0, %v954
          %v956 = vrcp.pop %v905
          %v957 = vmul.f32 1.0, %v956
          %v958 = vrcp.pop %v906
          %v959 = vmul.f32 1.0, %v958
          %v960 = vrcp.pop %v907
          %v961 = vmul.f32 1.0, %v960
          %v962 = vrcp.pop %v908
          %v963 = vmul.f32 1.0, %v962
          %v964 = vrcp.pop %v909
          %v965 = vmul.f32 1.0, %v964
          %v966 = vrcp.pop %v910
          %v967 = vmul.f32 1.0, %v966
          %v968 = vrcp.pop %v911
          %v969 = vmul.f32 1.0, %v968
          %v970 = vrcp.pop %v912
          %v971 = vmul.f32 1.0, %v970
          %v972 = vrcp.pop %v913
          %v973 = vmul.f32 1.0, %v972
          %v974 = vrcp.pop %v914
          %v975 = vmul.f32 1.0, %v974
          %v976 = vrcp.pop %v915
          %v977 = vmul.f32 1.0, %v976
          %v978 = vrcp.pop %v916
          %v979 = vmul.f32 1.0, %v978
          %v980 = vrcp.pop %v917
          %v981 = vmul.f32 1.0, %v980
          %v982 = vmul.f32 %v758, %v919
          %v983 = vmul.f32 %v759, %v921
          %v984 = vmul.f32 %v760, %v923
          %v985 = vmul.f32 %v761, %v925
          %v986 = vmul.f32 %v762, %v927
          %v987 = vmul.f32 %v763, %v929
          %v988 = vmul.f32 %v764, %v931
          %v989 = vmul.f32 %v765, %v933
          %v990 = vmul.f32 %v766, %v935
          %v991 = vmul.f32 %v767, %v937
          %v992 = vmul.f32 %v768, %v939
          %v993 = vmul.f32 %v769, %v941
          %v994 = vmul.f32 %v770, %v943
          %v995 = vmul.f32 %v771, %v945
          %v996 = vmul.f32 %v772, %v947
          %v997 = vmul.f32 %v773, %v949
          %v998 = vmul.f32 %v774, %v951
          %v999 = vmul.f32 %v775, %v953
          %v1000 = vmul.f32 %v776, %v955
          %v1001 = vmul.f32 %v777, %v957
          %v1002 = vmul.f32 %v778, %v959
          %v1003 = vmul.f32 %v779, %v961
          %v1004 = vmul.f32 %v780, %v963
          %v1005 = vmul.f32 %v781, %v965
          %v1006 = vmul.f32 %v782, %v967
          %v1007 = vmul.f32 %v783, %v969
          %v1008 = vmul.f32 %v784, %v971
          %v1009 = vmul.f32 %v785, %v973
          %v1010 = vmul.f32 %v786, %v975
          %v1011 = vmul.f32 %v787, %v977
          %v1012 = vmul.f32 %v788, %v979
          %v1013 = vmul.f32 %v789, %v981
          %s1014 = scalar_lea.vmem [#allocation2], 48
          %1015 = vst.msk [vmem:[%s1014 + $0x2] sm:$0xff] %vm292, %v982
          %1016 = vst.msk [vmem:[%s1014 + $0xa] sm:$0xff] %vm292, %v983
          %1017 = vst.msk [vmem:[%s1014 + $0x1a] sm:$0xff] %vm292, %v984
          %1018 = vst.msk [vmem:[%s1014 + $0x22] sm:$0xff] %vm292, %v985
          %1019 = vst.msk [vmem:[%s1014 + $0x32] sm:$0xff] %vm292, %v986
          %1020 = vst.msk [vmem:[%s1014 + $0x3a] sm:$0xff] %vm292, %v987
          %1021 = vst.msk [vmem:[%s1014 + $0x4a] sm:$0xff] %vm292, %v988
          %1022 = vst.msk [vmem:[%s1014 + $0x52] sm:$0xff] %vm292, %v989
          %1023 = vst.msk [vmem:[%s1014 + $0x62] sm:$0xff] %vm292, %v990
          %1024 = vst.msk [vmem:[%s1014 + $0x6a] sm:$0xff] %vm292, %v991
          %1025 = vst.msk [vmem:[%s1014 + $0x7a] sm:$0xff] %vm292, %v992
          %1026 = vst.msk [vmem:[%s1014 + $0x82] sm:$0xff] %vm292, %v993
          %1027 = vst.msk [vmem:[%s1014 + $0x92] sm:$0xff] %vm292, %v994
          %1028 = vst.msk [vmem:[%s1014 + $0x9a] sm:$0xff] %vm292, %v995
          %1029 = vst.msk [vmem:[%s1014 + $0xaa] sm:$0xff] %vm292, %v996
          %1030 = vst.msk [vmem:[%s1014 + $0xb2] sm:$0xff] %vm292, %v997
          %1031 = vst.msk [vmem:[%s1014 + $0xc2] sm:$0xff] %vm292, %v998
          %1032 = vst.msk [vmem:[%s1014 + $0xca] sm:$0xff] %vm292, %v999
          %1033 = vst.msk [vmem:[%s1014 + $0xda] sm:$0xff] %vm292, %v1000
          %1034 = vst.msk [vmem:[%s1014 + $0xe2] sm:$0xff] %vm292, %v1001
          %1035 = vst.msk [vmem:[%s1014 + $0xf2] sm:$0xff] %vm292, %v1002
          %1036 = vst.msk [vmem:[%s1014 + $0xfa] sm:$0xff] %vm292, %v1003
          %1037 = vst.msk [vmem:[%s1014 + $0x10a] sm:$0xff] %vm292, %v1004
          %1038 = vst.msk [vmem:[%s1014 + $0x112] sm:$0xff] %vm292, %v1005
          %1039 = vst.msk [vmem:[%s1014 + $0x122] sm:$0xff] %vm292, %v1006
          %1040 = vst.msk [vmem:[%s1014 + $0x12a] sm:$0xff] %vm292, %v1007
          %1041 = vst.msk [vmem:[%s1014 + $0x13a] sm:$0xff] %vm292, %v1008
          %1042 = vst.msk [vmem:[%s1014 + $0x142] sm:$0xff] %vm292, %v1009
          %1043 = vst.msk [vmem:[%s1014 + $0x152] sm:$0xff] %vm292, %v1010
          %1044 = vst.msk [vmem:[%s1014 + $0x15a] sm:$0xff] %vm292, %v1011
          %1045 = vst.msk [vmem:[%s1014 + $0x16a] sm:$0xff] %vm292, %v1012
          %1046 = vst.msk [vmem:[%s1014 + $0x172] sm:$0xff] %vm292, %v1013
        $region52: #{ghostconv_forward.1} parent=47 // pred_fallthru
          _
        %s1047 = smul.u32 %s23, 8
        %v1048 = vld [vmem:[%s4] sm:$0xff]
        %v1049 = vld [vmem:[%s4 + $0x8] sm:$0xff]
        %v1050 = vld [vmem:[%s4 + $0x10] sm:$0xff]
        %v1051 = vld [vmem:[%s4 + $0x18] sm:$0x1]
        %s1052 = smul.u32 %s1047, 24
        %s1053 = scalar_lea.vmem [#allocation2], %s1052
        %v1054 = vld [vmem:[%s1053] sm:$0xff]
        %v1055 = vld [vmem:[%s1053 + $0x8] sm:$0xff]
        %v1056 = vld [vmem:[%s1053 + $0x10] sm:$0xf]
        %v1057 = vld [vmem:[%s1053 + $0x18] sm:$0xff]
        %v1058 = vld [vmem:[%s1053 + $0x20] sm:$0xff]
        %v1059 = vld [vmem:[%s1053 + $0x28] sm:$0xf]
        %v1060 = vld [vmem:[%s1053 + $0x30] sm:$0xff]
        %v1061 = vld [vmem:[%s1053 + $0x38] sm:$0xff]
        %v1062 = vld [vmem:[%s1053 + $0x40] sm:$0xf]
        %v1063 = vld [vmem:[%s1053 + $0x48] sm:$0xff]
        %v1064 = vld [vmem:[%s1053 + $0x50] sm:$0xff]
        %v1065 = vld [vmem:[%s1053 + $0x58] sm:$0xf]
        %v1066 = vld [vmem:[%s1053 + $0x60] sm:$0xff]
        %v1067 = vld [vmem:[%s1053 + $0x68] sm:$0xff]
        %v1068 = vld [vmem:[%s1053 + $0x70] sm:$0xf]
        %v1069 = vld [vmem:[%s1053 + $0x78] sm:$0xff]
        %v1070 = vld [vmem:[%s1053 + $0x80] sm:$0xff]
        %v1071 = vld [vmem:[%s1053 + $0x88] sm:$0xf]
        %v1072 = vld [vmem:[%s1053 + $0x90] sm:$0xff]
        %v1073 = vld [vmem:[%s1053 + $0x98] sm:$0xff]
        %v1074 = vld [vmem:[%s1053 + $0xa0] sm:$0xf]
        %v1075 = vld [vmem:[%s1053 + $0xa8] sm:$0xff]
        %v1076 = vld [vmem:[%s1053 + $0xb0] sm:$0xff]
        %v1077 = vld [vmem:[%s1053 + $0xb8] sm:$0xf]
        %v1078 = vlaneseq
        %v1079 = vshrl.u32 %v1078, 7
        %v1080 = vsub.s32 0, %v1079
        %v1081 = vrot.slane %v1048, %v1080
        %v1082 = vmul.f32 %v1054, %v1081
        %v1083 = vmul.f32 %v1055, %v1081
        %v1084 = vmul.f32 %v1057, %v1081
        %v1085 = vmul.f32 %v1058, %v1081
        %v1086 = vmul.f32 %v1060, %v1081
        %v1087 = vmul.f32 %v1061, %v1081
        %v1088 = vmul.f32 %v1063, %v1081
        %v1089 = vmul.f32 %v1064, %v1081
        %v1090 = vmul.f32 %v1066, %v1081
        %v1091 = vmul.f32 %v1067, %v1081
        %v1092 = vmul.f32 %v1069, %v1081
        %v1093 = vmul.f32 %v1070, %v1081
        %v1094 = vmul.f32 %v1072, %v1081
        %v1095 = vmul.f32 %v1073, %v1081
        %v1096 = vmul.f32 %v1075, %v1081
        %v1097 = vmul.f32 %v1076, %v1081
        %v1098 = vadd.f32 %v1082, 0.0
        %v1099 = vadd.f32 %v1083, 0.0
        %v1100 = vadd.f32 %v1084, 0.0
        %v1101 = vadd.f32 %v1085, 0.0
        %v1102 = vadd.f32 %v1086, 0.0
        %v1103 = vadd.f32 %v1087, 0.0
        %v1104 = vadd.f32 %v1088, 0.0
        %v1105 = vadd.f32 %v1089, 0.0
        %v1106 = vadd.f32 %v1090, 0.0
        %v1107 = vadd.f32 %v1091, 0.0
        %v1108 = vadd.f32 %v1092, 0.0
        %v1109 = vadd.f32 %v1093, 0.0
        %v1110 = vadd.f32 %v1094, 0.0
        %v1111 = vadd.f32 %v1095, 0.0
        %v1112 = vadd.f32 %v1096, 0.0
        %v1113 = vadd.f32 %v1097, 0.0
        %v1114 = vlaneseq
        %v1115 = vshrl.u32 %v1114, 7
        %v1116 = vsub.s32 1, %v1115
        %v1117 = vrot.slane %v1048, %v1116
        %v1118 = vmul.f32 %v1054, %v1117
        %v1119 = vmul.f32 %v1055, %v1117
        %v1120 = vmul.f32 %v1056, %v1117
        %v1121 = vmul.f32 %v1057, %v1117
        %v1122 = vmul.f32 %v1058, %v1117
        %v1123 = vmul.f32 %v1059, %v1117
        %v1124 = vmul.f32 %v1060, %v1117
        %v1125 = vmul.f32 %v1061, %v1117
        %v1126 = vmul.f32 %v1062, %v1117
        %v1127 = vmul.f32 %v1063, %v1117
        %v1128 = vmul.f32 %v1064, %v1117
        %v1129 = vmul.f32 %v1065, %v1117
        %v1130 = vmul.f32 %v1066, %v1117
        %v1131 = vmul.f32 %v1067, %v1117
        %v1132 = vmul.f32 %v1068, %v1117
        %v1133 = vmul.f32 %v1069, %v1117
        %v1134 = vmul.f32 %v1070, %v1117
        %v1135 = vmul.f32 %v1071, %v1117
        %v1136 = vmul.f32 %v1072, %v1117
        %v1137 = vmul.f32 %v1073, %v1117
        %v1138 = vmul.f32 %v1074, %v1117
        %v1139 = vmul.f32 %v1075, %v1117
        %v1140 = vmul.f32 %v1076, %v1117
        %v1141 = vmul.f32 %v1077, %v1117
        %vm1166 = vcmask 1046528
        %v1167 = vrot.slane %v1118, 1
        %v1168 = vrot.slane %v1119, 1
        %v1169 = vsel %vm1166, %v1167, %v1168
        %v1170 = vrot.slane %v1120, 1
        %v1171 = vsel %vm1166, %v1168, %v1170
        %v1172 = vrot.slane %v1121, 1
        %v1173 = vrot.slane %v1122, 1
        %v1174 = vsel %vm1166, %v1172, %v1173
        %v1175 = vrot.slane %v1123, 1
        %v1176 = vsel %vm1166, %v1173, %v1175
        %v1177 = vrot.slane %v1124, 1
        %v1178 = vrot.slane %v1125, 1
        %v1179 = vsel %vm1166, %v1177, %v1178
        %v1180 = vrot.slane %v1126, 1
        %v1181 = vsel %vm1166, %v1178, %v1180
        %v1182 = vrot.slane %v1127, 1
        %v1183 = vrot.slane %v1128, 1
        %v1184 = vsel %vm1166, %v1182, %v1183
        %v1185 = vrot.slane %v1129, 1
        %v1186 = vsel %vm1166, %v1183, %v1185
        %v1187 = vrot.slane %v1130, 1
        %v1188 = vrot.slane %v1131, 1
        %v1189 = vsel %vm1166, %v1187, %v1188
        %v1190 = vrot.slane %v1132, 1
        %v1191 = vsel %vm1166, %v1188, %v1190
        %v1192 = vrot.slane %v1133, 1
        %v1193 = vrot.slane %v1134, 1
        %v1194 = vsel %vm1166, %v1192, %v1193
        %v1195 = vrot.slane %v1135, 1
        %v1196 = vsel %vm1166, %v1193, %v1195
        %v1197 = vrot.slane %v1136, 1
        %v1198 = vrot.slane %v1137, 1
        %v1199 = vsel %vm1166, %v1197, %v1198
        %v1200 = vrot.slane %v1138, 1
        %v1201 = vsel %vm1166, %v1198, %v1200
        %v1202 = vrot.slane %v1139, 1
        %v1203 = vrot.slane %v1140, 1
        %v1204 = vsel %vm1166, %v1202, %v1203
        %v1205 = vrot.slane %v1141, 1
        %v1206 = vsel %vm1166, %v1203, %v1205
        %v1223 = vadd.f32 %v1098, %v1169
        %v1224 = vadd.f32 %v1099, %v1171
        %v1225 = vadd.f32 %v1100, %v1174
        %v1226 = vadd.f32 %v1101, %v1176
        %v1227 = vadd.f32 %v1102, %v1179
        %v1228 = vadd.f32 %v1103, %v1181
        %v1229 = vadd.f32 %v1104, %v1184
        %v1230 = vadd.f32 %v1105, %v1186
        %v1231 = vadd.f32 %v1106, %v1189
        %v1232 = vadd.f32 %v1107, %v1191
        %v1233 = vadd.f32 %v1108, %v1194
        %v1234 = vadd.f32 %v1109, %v1196
        %v1235 = vadd.f32 %v1110, %v1199
        %v1236 = vadd.f32 %v1111, %v1201
        %v1237 = vadd.f32 %v1112, %v1204
        %v1238 = vadd.f32 %v1113, %v1206
        %v1239 = vlaneseq
        %v1240 = vshrl.u32 %v1239, 7
        %v1241 = vsub.s32 2, %v1240
        %v1242 = vrot.slane %v1048, %v1241
        %v1243 = vmul.f32 %v1054, %v1242
        %v1244 = vmul.f32 %v1055, %v1242
        %v1245 = vmul.f32 %v1056, %v1242
        %v1246 = vmul.f32 %v1057, %v1242
        %v1247 = vmul.f32 %v1058, %v1242
        %v1248 = vmul.f32 %v1059, %v1242
        %v1249 = vmul.f32 %v1060, %v1242
        %v1250 = vmul.f32 %v1061, %v1242
        %v1251 = vmul.f32 %v1062, %v1242
        %v1252 = vmul.f32 %v1063, %v1242
        %v1253 = vmul.f32 %v1064, %v1242
        %v1254 = vmul.f32 %v1065, %v1242
        %v1255 = vmul.f32 %v1066, %v1242
        %v1256 = vmul.f32 %v1067, %v1242
        %v1257 = vmul.f32 %v1068, %v1242
        %v1258 = vmul.f32 %v1069, %v1242
        %v1259 = vmul.f32 %v1070, %v1242
        %v1260 = vmul.f32 %v1071, %v1242
        %v1261 = vmul.f32 %v1072, %v1242
        %v1262 = vmul.f32 %v1073, %v1242
        %v1263 = vmul.f32 %v1074, %v1242
        %v1264 = vmul.f32 %v1075, %v1242
        %v1265 = vmul.f32 %v1076, %v1242
        %v1266 = vmul.f32 %v1077, %v1242
        %vm1291 = vcmask 1045504
        %v1292 = vrot.slane %v1243, 2
        %v1293 = vrot.slane %v1244, 2
        %v1294 = vsel %vm1291, %v1292, %v1293
        %v1295 = vrot.slane %v1245, 2
        %v1296 = vsel %vm1291, %v1293, %v1295
        %v1297 = vrot.slane %v1246, 2
        %v1298 = vrot.slane %v1247, 2
        %v1299 = vsel %vm1291, %v1297, %v1298
        %v1300 = vrot.slane %v1248, 2
        %v1301 = vsel %vm1291, %v1298, %v1300
        %v1302 = vrot.slane %v1249, 2
        %v1303 = vrot.slane %v1250, 2
        %v1304 = vsel %vm1291, %v1302, %v1303
        %v1305 = vrot.slane %v1251, 2
        %v1306 = vsel %vm1291, %v1303, %v1305
        %v1307 = vrot.slane %v1252, 2
        %v1308 = vrot.slane %v1253, 2
        %v1309 = vsel %vm1291, %v1307, %v1308
        %v1310 = vrot.slane %v1254, 2
        %v1311 = vsel %vm1291, %v1308, %v1310
        %v1312 = vrot.slane %v1255, 2
        %v1313 = vrot.slane %v1256, 2
        %v1314 = vsel %vm1291, %v1312, %v1313
        %v1315 = vrot.slane %v1257, 2
        %v1316 = vsel %vm1291, %v1313, %v1315
        %v1317 = vrot.slane %v1258, 2
        %v1318 = vrot.slane %v1259, 2
        %v1319 = vsel %vm1291, %v1317, %v1318
        %v1320 = vrot.slane %v1260, 2
        %v1321 = vsel %vm1291, %v1318, %v1320
        %v1322 = vrot.slane %v1261, 2
        %v1323 = vrot.slane %v1262, 2
        %v1324 = vsel %vm1291, %v1322, %v1323
        %v1325 = vrot.slane %v1263, 2
        %v1326 = vsel %vm1291, %v1323, %v1325
        %v1327 = vrot.slane %v1264, 2
        %v1328 = vrot.slane %v1265, 2
        %v1329 = vsel %vm1291, %v1327, %v1328
        %v1330 = vrot.slane %v1266, 2
        %v1331 = vsel %vm1291, %v1328, %v1330
        %v1348 = vadd.f32 %v1223, %v1294
        %v1349 = vadd.f32 %v1224, %v1296
        %v1350 = vadd.f32 %v1225, %v1299
        %v1351 = vadd.f32 %v1226, %v1301
        %v1352 = vadd.f32 %v1227, %v1304
        %v1353 = vadd.f32 %v1228, %v1306
        %v1354 = vadd.f32 %v1229, %v1309
        %v1355 = vadd.f32 %v1230, %v1311
        %v1356 = vadd.f32 %v1231, %v1314
        %v1357 = vadd.f32 %v1232, %v1316
        %v1358 = vadd.f32 %v1233, %v1319
        %v1359 = vadd.f32 %v1234, %v1321
        %v1360 = vadd.f32 %v1235, %v1324
        %v1361 = vadd.f32 %v1236, %v1326
        %v1362 = vadd.f32 %v1237, %v1329
        %v1363 = vadd.f32 %v1238, %v1331
        %v1364 = vlaneseq
        %v1365 = vshrl.u32 %v1364, 7
        %v1366 = vsub.s32 3, %v1365
        %v1367 = vrot.slane %v1048, %v1366
        %v1368 = vmul.f32 %v1054, %v1367
        %v1369 = vmul.f32 %v1055, %v1367
        %v1370 = vmul.f32 %v1056, %v1367
        %v1371 = vmul.f32 %v1057, %v1367
        %v1372 = vmul.f32 %v1058, %v1367
        %v1373 = vmul.f32 %v1059, %v1367
        %v1374 = vmul.f32 %v1060, %v1367
        %v1375 = vmul.f32 %v1061, %v1367
        %v1376 = vmul.f32 %v1062, %v1367
        %v1377 = vmul.f32 %v1063, %v1367
        %v1378 = vmul.f32 %v1064, %v1367
        %v1379 = vmul.f32 %v1065, %v1367
        %v1380 = vmul.f32 %v1066, %v1367
        %v1381 = vmul.f32 %v1067, %v1367
        %v1382 = vmul.f32 %v1068, %v1367
        %v1383 = vmul.f32 %v1069, %v1367
        %v1384 = vmul.f32 %v1070, %v1367
        %v1385 = vmul.f32 %v1071, %v1367
        %v1386 = vmul.f32 %v1072, %v1367
        %v1387 = vmul.f32 %v1073, %v1367
        %v1388 = vmul.f32 %v1074, %v1367
        %v1389 = vmul.f32 %v1075, %v1367
        %v1390 = vmul.f32 %v1076, %v1367
        %v1391 = vmul.f32 %v1077, %v1367
        %vm1416 = vcmask 1044480
        %v1417 = vrot.slane %v1368, 3
        %v1418 = vrot.slane %v1369, 3
        %v1419 = vsel %vm1416, %v1417, %v1418
        %v1420 = vrot.slane %v1370, 3
        %v1421 = vsel %vm1416, %v1418, %v1420
        %v1422 = vrot.slane %v1371, 3
        %v1423 = vrot.slane %v1372, 3
        %v1424 = vsel %vm1416, %v1422, %v1423
        %v1425 = vrot.slane %v1373, 3
        %v1426 = vsel %vm1416, %v1423, %v1425
        %v1427 = vrot.slane %v1374, 3
        %v1428 = vrot.slane %v1375, 3
        %v1429 = vsel %vm1416, %v1427, %v1428
        %v1430 = vrot.slane %v1376, 3
        %v1431 = vsel %vm1416, %v1428, %v1430
        %v1432 = vrot.slane %v1377, 3
        %v1433 = vrot.slane %v1378, 3
        %v1434 = vsel %vm1416, %v1432, %v1433
        %v1435 = vrot.slane %v1379, 3
        %v1436 = vsel %vm1416, %v1433, %v1435
        %v1437 = vrot.slane %v1380, 3
        %v1438 = vrot.slane %v1381, 3
        %v1439 = vsel %vm1416, %v1437, %v1438
        %v1440 = vrot.slane %v1382, 3
        %v1441 = vsel %vm1416, %v1438, %v1440
        %v1442 = vrot.slane %v1383, 3
        %v1443 = vrot.slane %v1384, 3
        %v1444 = vsel %vm1416, %v1442, %v1443
        %v1445 = vrot.slane %v1385, 3
        %v1446 = vsel %vm1416, %v1443, %v1445
        %v1447 = vrot.slane %v1386, 3
        %v1448 = vrot.slane %v1387, 3
        %v1449 = vsel %vm1416, %v1447, %v1448
        %v1450 = vrot.slane %v1388, 3
        %v1451 = vsel %vm1416, %v1448, %v1450
        %v1452 = vrot.slane %v1389, 3
        %v1453 = vrot.slane %v1390, 3
        %v1454 = vsel %vm1416, %v1452, %v1453
        %v1455 = vrot.slane %v1391, 3
        %v1456 = vsel %vm1416, %v1453, %v1455
        %v1473 = vadd.f32 %v1348, %v1419
        %v1474 = vadd.f32 %v1349, %v1421
        %v1475 = vadd.f32 %v1350, %v1424
        %v1476 = vadd.f32 %v1351, %v1426
        %v1477 = vadd.f32 %v1352, %v1429
        %v1478 = vadd.f32 %v1353, %v1431
        %v1479 = vadd.f32 %v1354, %v1434
        %v1480 = vadd.f32 %v1355, %v1436
        %v1481 = vadd.f32 %v1356, %v1439
        %v1482 = vadd.f32 %v1357, %v1441
        %v1483 = vadd.f32 %v1358, %v1444
        %v1484 = vadd.f32 %v1359, %v1446
        %v1485 = vadd.f32 %v1360, %v1449
        %v1486 = vadd.f32 %v1361, %v1451
        %v1487 = vadd.f32 %v1362, %v1454
        %v1488 = vadd.f32 %v1363, %v1456
        %v1489 = vlaneseq
        %v1490 = vshrl.u32 %v1489, 7
        %v1491 = vsub.s32 4, %v1490
        %v1492 = vrot.slane %v1048, %v1491
        %v1493 = vmul.f32 %v1054, %v1492
        %v1494 = vmul.f32 %v1055, %v1492
        %v1495 = vmul.f32 %v1056, %v1492
        %v1496 = vmul.f32 %v1057, %v1492
        %v1497 = vmul.f32 %v1058, %v1492
        %v1498 = vmul.f32 %v1059, %v1492
        %v1499 = vmul.f32 %v1060, %v1492
        %v1500 = vmul.f32 %v1061, %v1492
        %v1501 = vmul.f32 %v1062, %v1492
        %v1502 = vmul.f32 %v1063, %v1492
        %v1503 = vmul.f32 %v1064, %v1492
        %v1504 = vmul.f32 %v1065, %v1492
        %v1505 = vmul.f32 %v1066, %v1492
        %v1506 = vmul.f32 %v1067, %v1492
        %v1507 = vmul.f32 %v1068, %v1492
        %v1508 = vmul.f32 %v1069, %v1492
        %v1509 = vmul.f32 %v1070, %v1492
        %v1510 = vmul.f32 %v1071, %v1492
        %v1511 = vmul.f32 %v1072, %v1492
        %v1512 = vmul.f32 %v1073, %v1492
        %v1513 = vmul.f32 %v1074, %v1492
        %v1514 = vmul.f32 %v1075, %v1492
        %v1515 = vmul.f32 %v1076, %v1492
        %v1516 = vmul.f32 %v1077, %v1492
        %vm1541 = vcmask 1043456
        %v1542 = vrot.slane %v1493, 4
        %v1543 = vrot.slane %v1494, 4
        %v1544 = vsel %vm1541, %v1542, %v1543
        %v1545 = vrot.slane %v1495, 4
        %v1546 = vsel %vm1541, %v1543, %v1545
        %v1547 = vrot.slane %v1496, 4
        %v1548 = vrot.slane %v1497, 4
        %v1549 = vsel %vm1541, %v1547, %v1548
        %v1550 = vrot.slane %v1498, 4
        %v1551 = vsel %vm1541, %v1548, %v1550
        %v1552 = vrot.slane %v1499, 4
        %v1553 = vrot.slane %v1500, 4
        %v1554 = vsel %vm1541, %v1552, %v1553
        %v1555 = vrot.slane %v1501, 4
        %v1556 = vsel %vm1541, %v1553, %v1555
        %v1557 = vrot.slane %v1502, 4
        %v1558 = vrot.slane %v1503, 4
        %v1559 = vsel %vm1541, %v1557, %v1558
        %v1560 = vrot.slane %v1504, 4
        %v1561 = vsel %vm1541, %v1558, %v1560
        %v1562 = vrot.slane %v1505, 4
        %v1563 = vrot.slane %v1506, 4
        %v1564 = vsel %vm1541, %v1562, %v1563
        %v1565 = vrot.slane %v1507, 4
        %v1566 = vsel %vm1541, %v1563, %v1565
        %v1567 = vrot.slane %v1508, 4
        %v1568 = vrot.slane %v1509, 4
        %v1569 = vsel %vm1541, %v1567, %v1568
        %v1570 = vrot.slane %v1510, 4
        %v1571 = vsel %vm1541, %v1568, %v1570
        %v1572 = vrot.slane %v1511, 4
        %v1573 = vrot.slane %v1512, 4
        %v1574 = vsel %vm1541, %v1572, %v1573
        %v1575 = vrot.slane %v1513, 4
        %v1576 = vsel %vm1541, %v1573, %v1575
        %v1577 = vrot.slane %v1514, 4
        %v1578 = vrot.slane %v1515, 4
        %v1579 = vsel %vm1541, %v1577, %v1578
        %v1580 = vrot.slane %v1516, 4
        %v1581 = vsel %vm1541, %v1578, %v1580
        %v1598 = vadd.f32 %v1473, %v1544
        %v1599 = vadd.f32 %v1474, %v1546
        %v1600 = vadd.f32 %v1475, %v1549
        %v1601 = vadd.f32 %v1476, %v1551
        %v1602 = vadd.f32 %v1477, %v1554
        %v1603 = vadd.f32 %v1478, %v1556
        %v1604 = vadd.f32 %v1479, %v1559
        %v1605 = vadd.f32 %v1480, %v1561
        %v1606 = vadd.f32 %v1481, %v1564
        %v1607 = vadd.f32 %v1482, %v1566
        %v1608 = vadd.f32 %v1483, %v1569
        %v1609 = vadd.f32 %v1484, %v1571
        %v1610 = vadd.f32 %v1485, %v1574
        %v1611 = vadd.f32 %v1486, %v1576
        %v1612 = vadd.f32 %v1487, %v1579
        %v1613 = vadd.f32 %v1488, %v1581
        %s1614 = sadd.s32 %s1047, 1
        %s1615 = smul.u32 %s1614, 24
        %s1616 = scalar_lea.vmem [#allocation2], %s1615
        %v1617 = vld [vmem:[%s1616] sm:$0xff]
        %v1618 = vld [vmem:[%s1616 + $0x8] sm:$0xff]
        %v1619 = vld [vmem:[%s1616 + $0x10] sm:$0xf]
        %v1620 = vld [vmem:[%s1616 + $0x18] sm:$0xff]
        %v1621 = vld [vmem:[%s1616 + $0x20] sm:$0xff]
        %v1622 = vld [vmem:[%s1616 + $0x28] sm:$0xf]
        %v1623 = vld [vmem:[%s1616 + $0x30] sm:$0xff]
        %v1624 = vld [vmem:[%s1616 + $0x38] sm:$0xff]
        %v1625 = vld [vmem:[%s1616 + $0x40] sm:$0xf]
        %v1626 = vld [vmem:[%s1616 + $0x48] sm:$0xff]
        %v1627 = vld [vmem:[%s1616 + $0x50] sm:$0xff]
        %v1628 = vld [vmem:[%s1616 + $0x58] sm:$0xf]
        %v1629 = vld [vmem:[%s1616 + $0x60] sm:$0xff]
        %v1630 = vld [vmem:[%s1616 + $0x68] sm:$0xff]
        %v1631 = vld [vmem:[%s1616 + $0x70] sm:$0xf]
        %v1632 = vld [vmem:[%s1616 + $0x78] sm:$0xff]
        %v1633 = vld [vmem:[%s1616 + $0x80] sm:$0xff]
        %v1634 = vld [vmem:[%s1616 + $0x88] sm:$0xf]
        %v1635 = vld [vmem:[%s1616 + $0x90] sm:$0xff]
        %v1636 = vld [vmem:[%s1616 + $0x98] sm:$0xff]
        %v1637 = vld [vmem:[%s1616 + $0xa0] sm:$0xf]
        %v1638 = vld [vmem:[%s1616 + $0xa8] sm:$0xff]
        %v1639 = vld [vmem:[%s1616 + $0xb0] sm:$0xff]
        %v1640 = vld [vmem:[%s1616 + $0xb8] sm:$0xf]
        %v1641 = vlaneseq
        %v1642 = vshrl.u32 %v1641, 7
        %v1643 = vsub.s32 5, %v1642
        %v1644 = vrot.slane %v1048, %v1643
        %v1645 = vmul.f32 %v1617, %v1644
        %v1646 = vmul.f32 %v1618, %v1644
        %v1647 = vmul.f32 %v1620, %v1644
        %v1648 = vmul.f32 %v1621, %v1644
        %v1649 = vmul.f32 %v1623, %v1644
        %v1650 = vmul.f32 %v1624, %v1644
        %v1651 = vmul.f32 %v1626, %v1644
        %v1652 = vmul.f32 %v1627, %v1644
        %v1653 = vmul.f32 %v1629, %v1644
        %v1654 = vmul.f32 %v1630, %v1644
        %v1655 = vmul.f32 %v1632, %v1644
        %v1656 = vmul.f32 %v1633, %v1644
        %v1657 = vmul.f32 %v1635, %v1644
        %v1658 = vmul.f32 %v1636, %v1644
        %v1659 = vmul.f32 %v1638, %v1644
        %v1660 = vmul.f32 %v1639, %v1644
        %v1661 = vadd.f32 %v1598, %v1645
        %v1662 = vadd.f32 %v1599, %v1646
        %v1663 = vadd.f32 %v1600, %v1647
        %v1664 = vadd.f32 %v1601, %v1648
        %v1665 = vadd.f32 %v1602, %v1649
        %v1666 = vadd.f32 %v1603, %v1650
        %v1667 = vadd.f32 %v1604, %v1651
        %v1668 = vadd.f32 %v1605, %v1652
        %v1669 = vadd.f32 %v1606, %v1653
        %v1670 = vadd.f32 %v1607, %v1654
        %v1671 = vadd.f32 %v1608, %v1655
        %v1672 = vadd.f32 %v1609, %v1656
        %v1673 = vadd.f32 %v1610, %v1657
        %v1674 = vadd.f32 %v1611, %v1658
        %v1675 = vadd.f32 %v1612, %v1659
        %v1676 = vadd.f32 %v1613, %v1660
        %v1677 = vlaneseq
        %v1678 = vshrl.u32 %v1677, 7
        %v1679 = vsub.s32 6, %v1678
        %v1680 = vrot.slane %v1048, %v1679
        %v1681 = vmul.f32 %v1617, %v1680
        %v1682 = vmul.f32 %v1618, %v1680
        %v1683 = vmul.f32 %v1619, %v1680
        %v1684 = vmul.f32 %v1620, %v1680
        %v1685 = vmul.f32 %v1621, %v1680
        %v1686 = vmul.f32 %v1622, %v1680
        %v1687 = vmul.f32 %v1623, %v1680
        %v1688 = vmul.f32 %v1624, %v1680
        %v1689 = vmul.f32 %v1625, %v1680
        %v1690 = vmul.f32 %v1626, %v1680
        %v1691 = vmul.f32 %v1627, %v1680
        %v1692 = vmul.f32 %v1628, %v1680
        %v1693 = vmul.f32 %v1629, %v1680
        %v1694 = vmul.f32 %v1630, %v1680
        %v1695 = vmul.f32 %v1631, %v1680
        %v1696 = vmul.f32 %v1632, %v1680
        %v1697 = vmul.f32 %v1633, %v1680
        %v1698 = vmul.f32 %v1634, %v1680
        %v1699 = vmul.f32 %v1635, %v1680
        %v1700 = vmul.f32 %v1636, %v1680
        %v1701 = vmul.f32 %v1637, %v1680
        %v1702 = vmul.f32 %v1638, %v1680
        %v1703 = vmul.f32 %v1639, %v1680
        %v1704 = vmul.f32 %v1640, %v1680
        %v1729 = vrot.slane %v1681, 1
        %v1730 = vrot.slane %v1682, 1
        %v1731 = vsel %vm1166, %v1729, %v1730
        %v1732 = vrot.slane %v1683, 1
        %v1733 = vsel %vm1166, %v1730, %v1732
        %v1734 = vrot.slane %v1684, 1
        %v1735 = vrot.slane %v1685, 1
        %v1736 = vsel %vm1166, %v1734, %v1735
        %v1737 = vrot.slane %v1686, 1
        %v1738 = vsel %vm1166, %v1735, %v1737
        %v1739 = vrot.slane %v1687, 1
        %v1740 = vrot.slane %v1688, 1
        %v1741 = vsel %vm1166, %v1739, %v1740
        %v1742 = vrot.slane %v1689, 1
        %v1743 = vsel %vm1166, %v1740, %v1742
        %v1744 = vrot.slane %v1690, 1
        %v1745 = vrot.slane %v1691, 1
        %v1746 = vsel %vm1166, %v1744, %v1745
        %v1747 = vrot.slane %v1692, 1
        %v1748 = vsel %vm1166, %v1745, %v1747
        %v1749 = vrot.slane %v1693, 1
        %v1750 = vrot.slane %v1694, 1
        %v1751 = vsel %vm1166, %v1749, %v1750
        %v1752 = vrot.slane %v1695, 1
        %v1753 = vsel %vm1166, %v1750, %v1752
        %v1754 = vrot.slane %v1696, 1
        %v1755 = vrot.slane %v1697, 1
        %v1756 = vsel %vm1166, %v1754, %v1755
        %v1757 = vrot.slane %v1698, 1
        %v1758 = vsel %vm1166, %v1755, %v1757
        %v1759 = vrot.slane %v1699, 1
        %v1760 = vrot.slane %v1700, 1
        %v1761 = vsel %vm1166, %v1759, %v1760
        %v1762 = vrot.slane %v1701, 1
        %v1763 = vsel %vm1166, %v1760, %v1762
        %v1764 = vrot.slane %v1702, 1
        %v1765 = vrot.slane %v1703, 1
        %v1766 = vsel %vm1166, %v1764, %v1765
        %v1767 = vrot.slane %v1704, 1
        %v1768 = vsel %vm1166, %v1765, %v1767
        %v1785 = vadd.f32 %v1661, %v1731
        %v1786 = vadd.f32 %v1662, %v1733
        %v1787 = vadd.f32 %v1663, %v1736
        %v1788 = vadd.f32 %v1664, %v1738
        %v1789 = vadd.f32 %v1665, %v1741
        %v1790 = vadd.f32 %v1666, %v1743
        %v1791 = vadd.f32 %v1667, %v1746
        %v1792 = vadd.f32 %v1668, %v1748
        %v1793 = vadd.f32 %v1669, %v1751
        %v1794 = vadd.f32 %v1670, %v1753
        %v1795 = vadd.f32 %v1671, %v1756
        %v1796 = vadd.f32 %v1672, %v1758
        %v1797 = vadd.f32 %v1673, %v1761
        %v1798 = vadd.f32 %v1674, %v1763
        %v1799 = vadd.f32 %v1675, %v1766
        %v1800 = vadd.f32 %v1676, %v1768
        %v1801 = vlaneseq
        %v1802 = vshrl.u32 %v1801, 7
        %v1803 = vsub.s32 7, %v1802
        %v1804 = vrot.slane %v1048, %v1803
        %v1805 = vmul.f32 %v1617, %v1804
        %v1806 = vmul.f32 %v1618, %v1804
        %v1807 = vmul.f32 %v1619, %v1804
        %v1808 = vmul.f32 %v1620, %v1804
        %v1809 = vmul.f32 %v1621, %v1804
        %v1810 = vmul.f32 %v1622, %v1804
        %v1811 = vmul.f32 %v1623, %v1804
        %v1812 = vmul.f32 %v1624, %v1804
        %v1813 = vmul.f32 %v1625, %v1804
        %v1814 = vmul.f32 %v1626, %v1804
        %v1815 = vmul.f32 %v1627, %v1804
        %v1816 = vmul.f32 %v1628, %v1804
        %v1817 = vmul.f32 %v1629, %v1804
        %v1818 = vmul.f32 %v1630, %v1804
        %v1819 = vmul.f32 %v1631, %v1804
        %v1820 = vmul.f32 %v1632, %v1804
        %v1821 = vmul.f32 %v1633, %v1804
        %v1822 = vmul.f32 %v1634, %v1804
        %v1823 = vmul.f32 %v1635, %v1804
        %v1824 = vmul.f32 %v1636, %v1804
        %v1825 = vmul.f32 %v1637, %v1804
        %v1826 = vmul.f32 %v1638, %v1804
        %v1827 = vmul.f32 %v1639, %v1804
        %v1828 = vmul.f32 %v1640, %v1804
        %v1853 = vrot.slane %v1805, 2
        %v1854 = vrot.slane %v1806, 2
        %v1855 = vsel %vm1291, %v1853, %v1854
        %v1856 = vrot.slane %v1807, 2
        %v1857 = vsel %vm1291, %v1854, %v1856
        %v1858 = vrot.slane %v1808, 2
        %v1859 = vrot.slane %v1809, 2
        %v1860 = vsel %vm1291, %v1858, %v1859
        %v1861 = vrot.slane %v1810, 2
        %v1862 = vsel %vm1291, %v1859, %v1861
        %v1863 = vrot.slane %v1811, 2
        %v1864 = vrot.slane %v1812, 2
        %v1865 = vsel %vm1291, %v1863, %v1864
        %v1866 = vrot.slane %v1813, 2
        %v1867 = vsel %vm1291, %v1864, %v1866
        %v1868 = vrot.slane %v1814, 2
        %v1869 = vrot.slane %v1815, 2
        %v1870 = vsel %vm1291, %v1868, %v1869
        %v1871 = vrot.slane %v1816, 2
        %v1872 = vsel %vm1291, %v1869, %v1871
        %v1873 = vrot.slane %v1817, 2
        %v1874 = vrot.slane %v1818, 2
        %v1875 = vsel %vm1291, %v1873, %v1874
        %v1876 = vrot.slane %v1819, 2
        %v1877 = vsel %vm1291, %v1874, %v1876
        %v1878 = vrot.slane %v1820, 2
        %v1879 = vrot.slane %v1821, 2
        %v1880 = vsel %vm1291, %v1878, %v1879
        %v1881 = vrot.slane %v1822, 2
        %v1882 = vsel %vm1291, %v1879, %v1881
        %v1883 = vrot.slane %v1823, 2
        %v1884 = vrot.slane %v1824, 2
        %v1885 = vsel %vm1291, %v1883, %v1884
        %v1886 = vrot.slane %v1825, 2
        %v1887 = vsel %vm1291, %v1884, %v1886
        %v1888 = vrot.slane %v1826, 2
        %v1889 = vrot.slane %v1827, 2
        %v1890 = vsel %vm1291, %v1888, %v1889
        %v1891 = vrot.slane %v1828, 2
        %v1892 = vsel %vm1291, %v1889, %v1891
        %v1909 = vadd.f32 %v1785, %v1855
        %v1910 = vadd.f32 %v1786, %v1857
        %v1911 = vadd.f32 %v1787, %v1860
        %v1912 = vadd.f32 %v1788, %v1862
        %v1913 = vadd.f32 %v1789, %v1865
        %v1914 = vadd.f32 %v1790, %v1867
        %v1915 = vadd.f32 %v1791, %v1870
        %v1916 = vadd.f32 %v1792, %v1872
        %v1917 = vadd.f32 %v1793, %v1875
        %v1918 = vadd.f32 %v1794, %v1877
        %v1919 = vadd.f32 %v1795, %v1880
        %v1920 = vadd.f32 %v1796, %v1882
        %v1921 = vadd.f32 %v1797, %v1885
        %v1922 = vadd.f32 %v1798, %v1887
        %v1923 = vadd.f32 %v1799, %v1890
        %v1924 = vadd.f32 %v1800, %v1892
        %v1925 = vlaneseq
        %v1926 = vshrl.u32 %v1925, 7
        %v1927 = vsub.s32 0, %v1926
        %v1928 = vrot.slane %v1049, %v1927
        %v1929 = vmul.f32 %v1617, %v1928
        %v1930 = vmul.f32 %v1618, %v1928
        %v1931 = vmul.f32 %v1619, %v1928
        %v1932 = vmul.f32 %v1620, %v1928
        %v1933 = vmul.f32 %v1621, %v1928
        %v1934 = vmul.f32 %v1622, %v1928
        %v1935 = vmul.f32 %v1623, %v1928
        %v1936 = vmul.f32 %v1624, %v1928
        %v1937 = vmul.f32 %v1625, %v1928
        %v1938 = vmul.f32 %v1626, %v1928
        %v1939 = vmul.f32 %v1627, %v1928
        %v1940 = vmul.f32 %v1628, %v1928
        %v1941 = vmul.f32 %v1629, %v1928
        %v1942 = vmul.f32 %v1630, %v1928
        %v1943 = vmul.f32 %v1631, %v1928
        %v1944 = vmul.f32 %v1632, %v1928
        %v1945 = vmul.f32 %v1633, %v1928
        %v1946 = vmul.f32 %v1634, %v1928
        %v1947 = vmul.f32 %v1635, %v1928
        %v1948 = vmul.f32 %v1636, %v1928
        %v1949 = vmul.f32 %v1637, %v1928
        %v1950 = vmul.f32 %v1638, %v1928
        %v1951 = vmul.f32 %v1639, %v1928
        %v1952 = vmul.f32 %v1640, %v1928
        %v1977 = vrot.slane %v1929, 3
        %v1978 = vrot.slane %v1930, 3
        %v1979 = vsel %vm1416, %v1977, %v1978
        %v1980 = vrot.slane %v1931, 3
        %v1981 = vsel %vm1416, %v1978, %v1980
        %v1982 = vrot.slane %v1932, 3
        %v1983 = vrot.slane %v1933, 3
        %v1984 = vsel %vm1416, %v1982, %v1983
        %v1985 = vrot.slane %v1934, 3
        %v1986 = vsel %vm1416, %v1983, %v1985
        %v1987 = vrot.slane %v1935, 3
        %v1988 = vrot.slane %v1936, 3
        %v1989 = vsel %vm1416, %v1987, %v1988
        %v1990 = vrot.slane %v1937, 3
        %v1991 = vsel %vm1416, %v1988, %v1990
        %v1992 = vrot.slane %v1938, 3
        %v1993 = vrot.slane %v1939, 3
        %v1994 = vsel %vm1416, %v1992, %v1993
        %v1995 = vrot.slane %v1940, 3
        %v1996 = vsel %vm1416, %v1993, %v1995
        %v1997 = vrot.slane %v1941, 3
        %v1998 = vrot.slane %v1942, 3
        %v1999 = vsel %vm1416, %v1997, %v1998
        %v2000 = vrot.slane %v1943, 3
        %v2001 = vsel %vm1416, %v1998, %v2000
        %v2002 = vrot.slane %v1944, 3
        %v2003 = vrot.slane %v1945, 3
        %v2004 = vsel %vm1416, %v2002, %v2003
        %v2005 = vrot.slane %v1946, 3
        %v2006 = vsel %vm1416, %v2003, %v2005
        %v2007 = vrot.slane %v1947, 3
        %v2008 = vrot.slane %v1948, 3
        %v2009 = vsel %vm1416, %v2007, %v2008
        %v2010 = vrot.slane %v1949, 3
        %v2011 = vsel %vm1416, %v2008, %v2010
        %v2012 = vrot.slane %v1950, 3
        %v2013 = vrot.slane %v1951, 3
        %v2014 = vsel %vm1416, %v2012, %v2013
        %v2015 = vrot.slane %v1952, 3
        %v2016 = vsel %vm1416, %v2013, %v2015
        %v2033 = vadd.f32 %v1909, %v1979
        %v2034 = vadd.f32 %v1910, %v1981
        %v2035 = vadd.f32 %v1911, %v1984
        %v2036 = vadd.f32 %v1912, %v1986
        %v2037 = vadd.f32 %v1913, %v1989
        %v2038 = vadd.f32 %v1914, %v1991
        %v2039 = vadd.f32 %v1915, %v1994
        %v2040 = vadd.f32 %v1916, %v1996
        %v2041 = vadd.f32 %v1917, %v1999
        %v2042 = vadd.f32 %v1918, %v2001
        %v2043 = vadd.f32 %v1919, %v2004
        %v2044 = vadd.f32 %v1920, %v2006
        %v2045 = vadd.f32 %v1921, %v2009
        %v2046 = vadd.f32 %v1922, %v2011
        %v2047 = vadd.f32 %v1923, %v2014
        %v2048 = vadd.f32 %v1924, %v2016
        %v2049 = vlaneseq
        %v2050 = vshrl.u32 %v2049, 7
        %v2051 = vsub.s32 1, %v2050
        %v2052 = vrot.slane %v1049, %v2051
        %v2053 = vmul.f32 %v1617, %v2052
        %v2054 = vmul.f32 %v1618, %v2052
        %v2055 = vmul.f32 %v1619, %v2052
        %v2056 = vmul.f32 %v1620, %v2052
        %v2057 = vmul.f32 %v1621, %v2052
        %v2058 = vmul.f32 %v1622, %v2052
        %v2059 = vmul.f32 %v1623, %v2052
        %v2060 = vmul.f32 %v1624, %v2052
        %v2061 = vmul.f32 %v1625, %v2052
        %v2062 = vmul.f32 %v1626, %v2052
        %v2063 = vmul.f32 %v1627, %v2052
        %v2064 = vmul.f32 %v1628, %v2052
        %v2065 = vmul.f32 %v1629, %v2052
        %v2066 = vmul.f32 %v1630, %v2052
        %v2067 = vmul.f32 %v1631, %v2052
        %v2068 = vmul.f32 %v1632, %v2052
        %v2069 = vmul.f32 %v1633, %v2052
        %v2070 = vmul.f32 %v1634, %v2052
        %v2071 = vmul.f32 %v1635, %v2052
        %v2072 = vmul.f32 %v1636, %v2052
        %v2073 = vmul.f32 %v1637, %v2052
        %v2074 = vmul.f32 %v1638, %v2052
        %v2075 = vmul.f32 %v1639, %v2052
        %v2076 = vmul.f32 %v1640, %v2052
        %v2101 = vrot.slane %v2053, 4
        %v2102 = vrot.slane %v2054, 4
        %v2103 = vsel %vm1541, %v2101, %v2102
        %v2104 = vrot.slane %v2055, 4
        %v2105 = vsel %vm1541, %v2102, %v2104
        %v2106 = vrot.slane %v2056, 4
        %v2107 = vrot.slane %v2057, 4
        %v2108 = vsel %vm1541, %v2106, %v2107
        %v2109 = vrot.slane %v2058, 4
        %v2110 = vsel %vm1541, %v2107, %v2109
        %v2111 = vrot.slane %v2059, 4
        %v2112 = vrot.slane %v2060, 4
        %v2113 = vsel %vm1541, %v2111, %v2112
        %v2114 = vrot.slane %v2061, 4
        %v2115 = vsel %vm1541, %v2112, %v2114
        %v2116 = vrot.slane %v2062, 4
        %v2117 = vrot.slane %v2063, 4
        %v2118 = vsel %vm1541, %v2116, %v2117
        %v2119 = vrot.slane %v2064, 4
        %v2120 = vsel %vm1541, %v2117, %v2119
        %v2121 = vrot.slane %v2065, 4
        %v2122 = vrot.slane %v2066, 4
        %v2123 = vsel %vm1541, %v2121, %v2122
        %v2124 = vrot.slane %v2067, 4
        %v2125 = vsel %vm1541, %v2122, %v2124
        %v2126 = vrot.slane %v2068, 4
        %v2127 = vrot.slane %v2069, 4
        %v2128 = vsel %vm1541, %v2126, %v2127
        %v2129 = vrot.slane %v2070, 4
        %v2130 = vsel %vm1541, %v2127, %v2129
        %v2131 = vrot.slane %v2071, 4
        %v2132 = vrot.slane %v2072, 4
        %v2133 = vsel %vm1541, %v2131, %v2132
        %v2134 = vrot.slane %v2073, 4
        %v2135 = vsel %vm1541, %v2132, %v2134
        %v2136 = vrot.slane %v2074, 4
        %v2137 = vrot.slane %v2075, 4
        %v2138 = vsel %vm1541, %v2136, %v2137
        %v2139 = vrot.slane %v2076, 4
        %v2140 = vsel %vm1541, %v2137, %v2139
        %v2157 = vadd.f32 %v2033, %v2103
        %v2158 = vadd.f32 %v2034, %v2105
        %v2159 = vadd.f32 %v2035, %v2108
        %v2160 = vadd.f32 %v2036, %v2110
        %v2161 = vadd.f32 %v2037, %v2113
        %v2162 = vadd.f32 %v2038, %v2115
        %v2163 = vadd.f32 %v2039, %v2118
        %v2164 = vadd.f32 %v2040, %v2120
        %v2165 = vadd.f32 %v2041, %v2123
        %v2166 = vadd.f32 %v2042, %v2125
        %v2167 = vadd.f32 %v2043, %v2128
        %v2168 = vadd.f32 %v2044, %v2130
        %v2169 = vadd.f32 %v2045, %v2133
        %v2170 = vadd.f32 %v2046, %v2135
        %v2171 = vadd.f32 %v2047, %v2138
        %v2172 = vadd.f32 %v2048, %v2140
        %s2173 = sadd.s32 %s1047, 2
        %s2174 = smul.u32 %s2173, 24
        %s2175 = scalar_lea.vmem [#allocation2], %s2174
        %v2176 = vld [vmem:[%s2175] sm:$0xff]
        %v2177 = vld [vmem:[%s2175 + $0x8] sm:$0xff]
        %v2178 = vld [vmem:[%s2175 + $0x10] sm:$0xf]
        %v2179 = vld [vmem:[%s2175 + $0x18] sm:$0xff]
        %v2180 = vld [vmem:[%s2175 + $0x20] sm:$0xff]
        %v2181 = vld [vmem:[%s2175 + $0x28] sm:$0xf]
        %v2182 = vld [vmem:[%s2175 + $0x30] sm:$0xff]
        %v2183 = vld [vmem:[%s2175 + $0x38] sm:$0xff]
        %v2184 = vld [vmem:[%s2175 + $0x40] sm:$0xf]
        %v2185 = vld [vmem:[%s2175 + $0x48] sm:$0xff]
        %v2186 = vld [vmem:[%s2175 + $0x50] sm:$0xff]
        %v2187 = vld [vmem:[%s2175 + $0x58] sm:$0xf]
        %v2188 = vld [vmem:[%s2175 + $0x60] sm:$0xff]
        %v2189 = vld [vmem:[%s2175 + $0x68] sm:$0xff]
        %v2190 = vld [vmem:[%s2175 + $0x70] sm:$0xf]
        %v2191 = vld [vmem:[%s2175 + $0x78] sm:$0xff]
        %v2192 = vld [vmem:[%s2175 + $0x80] sm:$0xff]
        %v2193 = vld [vmem:[%s2175 + $0x88] sm:$0xf]
        %v2194 = vld [vmem:[%s2175 + $0x90] sm:$0xff]
        %v2195 = vld [vmem:[%s2175 + $0x98] sm:$0xff]
        %v2196 = vld [vmem:[%s2175 + $0xa0] sm:$0xf]
        %v2197 = vld [vmem:[%s2175 + $0xa8] sm:$0xff]
        %v2198 = vld [vmem:[%s2175 + $0xb0] sm:$0xff]
        %v2199 = vld [vmem:[%s2175 + $0xb8] sm:$0xf]
        %v2200 = vlaneseq
        %v2201 = vshrl.u32 %v2200, 7
        %v2202 = vsub.s32 2, %v2201
        %v2203 = vrot.slane %v1049, %v2202
        %v2204 = vmul.f32 %v2176, %v2203
        %v2205 = vmul.f32 %v2177, %v2203
        %v2206 = vmul.f32 %v2179, %v2203
        %v2207 = vmul.f32 %v2180, %v2203
        %v2208 = vmul.f32 %v2182, %v2203
        %v2209 = vmul.f32 %v2183, %v2203
        %v2210 = vmul.f32 %v2185, %v2203
        %v2211 = vmul.f32 %v2186, %v2203
        %v2212 = vmul.f32 %v2188, %v2203
        %v2213 = vmul.f32 %v2189, %v2203
        %v2214 = vmul.f32 %v2191, %v2203
        %v2215 = vmul.f32 %v2192, %v2203
        %v2216 = vmul.f32 %v2194, %v2203
        %v2217 = vmul.f32 %v2195, %v2203
        %v2218 = vmul.f32 %v2197, %v2203
        %v2219 = vmul.f32 %v2198, %v2203
        %v2220 = vadd.f32 %v2157, %v2204
        %v2221 = vadd.f32 %v2158, %v2205
        %v2222 = vadd.f32 %v2159, %v2206
        %v2223 = vadd.f32 %v2160, %v2207
        %v2224 = vadd.f32 %v2161, %v2208
        %v2225 = vadd.f32 %v2162, %v2209
        %v2226 = vadd.f32 %v2163, %v2210
        %v2227 = vadd.f32 %v2164, %v2211
        %v2228 = vadd.f32 %v2165, %v2212
        %v2229 = vadd.f32 %v2166, %v2213
        %v2230 = vadd.f32 %v2167, %v2214
        %v2231 = vadd.f32 %v2168, %v2215
        %v2232 = vadd.f32 %v2169, %v2216
        %v2233 = vadd.f32 %v2170, %v2217
        %v2234 = vadd.f32 %v2171, %v2218
        %v2235 = vadd.f32 %v2172, %v2219
        %v2236 = vlaneseq
        %v2237 = vshrl.u32 %v2236, 7
        %v2238 = vsub.s32 3, %v2237
        %v2239 = vrot.slane %v1049, %v2238
        %v2240 = vmul.f32 %v2176, %v2239
        %v2241 = vmul.f32 %v2177, %v2239
        %v2242 = vmul.f32 %v2178, %v2239
        %v2243 = vmul.f32 %v2179, %v2239
        %v2244 = vmul.f32 %v2180, %v2239
        %v2245 = vmul.f32 %v2181, %v2239
        %v2246 = vmul.f32 %v2182, %v2239
        %v2247 = vmul.f32 %v2183, %v2239
        %v2248 = vmul.f32 %v2184, %v2239
        %v2249 = vmul.f32 %v2185, %v2239
        %v2250 = vmul.f32 %v2186, %v2239
        %v2251 = vmul.f32 %v2187, %v2239
        %v2252 = vmul.f32 %v2188, %v2239
        %v2253 = vmul.f32 %v2189, %v2239
        %v2254 = vmul.f32 %v2190, %v2239
        %v2255 = vmul.f32 %v2191, %v2239
        %v2256 = vmul.f32 %v2192, %v2239
        %v2257 = vmul.f32 %v2193, %v2239
        %v2258 = vmul.f32 %v2194, %v2239
        %v2259 = vmul.f32 %v2195, %v2239
        %v2260 = vmul.f32 %v2196, %v2239
        %v2261 = vmul.f32 %v2197, %v2239
        %v2262 = vmul.f32 %v2198, %v2239
        %v2263 = vmul.f32 %v2199, %v2239
        %v2288 = vrot.slane %v2240, 1
        %v2289 = vrot.slane %v2241, 1
        %v2290 = vsel %vm1166, %v2288, %v2289
        %v2291 = vrot.slane %v2242, 1
        %v2292 = vsel %vm1166, %v2289, %v2291
        %v2293 = vrot.slane %v2243, 1
        %v2294 = vrot.slane %v2244, 1
        %v2295 = vsel %vm1166, %v2293, %v2294
        %v2296 = vrot.slane %v2245, 1
        %v2297 = vsel %vm1166, %v2294, %v2296
        %v2298 = vrot.slane %v2246, 1
        %v2299 = vrot.slane %v2247, 1
        %v2300 = vsel %vm1166, %v2298, %v2299
        %v2301 = vrot.slane %v2248, 1
        %v2302 = vsel %vm1166, %v2299, %v2301
        %v2303 = vrot.slane %v2249, 1
        %v2304 = vrot.slane %v2250, 1
        %v2305 = vsel %vm1166, %v2303, %v2304
        %v2306 = vrot.slane %v2251, 1
        %v2307 = vsel %vm1166, %v2304, %v2306
        %v2308 = vrot.slane %v2252, 1
        %v2309 = vrot.slane %v2253, 1
        %v2310 = vsel %vm1166, %v2308, %v2309
        %v2311 = vrot.slane %v2254, 1
        %v2312 = vsel %vm1166, %v2309, %v2311
        %v2313 = vrot.slane %v2255, 1
        %v2314 = vrot.slane %v2256, 1
        %v2315 = vsel %vm1166, %v2313, %v2314
        %v2316 = vrot.slane %v2257, 1
        %v2317 = vsel %vm1166, %v2314, %v2316
        %v2318 = vrot.slane %v2258, 1
        %v2319 = vrot.slane %v2259, 1
        %v2320 = vsel %vm1166, %v2318, %v2319
        %v2321 = vrot.slane %v2260, 1
        %v2322 = vsel %vm1166, %v2319, %v2321
        %v2323 = vrot.slane %v2261, 1
        %v2324 = vrot.slane %v2262, 1
        %v2325 = vsel %vm1166, %v2323, %v2324
        %v2326 = vrot.slane %v2263, 1
        %v2327 = vsel %vm1166, %v2324, %v2326
        %v2344 = vadd.f32 %v2220, %v2290
        %v2345 = vadd.f32 %v2221, %v2292
        %v2346 = vadd.f32 %v2222, %v2295
        %v2347 = vadd.f32 %v2223, %v2297
        %v2348 = vadd.f32 %v2224, %v2300
        %v2349 = vadd.f32 %v2225, %v2302
        %v2350 = vadd.f32 %v2226, %v2305
        %v2351 = vadd.f32 %v2227, %v2307
        %v2352 = vadd.f32 %v2228, %v2310
        %v2353 = vadd.f32 %v2229, %v2312
        %v2354 = vadd.f32 %v2230, %v2315
        %v2355 = vadd.f32 %v2231, %v2317
        %v2356 = vadd.f32 %v2232, %v2320
        %v2357 = vadd.f32 %v2233, %v2322
        %v2358 = vadd.f32 %v2234, %v2325
        %v2359 = vadd.f32 %v2235, %v2327
        %v2360 = vlaneseq
        %v2361 = vshrl.u32 %v2360, 7
        %v2362 = vsub.s32 4, %v2361
        %v2363 = vrot.slane %v1049, %v2362
        %v2364 = vmul.f32 %v2176, %v2363
        %v2365 = vmul.f32 %v2177, %v2363
        %v2366 = vmul.f32 %v2178, %v2363
        %v2367 = vmul.f32 %v2179, %v2363
        %v2368 = vmul.f32 %v2180, %v2363
        %v2369 = vmul.f32 %v2181, %v2363
        %v2370 = vmul.f32 %v2182, %v2363
        %v2371 = vmul.f32 %v2183, %v2363
        %v2372 = vmul.f32 %v2184, %v2363
        %v2373 = vmul.f32 %v2185, %v2363
        %v2374 = vmul.f32 %v2186, %v2363
        %v2375 = vmul.f32 %v2187, %v2363
        %v2376 = vmul.f32 %v2188, %v2363
        %v2377 = vmul.f32 %v2189, %v2363
        %v2378 = vmul.f32 %v2190, %v2363
        %v2379 = vmul.f32 %v2191, %v2363
        %v2380 = vmul.f32 %v2192, %v2363
        %v2381 = vmul.f32 %v2193, %v2363
        %v2382 = vmul.f32 %v2194, %v2363
        %v2383 = vmul.f32 %v2195, %v2363
        %v2384 = vmul.f32 %v2196, %v2363
        %v2385 = vmul.f32 %v2197, %v2363
        %v2386 = vmul.f32 %v2198, %v2363
        %v2387 = vmul.f32 %v2199, %v2363
        %v2412 = vrot.slane %v2364, 2
        %v2413 = vrot.slane %v2365, 2
        %v2414 = vsel %vm1291, %v2412, %v2413
        %v2415 = vrot.slane %v2366, 2
        %v2416 = vsel %vm1291, %v2413, %v2415
        %v2417 = vrot.slane %v2367, 2
        %v2418 = vrot.slane %v2368, 2
        %v2419 = vsel %vm1291, %v2417, %v2418
        %v2420 = vrot.slane %v2369, 2
        %v2421 = vsel %vm1291, %v2418, %v2420
        %v2422 = vrot.slane %v2370, 2
        %v2423 = vrot.slane %v2371, 2
        %v2424 = vsel %vm1291, %v2422, %v2423
        %v2425 = vrot.slane %v2372, 2
        %v2426 = vsel %vm1291, %v2423, %v2425
        %v2427 = vrot.slane %v2373, 2
        %v2428 = vrot.slane %v2374, 2
        %v2429 = vsel %vm1291, %v2427, %v2428
        %v2430 = vrot.slane %v2375, 2
        %v2431 = vsel %vm1291, %v2428, %v2430
        %v2432 = vrot.slane %v2376, 2
        %v2433 = vrot.slane %v2377, 2
        %v2434 = vsel %vm1291, %v2432, %v2433
        %v2435 = vrot.slane %v2378, 2
        %v2436 = vsel %vm1291, %v2433, %v2435
        %v2437 = vrot.slane %v2379, 2
        %v2438 = vrot.slane %v2380, 2
        %v2439 = vsel %vm1291, %v2437, %v2438
        %v2440 = vrot.slane %v2381, 2
        %v2441 = vsel %vm1291, %v2438, %v2440
        %v2442 = vrot.slane %v2382, 2
        %v2443 = vrot.slane %v2383, 2
        %v2444 = vsel %vm1291, %v2442, %v2443
        %v2445 = vrot.slane %v2384, 2
        %v2446 = vsel %vm1291, %v2443, %v2445
        %v2447 = vrot.slane %v2385, 2
        %v2448 = vrot.slane %v2386, 2
        %v2449 = vsel %vm1291, %v2447, %v2448
        %v2450 = vrot.slane %v2387, 2
        %v2451 = vsel %vm1291, %v2448, %v2450
        %v2468 = vadd.f32 %v2344, %v2414
        %v2469 = vadd.f32 %v2345, %v2416
        %v2470 = vadd.f32 %v2346, %v2419
        %v2471 = vadd.f32 %v2347, %v2421
        %v2472 = vadd.f32 %v2348, %v2424
        %v2473 = vadd.f32 %v2349, %v2426
        %v2474 = vadd.f32 %v2350, %v2429
        %v2475 = vadd.f32 %v2351, %v2431
        %v2476 = vadd.f32 %v2352, %v2434
        %v2477 = vadd.f32 %v2353, %v2436
        %v2478 = vadd.f32 %v2354, %v2439
        %v2479 = vadd.f32 %v2355, %v2441
        %v2480 = vadd.f32 %v2356, %v2444
        %v2481 = vadd.f32 %v2357, %v2446
        %v2482 = vadd.f32 %v2358, %v2449
        %v2483 = vadd.f32 %v2359, %v2451
        %v2484 = vlaneseq
        %v2485 = vshrl.u32 %v2484, 7
        %v2486 = vsub.s32 5, %v2485
        %v2487 = vrot.slane %v1049, %v2486
        %v2488 = vmul.f32 %v2176, %v2487
        %v2489 = vmul.f32 %v2177, %v2487
        %v2490 = vmul.f32 %v2178, %v2487
        %v2491 = vmul.f32 %v2179, %v2487
        %v2492 = vmul.f32 %v2180, %v2487
        %v2493 = vmul.f32 %v2181, %v2487
        %v2494 = vmul.f32 %v2182, %v2487
        %v2495 = vmul.f32 %v2183, %v2487
        %v2496 = vmul.f32 %v2184, %v2487
        %v2497 = vmul.f32 %v2185, %v2487
        %v2498 = vmul.f32 %v2186, %v2487
        %v2499 = vmul.f32 %v2187, %v2487
        %v2500 = vmul.f32 %v2188, %v2487
        %v2501 = vmul.f32 %v2189, %v2487
        %v2502 = vmul.f32 %v2190, %v2487
        %v2503 = vmul.f32 %v2191, %v2487
        %v2504 = vmul.f32 %v2192, %v2487
        %v2505 = vmul.f32 %v2193, %v2487
        %v2506 = vmul.f32 %v2194, %v2487
        %v2507 = vmul.f32 %v2195, %v2487
        %v2508 = vmul.f32 %v2196, %v2487
        %v2509 = vmul.f32 %v2197, %v2487
        %v2510 = vmul.f32 %v2198, %v2487
        %v2511 = vmul.f32 %v2199, %v2487
        %v2536 = vrot.slane %v2488, 3
        %v2537 = vrot.slane %v2489, 3
        %v2538 = vsel %vm1416, %v2536, %v2537
        %v2539 = vrot.slane %v2490, 3
        %v2540 = vsel %vm1416, %v2537, %v2539
        %v2541 = vrot.slane %v2491, 3
        %v2542 = vrot.slane %v2492, 3
        %v2543 = vsel %vm1416, %v2541, %v2542
        %v2544 = vrot.slane %v2493, 3
        %v2545 = vsel %vm1416, %v2542, %v2544
        %v2546 = vrot.slane %v2494, 3
        %v2547 = vrot.slane %v2495, 3
        %v2548 = vsel %vm1416, %v2546, %v2547
        %v2549 = vrot.slane %v2496, 3
        %v2550 = vsel %vm1416, %v2547, %v2549
        %v2551 = vrot.slane %v2497, 3
        %v2552 = vrot.slane %v2498, 3
        %v2553 = vsel %vm1416, %v2551, %v2552
        %v2554 = vrot.slane %v2499, 3
        %v2555 = vsel %vm1416, %v2552, %v2554
        %v2556 = vrot.slane %v2500, 3
        %v2557 = vrot.slane %v2501, 3
        %v2558 = vsel %vm1416, %v2556, %v2557
        %v2559 = vrot.slane %v2502, 3
        %v2560 = vsel %vm1416, %v2557, %v2559
        %v2561 = vrot.slane %v2503, 3
        %v2562 = vrot.slane %v2504, 3
        %v2563 = vsel %vm1416, %v2561, %v2562
        %v2564 = vrot.slane %v2505, 3
        %v2565 = vsel %vm1416, %v2562, %v2564
        %v2566 = vrot.slane %v2506, 3
        %v2567 = vrot.slane %v2507, 3
        %v2568 = vsel %vm1416, %v2566, %v2567
        %v2569 = vrot.slane %v2508, 3
        %v2570 = vsel %vm1416, %v2567, %v2569
        %v2571 = vrot.slane %v2509, 3
        %v2572 = vrot.slane %v2510, 3
        %v2573 = vsel %vm1416, %v2571, %v2572
        %v2574 = vrot.slane %v2511, 3
        %v2575 = vsel %vm1416, %v2572, %v2574
        %v2592 = vadd.f32 %v2468, %v2538
        %v2593 = vadd.f32 %v2469, %v2540
        %v2594 = vadd.f32 %v2470, %v2543
        %v2595 = vadd.f32 %v2471, %v2545
        %v2596 = vadd.f32 %v2472, %v2548
        %v2597 = vadd.f32 %v2473, %v2550
        %v2598 = vadd.f32 %v2474, %v2553
        %v2599 = vadd.f32 %v2475, %v2555
        %v2600 = vadd.f32 %v2476, %v2558
        %v2601 = vadd.f32 %v2477, %v2560
        %v2602 = vadd.f32 %v2478, %v2563
        %v2603 = vadd.f32 %v2479, %v2565
        %v2604 = vadd.f32 %v2480, %v2568
        %v2605 = vadd.f32 %v2481, %v2570
        %v2606 = vadd.f32 %v2482, %v2573
        %v2607 = vadd.f32 %v2483, %v2575
        %v2608 = vlaneseq
        %v2609 = vshrl.u32 %v2608, 7
        %v2610 = vsub.s32 6, %v2609
        %v2611 = vrot.slane %v1049, %v2610
        %v2612 = vmul.f32 %v2176, %v2611
        %v2613 = vmul.f32 %v2177, %v2611
        %v2614 = vmul.f32 %v2178, %v2611
        %v2615 = vmul.f32 %v2179, %v2611
        %v2616 = vmul.f32 %v2180, %v2611
        %v2617 = vmul.f32 %v2181, %v2611
        %v2618 = vmul.f32 %v2182, %v2611
        %v2619 = vmul.f32 %v2183, %v2611
        %v2620 = vmul.f32 %v2184, %v2611
        %v2621 = vmul.f32 %v2185, %v2611
        %v2622 = vmul.f32 %v2186, %v2611
        %v2623 = vmul.f32 %v2187, %v2611
        %v2624 = vmul.f32 %v2188, %v2611
        %v2625 = vmul.f32 %v2189, %v2611
        %v2626 = vmul.f32 %v2190, %v2611
        %v2627 = vmul.f32 %v2191, %v2611
        %v2628 = vmul.f32 %v2192, %v2611
        %v2629 = vmul.f32 %v2193, %v2611
        %v2630 = vmul.f32 %v2194, %v2611
        %v2631 = vmul.f32 %v2195, %v2611
        %v2632 = vmul.f32 %v2196, %v2611
        %v2633 = vmul.f32 %v2197, %v2611
        %v2634 = vmul.f32 %v2198, %v2611
        %v2635 = vmul.f32 %v2199, %v2611
        %v2660 = vrot.slane %v2612, 4
        %v2661 = vrot.slane %v2613, 4
        %v2662 = vsel %vm1541, %v2660, %v2661
        %v2663 = vrot.slane %v2614, 4
        %v2664 = vsel %vm1541, %v2661, %v2663
        %v2665 = vrot.slane %v2615, 4
        %v2666 = vrot.slane %v2616, 4
        %v2667 = vsel %vm1541, %v2665, %v2666
        %v2668 = vrot.slane %v2617, 4
        %v2669 = vsel %vm1541, %v2666, %v2668
        %v2670 = vrot.slane %v2618, 4
        %v2671 = vrot.slane %v2619, 4
        %v2672 = vsel %vm1541, %v2670, %v2671
        %v2673 = vrot.slane %v2620, 4
        %v2674 = vsel %vm1541, %v2671, %v2673
        %v2675 = vrot.slane %v2621, 4
        %v2676 = vrot.slane %v2622, 4
        %v2677 = vsel %vm1541, %v2675, %v2676
        %v2678 = vrot.slane %v2623, 4
        %v2679 = vsel %vm1541, %v2676, %v2678
        %v2680 = vrot.slane %v2624, 4
        %v2681 = vrot.slane %v2625, 4
        %v2682 = vsel %vm1541, %v2680, %v2681
        %v2683 = vrot.slane %v2626, 4
        %v2684 = vsel %vm1541, %v2681, %v2683
        %v2685 = vrot.slane %v2627, 4
        %v2686 = vrot.slane %v2628, 4
        %v2687 = vsel %vm1541, %v2685, %v2686
        %v2688 = vrot.slane %v2629, 4
        %v2689 = vsel %vm1541, %v2686, %v2688
        %v2690 = vrot.slane %v2630, 4
        %v2691 = vrot.slane %v2631, 4
        %v2692 = vsel %vm1541, %v2690, %v2691
        %v2693 = vrot.slane %v2632, 4
        %v2694 = vsel %vm1541, %v2691, %v2693
        %v2695 = vrot.slane %v2633, 4
        %v2696 = vrot.slane %v2634, 4
        %v2697 = vsel %vm1541, %v2695, %v2696
        %v2698 = vrot.slane %v2635, 4
        %v2699 = vsel %vm1541, %v2696, %v2698
        %v2716 = vadd.f32 %v2592, %v2662
        %v2717 = vadd.f32 %v2593, %v2664
        %v2718 = vadd.f32 %v2594, %v2667
        %v2719 = vadd.f32 %v2595, %v2669
        %v2720 = vadd.f32 %v2596, %v2672
        %v2721 = vadd.f32 %v2597, %v2674
        %v2722 = vadd.f32 %v2598, %v2677
        %v2723 = vadd.f32 %v2599, %v2679
        %v2724 = vadd.f32 %v2600, %v2682
        %v2725 = vadd.f32 %v2601, %v2684
        %v2726 = vadd.f32 %v2602, %v2687
        %v2727 = vadd.f32 %v2603, %v2689
        %v2728 = vadd.f32 %v2604, %v2692
        %v2729 = vadd.f32 %v2605, %v2694
        %v2730 = vadd.f32 %v2606, %v2697
        %v2731 = vadd.f32 %v2607, %v2699
        %s2732 = sadd.s32 %s1047, 3
        %s2733 = smul.u32 %s2732, 24
        %s2734 = scalar_lea.vmem [#allocation2], %s2733
        %v2735 = vld [vmem:[%s2734] sm:$0xff]
        %v2736 = vld [vmem:[%s2734 + $0x8] sm:$0xff]
        %v2737 = vld [vmem:[%s2734 + $0x10] sm:$0xf]
        %v2738 = vld [vmem:[%s2734 + $0x18] sm:$0xff]
        %v2739 = vld [vmem:[%s2734 + $0x20] sm:$0xff]
        %v2740 = vld [vmem:[%s2734 + $0x28] sm:$0xf]
        %v2741 = vld [vmem:[%s2734 + $0x30] sm:$0xff]
        %v2742 = vld [vmem:[%s2734 + $0x38] sm:$0xff]
        %v2743 = vld [vmem:[%s2734 + $0x40] sm:$0xf]
        %v2744 = vld [vmem:[%s2734 + $0x48] sm:$0xff]
        %v2745 = vld [vmem:[%s2734 + $0x50] sm:$0xff]
        %v2746 = vld [vmem:[%s2734 + $0x58] sm:$0xf]
        %v2747 = vld [vmem:[%s2734 + $0x60] sm:$0xff]
        %v2748 = vld [vmem:[%s2734 + $0x68] sm:$0xff]
        %v2749 = vld [vmem:[%s2734 + $0x70] sm:$0xf]
        %v2750 = vld [vmem:[%s2734 + $0x78] sm:$0xff]
        %v2751 = vld [vmem:[%s2734 + $0x80] sm:$0xff]
        %v2752 = vld [vmem:[%s2734 + $0x88] sm:$0xf]
        %v2753 = vld [vmem:[%s2734 + $0x90] sm:$0xff]
        %v2754 = vld [vmem:[%s2734 + $0x98] sm:$0xff]
        %v2755 = vld [vmem:[%s2734 + $0xa0] sm:$0xf]
        %v2756 = vld [vmem:[%s2734 + $0xa8] sm:$0xff]
        %v2757 = vld [vmem:[%s2734 + $0xb0] sm:$0xff]
        %v2758 = vld [vmem:[%s2734 + $0xb8] sm:$0xf]
        %v2759 = vlaneseq
        %v2760 = vshrl.u32 %v2759, 7
        %v2761 = vsub.s32 7, %v2760
        %v2762 = vrot.slane %v1049, %v2761
        %v2763 = vmul.f32 %v2735, %v2762
        %v2764 = vmul.f32 %v2736, %v2762
        %v2765 = vmul.f32 %v2738, %v2762
        %v2766 = vmul.f32 %v2739, %v2762
        %v2767 = vmul.f32 %v2741, %v2762
        %v2768 = vmul.f32 %v2742, %v2762
        %v2769 = vmul.f32 %v2744, %v2762
        %v2770 = vmul.f32 %v2745, %v2762
        %v2771 = vmul.f32 %v2747, %v2762
        %v2772 = vmul.f32 %v2748, %v2762
        %v2773 = vmul.f32 %v2750, %v2762
        %v2774 = vmul.f32 %v2751, %v2762
        %v2775 = vmul.f32 %v2753, %v2762
        %v2776 = vmul.f32 %v2754, %v2762
        %v2777 = vmul.f32 %v2756, %v2762
        %v2778 = vmul.f32 %v2757, %v2762
        %v2779 = vadd.f32 %v2716, %v2763
        %v2780 = vadd.f32 %v2717, %v2764
        %v2781 = vadd.f32 %v2718, %v2765
        %v2782 = vadd.f32 %v2719, %v2766
        %v2783 = vadd.f32 %v2720, %v2767
        %v2784 = vadd.f32 %v2721, %v2768
        %v2785 = vadd.f32 %v2722, %v2769
        %v2786 = vadd.f32 %v2723, %v2770
        %v2787 = vadd.f32 %v2724, %v2771
        %v2788 = vadd.f32 %v2725, %v2772
        %v2789 = vadd.f32 %v2726, %v2773
        %v2790 = vadd.f32 %v2727, %v2774
        %v2791 = vadd.f32 %v2728, %v2775
        %v2792 = vadd.f32 %v2729, %v2776
        %v2793 = vadd.f32 %v2730, %v2777
        %v2794 = vadd.f32 %v2731, %v2778
        %v2795 = vlaneseq
        %v2796 = vshrl.u32 %v2795, 7
        %v2797 = vsub.s32 0, %v2796
        %v2798 = vrot.slane %v1050, %v2797
        %v2799 = vmul.f32 %v2735, %v2798
        %v2800 = vmul.f32 %v2736, %v2798
        %v2801 = vmul.f32 %v2737, %v2798
        %v2802 = vmul.f32 %v2738, %v2798
        %v2803 = vmul.f32 %v2739, %v2798
        %v2804 = vmul.f32 %v2740, %v2798
        %v2805 = vmul.f32 %v2741, %v2798
        %v2806 = vmul.f32 %v2742, %v2798
        %v2807 = vmul.f32 %v2743, %v2798
        %v2808 = vmul.f32 %v2744, %v2798
        %v2809 = vmul.f32 %v2745, %v2798
        %v2810 = vmul.f32 %v2746, %v2798
        %v2811 = vmul.f32 %v2747, %v2798
        %v2812 = vmul.f32 %v2748, %v2798
        %v2813 = vmul.f32 %v2749, %v2798
        %v2814 = vmul.f32 %v2750, %v2798
        %v2815 = vmul.f32 %v2751, %v2798
        %v2816 = vmul.f32 %v2752, %v2798
        %v2817 = vmul.f32 %v2753, %v2798
        %v2818 = vmul.f32 %v2754, %v2798
        %v2819 = vmul.f32 %v2755, %v2798
        %v2820 = vmul.f32 %v2756, %v2798
        %v2821 = vmul.f32 %v2757, %v2798
        %v2822 = vmul.f32 %v2758, %v2798
        %v2847 = vrot.slane %v2799, 1
        %v2848 = vrot.slane %v2800, 1
        %v2849 = vsel %vm1166, %v2847, %v2848
        %v2850 = vrot.slane %v2801, 1
        %v2851 = vsel %vm1166, %v2848, %v2850
        %v2852 = vrot.slane %v2802, 1
        %v2853 = vrot.slane %v2803, 1
        %v2854 = vsel %vm1166, %v2852, %v2853
        %v2855 = vrot.slane %v2804, 1
        %v2856 = vsel %vm1166, %v2853, %v2855
        %v2857 = vrot.slane %v2805, 1
        %v2858 = vrot.slane %v2806, 1
        %v2859 = vsel %vm1166, %v2857, %v2858
        %v2860 = vrot.slane %v2807, 1
        %v2861 = vsel %vm1166, %v2858, %v2860
        %v2862 = vrot.slane %v2808, 1
        %v2863 = vrot.slane %v2809, 1
        %v2864 = vsel %vm1166, %v2862, %v2863
        %v2865 = vrot.slane %v2810, 1
        %v2866 = vsel %vm1166, %v2863, %v2865
        %v2867 = vrot.slane %v2811, 1
        %v2868 = vrot.slane %v2812, 1
        %v2869 = vsel %vm1166, %v2867, %v2868
        %v2870 = vrot.slane %v2813, 1
        %v2871 = vsel %vm1166, %v2868, %v2870
        %v2872 = vrot.slane %v2814, 1
        %v2873 = vrot.slane %v2815, 1
        %v2874 = vsel %vm1166, %v2872, %v2873
        %v2875 = vrot.slane %v2816, 1
        %v2876 = vsel %vm1166, %v2873, %v2875
        %v2877 = vrot.slane %v2817, 1
        %v2878 = vrot.slane %v2818, 1
        %v2879 = vsel %vm1166, %v2877, %v2878
        %v2880 = vrot.slane %v2819, 1
        %v2881 = vsel %vm1166, %v2878, %v2880
        %v2882 = vrot.slane %v2820, 1
        %v2883 = vrot.slane %v2821, 1
        %v2884 = vsel %vm1166, %v2882, %v2883
        %v2885 = vrot.slane %v2822, 1
        %v2886 = vsel %vm1166, %v2883, %v2885
        %v2903 = vadd.f32 %v2779, %v2849
        %v2904 = vadd.f32 %v2780, %v2851
        %v2905 = vadd.f32 %v2781, %v2854
        %v2906 = vadd.f32 %v2782, %v2856
        %v2907 = vadd.f32 %v2783, %v2859
        %v2908 = vadd.f32 %v2784, %v2861
        %v2909 = vadd.f32 %v2785, %v2864
        %v2910 = vadd.f32 %v2786, %v2866
        %v2911 = vadd.f32 %v2787, %v2869
        %v2912 = vadd.f32 %v2788, %v2871
        %v2913 = vadd.f32 %v2789, %v2874
        %v2914 = vadd.f32 %v2790, %v2876
        %v2915 = vadd.f32 %v2791, %v2879
        %v2916 = vadd.f32 %v2792, %v2881
        %v2917 = vadd.f32 %v2793, %v2884
        %v2918 = vadd.f32 %v2794, %v2886
        %v2919 = vlaneseq
        %v2920 = vshrl.u32 %v2919, 7
        %v2921 = vsub.s32 1, %v2920
        %v2922 = vrot.slane %v1050, %v2921
        %v2923 = vmul.f32 %v2735, %v2922
        %v2924 = vmul.f32 %v2736, %v2922
        %v2925 = vmul.f32 %v2737, %v2922
        %v2926 = vmul.f32 %v2738, %v2922
        %v2927 = vmul.f32 %v2739, %v2922
        %v2928 = vmul.f32 %v2740, %v2922
        %v2929 = vmul.f32 %v2741, %v2922
        %v2930 = vmul.f32 %v2742, %v2922
        %v2931 = vmul.f32 %v2743, %v2922
        %v2932 = vmul.f32 %v2744, %v2922
        %v2933 = vmul.f32 %v2745, %v2922
        %v2934 = vmul.f32 %v2746, %v2922
        %v2935 = vmul.f32 %v2747, %v2922
        %v2936 = vmul.f32 %v2748, %v2922
        %v2937 = vmul.f32 %v2749, %v2922
        %v2938 = vmul.f32 %v2750, %v2922
        %v2939 = vmul.f32 %v2751, %v2922
        %v2940 = vmul.f32 %v2752, %v2922
        %v2941 = vmul.f32 %v2753, %v2922
        %v2942 = vmul.f32 %v2754, %v2922
        %v2943 = vmul.f32 %v2755, %v2922
        %v2944 = vmul.f32 %v2756, %v2922
        %v2945 = vmul.f32 %v2757, %v2922
        %v2946 = vmul.f32 %v2758, %v2922
        %v2971 = vrot.slane %v2923, 2
        %v2972 = vrot.slane %v2924, 2
        %v2973 = vsel %vm1291, %v2971, %v2972
        %v2974 = vrot.slane %v2925, 2
        %v2975 = vsel %vm1291, %v2972, %v2974
        %v2976 = vrot.slane %v2926, 2
        %v2977 = vrot.slane %v2927, 2
        %v2978 = vsel %vm1291, %v2976, %v2977
        %v2979 = vrot.slane %v2928, 2
        %v2980 = vsel %vm1291, %v2977, %v2979
        %v2981 = vrot.slane %v2929, 2
        %v2982 = vrot.slane %v2930, 2
        %v2983 = vsel %vm1291, %v2981, %v2982
        %v2984 = vrot.slane %v2931, 2
        %v2985 = vsel %vm1291, %v2982, %v2984
        %v2986 = vrot.slane %v2932, 2
        %v2987 = vrot.slane %v2933, 2
        %v2988 = vsel %vm1291, %v2986, %v2987
        %v2989 = vrot.slane %v2934, 2
        %v2990 = vsel %vm1291, %v2987, %v2989
        %v2991 = vrot.slane %v2935, 2
        %v2992 = vrot.slane %v2936, 2
        %v2993 = vsel %vm1291, %v2991, %v2992
        %v2994 = vrot.slane %v2937, 2
        %v2995 = vsel %vm1291, %v2992, %v2994
        %v2996 = vrot.slane %v2938, 2
        %v2997 = vrot.slane %v2939, 2
        %v2998 = vsel %vm1291, %v2996, %v2997
        %v2999 = vrot.slane %v2940, 2
        %v3000 = vsel %vm1291, %v2997, %v2999
        %v3001 = vrot.slane %v2941, 2
        %v3002 = vrot.slane %v2942, 2
        %v3003 = vsel %vm1291, %v3001, %v3002
        %v3004 = vrot.slane %v2943, 2
        %v3005 = vsel %vm1291, %v3002, %v3004
        %v3006 = vrot.slane %v2944, 2
        %v3007 = vrot.slane %v2945, 2
        %v3008 = vsel %vm1291, %v3006, %v3007
        %v3009 = vrot.slane %v2946, 2
        %v3010 = vsel %vm1291, %v3007, %v3009
        %v3027 = vadd.f32 %v2903, %v2973
        %v3028 = vadd.f32 %v2904, %v2975
        %v3029 = vadd.f32 %v2905, %v2978
        %v3030 = vadd.f32 %v2906, %v2980
        %v3031 = vadd.f32 %v2907, %v2983
        %v3032 = vadd.f32 %v2908, %v2985
        %v3033 = vadd.f32 %v2909, %v2988
        %v3034 = vadd.f32 %v2910, %v2990
        %v3035 = vadd.f32 %v2911, %v2993
        %v3036 = vadd.f32 %v2912, %v2995
        %v3037 = vadd.f32 %v2913, %v2998
        %v3038 = vadd.f32 %v2914, %v3000
        %v3039 = vadd.f32 %v2915, %v3003
        %v3040 = vadd.f32 %v2916, %v3005
        %v3041 = vadd.f32 %v2917, %v3008
        %v3042 = vadd.f32 %v2918, %v3010
        %v3043 = vlaneseq
        %v3044 = vshrl.u32 %v3043, 7
        %v3045 = vsub.s32 2, %v3044
        %v3046 = vrot.slane %v1050, %v3045
        %v3047 = vmul.f32 %v2735, %v3046
        %v3048 = vmul.f32 %v2736, %v3046
        %v3049 = vmul.f32 %v2737, %v3046
        %v3050 = vmul.f32 %v2738, %v3046
        %v3051 = vmul.f32 %v2739, %v3046
        %v3052 = vmul.f32 %v2740, %v3046
        %v3053 = vmul.f32 %v2741, %v3046
        %v3054 = vmul.f32 %v2742, %v3046
        %v3055 = vmul.f32 %v2743, %v3046
        %v3056 = vmul.f32 %v2744, %v3046
        %v3057 = vmul.f32 %v2745, %v3046
        %v3058 = vmul.f32 %v2746, %v3046
        %v3059 = vmul.f32 %v2747, %v3046
        %v3060 = vmul.f32 %v2748, %v3046
        %v3061 = vmul.f32 %v2749, %v3046
        %v3062 = vmul.f32 %v2750, %v3046
        %v3063 = vmul.f32 %v2751, %v3046
        %v3064 = vmul.f32 %v2752, %v3046
        %v3065 = vmul.f32 %v2753, %v3046
        %v3066 = vmul.f32 %v2754, %v3046
        %v3067 = vmul.f32 %v2755, %v3046
        %v3068 = vmul.f32 %v2756, %v3046
        %v3069 = vmul.f32 %v2757, %v3046
        %v3070 = vmul.f32 %v2758, %v3046
        %v3095 = vrot.slane %v3047, 3
        %v3096 = vrot.slane %v3048, 3
        %v3097 = vsel %vm1416, %v3095, %v3096
        %v3098 = vrot.slane %v3049, 3
        %v3099 = vsel %vm1416, %v3096, %v3098
        %v3100 = vrot.slane %v3050, 3
        %v3101 = vrot.slane %v3051, 3
        %v3102 = vsel %vm1416, %v3100, %v3101
        %v3103 = vrot.slane %v3052, 3
        %v3104 = vsel %vm1416, %v3101, %v3103
        %v3105 = vrot.slane %v3053, 3
        %v3106 = vrot.slane %v3054, 3
        %v3107 = vsel %vm1416, %v3105, %v3106
        %v3108 = vrot.slane %v3055, 3
        %v3109 = vsel %vm1416, %v3106, %v3108
        %v3110 = vrot.slane %v3056, 3
        %v3111 = vrot.slane %v3057, 3
        %v3112 = vsel %vm1416, %v3110, %v3111
        %v3113 = vrot.slane %v3058, 3
        %v3114 = vsel %vm1416, %v3111, %v3113
        %v3115 = vrot.slane %v3059, 3
        %v3116 = vrot.slane %v3060, 3
        %v3117 = vsel %vm1416, %v3115, %v3116
        %v3118 = vrot.slane %v3061, 3
        %v3119 = vsel %vm1416, %v3116, %v3118
        %v3120 = vrot.slane %v3062, 3
        %v3121 = vrot.slane %v3063, 3
        %v3122 = vsel %vm1416, %v3120, %v3121
        %v3123 = vrot.slane %v3064, 3
        %v3124 = vsel %vm1416, %v3121, %v3123
        %v3125 = vrot.slane %v3065, 3
        %v3126 = vrot.slane %v3066, 3
        %v3127 = vsel %vm1416, %v3125, %v3126
        %v3128 = vrot.slane %v3067, 3
        %v3129 = vsel %vm1416, %v3126, %v3128
        %v3130 = vrot.slane %v3068, 3
        %v3131 = vrot.slane %v3069, 3
        %v3132 = vsel %vm1416, %v3130, %v3131
        %v3133 = vrot.slane %v3070, 3
        %v3134 = vsel %vm1416, %v3131, %v3133
        %v3151 = vadd.f32 %v3027, %v3097
        %v3152 = vadd.f32 %v3028, %v3099
        %v3153 = vadd.f32 %v3029, %v3102
        %v3154 = vadd.f32 %v3030, %v3104
        %v3155 = vadd.f32 %v3031, %v3107
        %v3156 = vadd.f32 %v3032, %v3109
        %v3157 = vadd.f32 %v3033, %v3112
        %v3158 = vadd.f32 %v3034, %v3114
        %v3159 = vadd.f32 %v3035, %v3117
        %v3160 = vadd.f32 %v3036, %v3119
        %v3161 = vadd.f32 %v3037, %v3122
        %v3162 = vadd.f32 %v3038, %v3124
        %v3163 = vadd.f32 %v3039, %v3127
        %v3164 = vadd.f32 %v3040, %v3129
        %v3165 = vadd.f32 %v3041, %v3132
        %v3166 = vadd.f32 %v3042, %v3134
        %v3167 = vlaneseq
        %v3168 = vshrl.u32 %v3167, 7
        %v3169 = vsub.s32 3, %v3168
        %v3170 = vrot.slane %v1050, %v3169
        %v3171 = vmul.f32 %v2735, %v3170
        %v3172 = vmul.f32 %v2736, %v3170
        %v3173 = vmul.f32 %v2737, %v3170
        %v3174 = vmul.f32 %v2738, %v3170
        %v3175 = vmul.f32 %v2739, %v3170
        %v3176 = vmul.f32 %v2740, %v3170
        %v3177 = vmul.f32 %v2741, %v3170
        %v3178 = vmul.f32 %v2742, %v3170
        %v3179 = vmul.f32 %v2743, %v3170
        %v3180 = vmul.f32 %v2744, %v3170
        %v3181 = vmul.f32 %v2745, %v3170
        %v3182 = vmul.f32 %v2746, %v3170
        %v3183 = vmul.f32 %v2747, %v3170
        %v3184 = vmul.f32 %v2748, %v3170
        %v3185 = vmul.f32 %v2749, %v3170
        %v3186 = vmul.f32 %v2750, %v3170
        %v3187 = vmul.f32 %v2751, %v3170
        %v3188 = vmul.f32 %v2752, %v3170
        %v3189 = vmul.f32 %v2753, %v3170
        %v3190 = vmul.f32 %v2754, %v3170
        %v3191 = vmul.f32 %v2755, %v3170
        %v3192 = vmul.f32 %v2756, %v3170
        %v3193 = vmul.f32 %v2757, %v3170
        %v3194 = vmul.f32 %v2758, %v3170
        %v3219 = vrot.slane %v3171, 4
        %v3220 = vrot.slane %v3172, 4
        %v3221 = vsel %vm1541, %v3219, %v3220
        %v3222 = vrot.slane %v3173, 4
        %v3223 = vsel %vm1541, %v3220, %v3222
        %v3224 = vrot.slane %v3174, 4
        %v3225 = vrot.slane %v3175, 4
        %v3226 = vsel %vm1541, %v3224, %v3225
        %v3227 = vrot.slane %v3176, 4
        %v3228 = vsel %vm1541, %v3225, %v3227
        %v3229 = vrot.slane %v3177, 4
        %v3230 = vrot.slane %v3178, 4
        %v3231 = vsel %vm1541, %v3229, %v3230
        %v3232 = vrot.slane %v3179, 4
        %v3233 = vsel %vm1541, %v3230, %v3232
        %v3234 = vrot.slane %v3180, 4
        %v3235 = vrot.slane %v3181, 4
        %v3236 = vsel %vm1541, %v3234, %v3235
        %v3237 = vrot.slane %v3182, 4
        %v3238 = vsel %vm1541, %v3235, %v3237
        %v3239 = vrot.slane %v3183, 4
        %v3240 = vrot.slane %v3184, 4
        %v3241 = vsel %vm1541, %v3239, %v3240
        %v3242 = vrot.slane %v3185, 4
        %v3243 = vsel %vm1541, %v3240, %v3242
        %v3244 = vrot.slane %v3186, 4
        %v3245 = vrot.slane %v3187, 4
        %v3246 = vsel %vm1541, %v3244, %v3245
        %v3247 = vrot.slane %v3188, 4
        %v3248 = vsel %vm1541, %v3245, %v3247
        %v3249 = vrot.slane %v3189, 4
        %v3250 = vrot.slane %v3190, 4
        %v3251 = vsel %vm1541, %v3249, %v3250
        %v3252 = vrot.slane %v3191, 4
        %v3253 = vsel %vm1541, %v3250, %v3252
        %v3254 = vrot.slane %v3192, 4
        %v3255 = vrot.slane %v3193, 4
        %v3256 = vsel %vm1541, %v3254, %v3255
        %v3257 = vrot.slane %v3194, 4
        %v3258 = vsel %vm1541, %v3255, %v3257
        %v3275 = vadd.f32 %v3151, %v3221
        %v3276 = vadd.f32 %v3152, %v3223
        %v3277 = vadd.f32 %v3153, %v3226
        %v3278 = vadd.f32 %v3154, %v3228
        %v3279 = vadd.f32 %v3155, %v3231
        %v3280 = vadd.f32 %v3156, %v3233
        %v3281 = vadd.f32 %v3157, %v3236
        %v3282 = vadd.f32 %v3158, %v3238
        %v3283 = vadd.f32 %v3159, %v3241
        %v3284 = vadd.f32 %v3160, %v3243
        %v3285 = vadd.f32 %v3161, %v3246
        %v3286 = vadd.f32 %v3162, %v3248
        %v3287 = vadd.f32 %v3163, %v3251
        %v3288 = vadd.f32 %v3164, %v3253
        %v3289 = vadd.f32 %v3165, %v3256
        %v3290 = vadd.f32 %v3166, %v3258
        %s3291 = sadd.s32 %s1047, 4
        %s3292 = smul.u32 %s3291, 24
        %s3293 = scalar_lea.vmem [#allocation2], %s3292
        %v3294 = vld [vmem:[%s3293] sm:$0xff]
        %v3295 = vld [vmem:[%s3293 + $0x8] sm:$0xff]
        %v3296 = vld [vmem:[%s3293 + $0x10] sm:$0xf]
        %v3297 = vld [vmem:[%s3293 + $0x18] sm:$0xff]
        %v3298 = vld [vmem:[%s3293 + $0x20] sm:$0xff]
        %v3299 = vld [vmem:[%s3293 + $0x28] sm:$0xf]
        %v3300 = vld [vmem:[%s3293 + $0x30] sm:$0xff]
        %v3301 = vld [vmem:[%s3293 + $0x38] sm:$0xff]
        %v3302 = vld [vmem:[%s3293 + $0x40] sm:$0xf]
        %v3303 = vld [vmem:[%s3293 + $0x48] sm:$0xff]
        %v3304 = vld [vmem:[%s3293 + $0x50] sm:$0xff]
        %v3305 = vld [vmem:[%s3293 + $0x58] sm:$0xf]
        %v3306 = vld [vmem:[%s3293 + $0x60] sm:$0xff]
        %v3307 = vld [vmem:[%s3293 + $0x68] sm:$0xff]
        %v3308 = vld [vmem:[%s3293 + $0x70] sm:$0xf]
        %v3309 = vld [vmem:[%s3293 + $0x78] sm:$0xff]
        %v3310 = vld [vmem:[%s3293 + $0x80] sm:$0xff]
        %v3311 = vld [vmem:[%s3293 + $0x88] sm:$0xf]
        %v3312 = vld [vmem:[%s3293 + $0x90] sm:$0xff]
        %v3313 = vld [vmem:[%s3293 + $0x98] sm:$0xff]
        %v3314 = vld [vmem:[%s3293 + $0xa0] sm:$0xf]
        %v3315 = vld [vmem:[%s3293 + $0xa8] sm:$0xff]
        %v3316 = vld [vmem:[%s3293 + $0xb0] sm:$0xff]
        %v3317 = vld [vmem:[%s3293 + $0xb8] sm:$0xf]
        %v3318 = vlaneseq
        %v3319 = vshrl.u32 %v3318, 7
        %v3320 = vsub.s32 4, %v3319
        %v3321 = vrot.slane %v1050, %v3320
        %v3322 = vmul.f32 %v3294, %v3321
        %v3323 = vmul.f32 %v3295, %v3321
        %v3324 = vmul.f32 %v3297, %v3321
        %v3325 = vmul.f32 %v3298, %v3321
        %v3326 = vmul.f32 %v3300, %v3321
        %v3327 = vmul.f32 %v3301, %v3321
        %v3328 = vmul.f32 %v3303, %v3321
        %v3329 = vmul.f32 %v3304, %v3321
        %v3330 = vmul.f32 %v3306, %v3321
        %v3331 = vmul.f32 %v3307, %v3321
        %v3332 = vmul.f32 %v3309, %v3321
        %v3333 = vmul.f32 %v3310, %v3321
        %v3334 = vmul.f32 %v3312, %v3321
        %v3335 = vmul.f32 %v3313, %v3321
        %v3336 = vmul.f32 %v3315, %v3321
        %v3337 = vmul.f32 %v3316, %v3321
        %v3338 = vadd.f32 %v3275, %v3322
        %v3339 = vadd.f32 %v3276, %v3323
        %v3340 = vadd.f32 %v3277, %v3324
        %v3341 = vadd.f32 %v3278, %v3325
        %v3342 = vadd.f32 %v3279, %v3326
        %v3343 = vadd.f32 %v3280, %v3327
        %v3344 = vadd.f32 %v3281, %v3328
        %v3345 = vadd.f32 %v3282, %v3329
        %v3346 = vadd.f32 %v3283, %v3330
        %v3347 = vadd.f32 %v3284, %v3331
        %v3348 = vadd.f32 %v3285, %v3332
        %v3349 = vadd.f32 %v3286, %v3333
        %v3350 = vadd.f32 %v3287, %v3334
        %v3351 = vadd.f32 %v3288, %v3335
        %v3352 = vadd.f32 %v3289, %v3336
        %v3353 = vadd.f32 %v3290, %v3337
        %v3354 = vlaneseq
        %v3355 = vshrl.u32 %v3354, 7
        %v3356 = vsub.s32 5, %v3355
        %v3357 = vrot.slane %v1050, %v3356
        %v3358 = vmul.f32 %v3294, %v3357
        %v3359 = vmul.f32 %v3295, %v3357
        %v3360 = vmul.f32 %v3296, %v3357
        %v3361 = vmul.f32 %v3297, %v3357
        %v3362 = vmul.f32 %v3298, %v3357
        %v3363 = vmul.f32 %v3299, %v3357
        %v3364 = vmul.f32 %v3300, %v3357
        %v3365 = vmul.f32 %v3301, %v3357
        %v3366 = vmul.f32 %v3302, %v3357
        %v3367 = vmul.f32 %v3303, %v3357
        %v3368 = vmul.f32 %v3304, %v3357
        %v3369 = vmul.f32 %v3305, %v3357
        %v3370 = vmul.f32 %v3306, %v3357
        %v3371 = vmul.f32 %v3307, %v3357
        %v3372 = vmul.f32 %v3308, %v3357
        %v3373 = vmul.f32 %v3309, %v3357
        %v3374 = vmul.f32 %v3310, %v3357
        %v3375 = vmul.f32 %v3311, %v3357
        %v3376 = vmul.f32 %v3312, %v3357
        %v3377 = vmul.f32 %v3313, %v3357
        %v3378 = vmul.f32 %v3314, %v3357
        %v3379 = vmul.f32 %v3315, %v3357
        %v3380 = vmul.f32 %v3316, %v3357
        %v3381 = vmul.f32 %v3317, %v3357
        %v3406 = vrot.slane %v3358, 1
        %v3407 = vrot.slane %v3359, 1
        %v3408 = vsel %vm1166, %v3406, %v3407
        %v3409 = vrot.slane %v3360, 1
        %v3410 = vsel %vm1166, %v3407, %v3409
        %v3411 = vrot.slane %v3361, 1
        %v3412 = vrot.slane %v3362, 1
        %v3413 = vsel %vm1166, %v3411, %v3412
        %v3414 = vrot.slane %v3363, 1
        %v3415 = vsel %vm1166, %v3412, %v3414
        %v3416 = vrot.slane %v3364, 1
        %v3417 = vrot.slane %v3365, 1
        %v3418 = vsel %vm1166, %v3416, %v3417
        %v3419 = vrot.slane %v3366, 1
        %v3420 = vsel %vm1166, %v3417, %v3419
        %v3421 = vrot.slane %v3367, 1
        %v3422 = vrot.slane %v3368, 1
        %v3423 = vsel %vm1166, %v3421, %v3422
        %v3424 = vrot.slane %v3369, 1
        %v3425 = vsel %vm1166, %v3422, %v3424
        %v3426 = vrot.slane %v3370, 1
        %v3427 = vrot.slane %v3371, 1
        %v3428 = vsel %vm1166, %v3426, %v3427
        %v3429 = vrot.slane %v3372, 1
        %v3430 = vsel %vm1166, %v3427, %v3429
        %v3431 = vrot.slane %v3373, 1
        %v3432 = vrot.slane %v3374, 1
        %v3433 = vsel %vm1166, %v3431, %v3432
        %v3434 = vrot.slane %v3375, 1
        %v3435 = vsel %vm1166, %v3432, %v3434
        %v3436 = vrot.slane %v3376, 1
        %v3437 = vrot.slane %v3377, 1
        %v3438 = vsel %vm1166, %v3436, %v3437
        %v3439 = vrot.slane %v3378, 1
        %v3440 = vsel %vm1166, %v3437, %v3439
        %v3441 = vrot.slane %v3379, 1
        %v3442 = vrot.slane %v3380, 1
        %v3443 = vsel %vm1166, %v3441, %v3442
        %v3444 = vrot.slane %v3381, 1
        %v3445 = vsel %vm1166, %v3442, %v3444
        %v3462 = vadd.f32 %v3338, %v3408
        %v3463 = vadd.f32 %v3339, %v3410
        %v3464 = vadd.f32 %v3340, %v3413
        %v3465 = vadd.f32 %v3341, %v3415
        %v3466 = vadd.f32 %v3342, %v3418
        %v3467 = vadd.f32 %v3343, %v3420
        %v3468 = vadd.f32 %v3344, %v3423
        %v3469 = vadd.f32 %v3345, %v3425
        %v3470 = vadd.f32 %v3346, %v3428
        %v3471 = vadd.f32 %v3347, %v3430
        %v3472 = vadd.f32 %v3348, %v3433
        %v3473 = vadd.f32 %v3349, %v3435
        %v3474 = vadd.f32 %v3350, %v3438
        %v3475 = vadd.f32 %v3351, %v3440
        %v3476 = vadd.f32 %v3352, %v3443
        %v3477 = vadd.f32 %v3353, %v3445
        %v3478 = vlaneseq
        %v3479 = vshrl.u32 %v3478, 7
        %v3480 = vsub.s32 6, %v3479
        %v3481 = vrot.slane %v1050, %v3480
        %v3482 = vmul.f32 %v3294, %v3481
        %v3483 = vmul.f32 %v3295, %v3481
        %v3484 = vmul.f32 %v3296, %v3481
        %v3485 = vmul.f32 %v3297, %v3481
        %v3486 = vmul.f32 %v3298, %v3481
        %v3487 = vmul.f32 %v3299, %v3481
        %v3488 = vmul.f32 %v3300, %v3481
        %v3489 = vmul.f32 %v3301, %v3481
        %v3490 = vmul.f32 %v3302, %v3481
        %v3491 = vmul.f32 %v3303, %v3481
        %v3492 = vmul.f32 %v3304, %v3481
        %v3493 = vmul.f32 %v3305, %v3481
        %v3494 = vmul.f32 %v3306, %v3481
        %v3495 = vmul.f32 %v3307, %v3481
        %v3496 = vmul.f32 %v3308, %v3481
        %v3497 = vmul.f32 %v3309, %v3481
        %v3498 = vmul.f32 %v3310, %v3481
        %v3499 = vmul.f32 %v3311, %v3481
        %v3500 = vmul.f32 %v3312, %v3481
        %v3501 = vmul.f32 %v3313, %v3481
        %v3502 = vmul.f32 %v3314, %v3481
        %v3503 = vmul.f32 %v3315, %v3481
        %v3504 = vmul.f32 %v3316, %v3481
        %v3505 = vmul.f32 %v3317, %v3481
        %v3530 = vrot.slane %v3482, 2
        %v3531 = vrot.slane %v3483, 2
        %v3532 = vsel %vm1291, %v3530, %v3531
        %v3533 = vrot.slane %v3484, 2
        %v3534 = vsel %vm1291, %v3531, %v3533
        %v3535 = vrot.slane %v3485, 2
        %v3536 = vrot.slane %v3486, 2
        %v3537 = vsel %vm1291, %v3535, %v3536
        %v3538 = vrot.slane %v3487, 2
        %v3539 = vsel %vm1291, %v3536, %v3538
        %v3540 = vrot.slane %v3488, 2
        %v3541 = vrot.slane %v3489, 2
        %v3542 = vsel %vm1291, %v3540, %v3541
        %v3543 = vrot.slane %v3490, 2
        %v3544 = vsel %vm1291, %v3541, %v3543
        %v3545 = vrot.slane %v3491, 2
        %v3546 = vrot.slane %v3492, 2
        %v3547 = vsel %vm1291, %v3545, %v3546
        %v3548 = vrot.slane %v3493, 2
        %v3549 = vsel %vm1291, %v3546, %v3548
        %v3550 = vrot.slane %v3494, 2
        %v3551 = vrot.slane %v3495, 2
        %v3552 = vsel %vm1291, %v3550, %v3551
        %v3553 = vrot.slane %v3496, 2
        %v3554 = vsel %vm1291, %v3551, %v3553
        %v3555 = vrot.slane %v3497, 2
        %v3556 = vrot.slane %v3498, 2
        %v3557 = vsel %vm1291, %v3555, %v3556
        %v3558 = vrot.slane %v3499, 2
        %v3559 = vsel %vm1291, %v3556, %v3558
        %v3560 = vrot.slane %v3500, 2
        %v3561 = vrot.slane %v3501, 2
        %v3562 = vsel %vm1291, %v3560, %v3561
        %v3563 = vrot.slane %v3502, 2
        %v3564 = vsel %vm1291, %v3561, %v3563
        %v3565 = vrot.slane %v3503, 2
        %v3566 = vrot.slane %v3504, 2
        %v3567 = vsel %vm1291, %v3565, %v3566
        %v3568 = vrot.slane %v3505, 2
        %v3569 = vsel %vm1291, %v3566, %v3568
        %v3586 = vadd.f32 %v3462, %v3532
        %v3587 = vadd.f32 %v3463, %v3534
        %v3588 = vadd.f32 %v3464, %v3537
        %v3589 = vadd.f32 %v3465, %v3539
        %v3590 = vadd.f32 %v3466, %v3542
        %v3591 = vadd.f32 %v3467, %v3544
        %v3592 = vadd.f32 %v3468, %v3547
        %v3593 = vadd.f32 %v3469, %v3549
        %v3594 = vadd.f32 %v3470, %v3552
        %v3595 = vadd.f32 %v3471, %v3554
        %v3596 = vadd.f32 %v3472, %v3557
        %v3597 = vadd.f32 %v3473, %v3559
        %v3598 = vadd.f32 %v3474, %v3562
        %v3599 = vadd.f32 %v3475, %v3564
        %v3600 = vadd.f32 %v3476, %v3567
        %v3601 = vadd.f32 %v3477, %v3569
        %v3602 = vlaneseq
        %v3603 = vshrl.u32 %v3602, 7
        %v3604 = vsub.s32 7, %v3603
        %v3605 = vrot.slane %v1050, %v3604
        %v3606 = vmul.f32 %v3294, %v3605
        %v3607 = vmul.f32 %v3295, %v3605
        %v3608 = vmul.f32 %v3296, %v3605
        %v3609 = vmul.f32 %v3297, %v3605
        %v3610 = vmul.f32 %v3298, %v3605
        %v3611 = vmul.f32 %v3299, %v3605
        %v3612 = vmul.f32 %v3300, %v3605
        %v3613 = vmul.f32 %v3301, %v3605
        %v3614 = vmul.f32 %v3302, %v3605
        %v3615 = vmul.f32 %v3303, %v3605
        %v3616 = vmul.f32 %v3304, %v3605
        %v3617 = vmul.f32 %v3305, %v3605
        %v3618 = vmul.f32 %v3306, %v3605
        %v3619 = vmul.f32 %v3307, %v3605
        %v3620 = vmul.f32 %v3308, %v3605
        %v3621 = vmul.f32 %v3309, %v3605
        %v3622 = vmul.f32 %v3310, %v3605
        %v3623 = vmul.f32 %v3311, %v3605
        %v3624 = vmul.f32 %v3312, %v3605
        %v3625 = vmul.f32 %v3313, %v3605
        %v3626 = vmul.f32 %v3314, %v3605
        %v3627 = vmul.f32 %v3315, %v3605
        %v3628 = vmul.f32 %v3316, %v3605
        %v3629 = vmul.f32 %v3317, %v3605
        %v3654 = vrot.slane %v3606, 3
        %v3655 = vrot.slane %v3607, 3
        %v3656 = vsel %vm1416, %v3654, %v3655
        %v3657 = vrot.slane %v3608, 3
        %v3658 = vsel %vm1416, %v3655, %v3657
        %v3659 = vrot.slane %v3609, 3
        %v3660 = vrot.slane %v3610, 3
        %v3661 = vsel %vm1416, %v3659, %v3660
        %v3662 = vrot.slane %v3611, 3
        %v3663 = vsel %vm1416, %v3660, %v3662
        %v3664 = vrot.slane %v3612, 3
        %v3665 = vrot.slane %v3613, 3
        %v3666 = vsel %vm1416, %v3664, %v3665
        %v3667 = vrot.slane %v3614, 3
        %v3668 = vsel %vm1416, %v3665, %v3667
        %v3669 = vrot.slane %v3615, 3
        %v3670 = vrot.slane %v3616, 3
        %v3671 = vsel %vm1416, %v3669, %v3670
        %v3672 = vrot.slane %v3617, 3
        %v3673 = vsel %vm1416, %v3670, %v3672
        %v3674 = vrot.slane %v3618, 3
        %v3675 = vrot.slane %v3619, 3
        %v3676 = vsel %vm1416, %v3674, %v3675
        %v3677 = vrot.slane %v3620, 3
        %v3678 = vsel %vm1416, %v3675, %v3677
        %v3679 = vrot.slane %v3621, 3
        %v3680 = vrot.slane %v3622, 3
        %v3681 = vsel %vm1416, %v3679, %v3680
        %v3682 = vrot.slane %v3623, 3
        %v3683 = vsel %vm1416, %v3680, %v3682
        %v3684 = vrot.slane %v3624, 3
        %v3685 = vrot.slane %v3625, 3
        %v3686 = vsel %vm1416, %v3684, %v3685
        %v3687 = vrot.slane %v3626, 3
        %v3688 = vsel %vm1416, %v3685, %v3687
        %v3689 = vrot.slane %v3627, 3
        %v3690 = vrot.slane %v3628, 3
        %v3691 = vsel %vm1416, %v3689, %v3690
        %v3692 = vrot.slane %v3629, 3
        %v3693 = vsel %vm1416, %v3690, %v3692
        %v3710 = vadd.f32 %v3586, %v3656
        %v3711 = vadd.f32 %v3587, %v3658
        %v3712 = vadd.f32 %v3588, %v3661
        %v3713 = vadd.f32 %v3589, %v3663
        %v3714 = vadd.f32 %v3590, %v3666
        %v3715 = vadd.f32 %v3591, %v3668
        %v3716 = vadd.f32 %v3592, %v3671
        %v3717 = vadd.f32 %v3593, %v3673
        %v3718 = vadd.f32 %v3594, %v3676
        %v3719 = vadd.f32 %v3595, %v3678
        %v3720 = vadd.f32 %v3596, %v3681
        %v3721 = vadd.f32 %v3597, %v3683
        %v3722 = vadd.f32 %v3598, %v3686
        %v3723 = vadd.f32 %v3599, %v3688
        %v3724 = vadd.f32 %v3600, %v3691
        %v3725 = vadd.f32 %v3601, %v3693
        %v3726 = vlaneseq
        %v3727 = vshrl.u32 %v3726, 7
        %v3728 = vsub.s32 0, %v3727
        %v3729 = vrot.slane %v1051, %v3728
        %v3730 = vmul.f32 %v3294, %v3729
        %v3731 = vmul.f32 %v3295, %v3729
        %v3732 = vmul.f32 %v3296, %v3729
        %v3733 = vmul.f32 %v3297, %v3729
        %v3734 = vmul.f32 %v3298, %v3729
        %v3735 = vmul.f32 %v3299, %v3729
        %v3736 = vmul.f32 %v3300, %v3729
        %v3737 = vmul.f32 %v3301, %v3729
        %v3738 = vmul.f32 %v3302, %v3729
        %v3739 = vmul.f32 %v3303, %v3729
        %v3740 = vmul.f32 %v3304, %v3729
        %v3741 = vmul.f32 %v3305, %v3729
        %v3742 = vmul.f32 %v3306, %v3729
        %v3743 = vmul.f32 %v3307, %v3729
        %v3744 = vmul.f32 %v3308, %v3729
        %v3745 = vmul.f32 %v3309, %v3729
        %v3746 = vmul.f32 %v3310, %v3729
        %v3747 = vmul.f32 %v3311, %v3729
        %v3748 = vmul.f32 %v3312, %v3729
        %v3749 = vmul.f32 %v3313, %v3729
        %v3750 = vmul.f32 %v3314, %v3729
        %v3751 = vmul.f32 %v3315, %v3729
        %v3752 = vmul.f32 %v3316, %v3729
        %v3753 = vmul.f32 %v3317, %v3729
        %v3778 = vrot.slane %v3730, 4
        %v3779 = vrot.slane %v3731, 4
        %v3780 = vsel %vm1541, %v3778, %v3779
        %v3781 = vrot.slane %v3732, 4
        %v3782 = vsel %vm1541, %v3779, %v3781
        %v3783 = vrot.slane %v3733, 4
        %v3784 = vrot.slane %v3734, 4
        %v3785 = vsel %vm1541, %v3783, %v3784
        %v3786 = vrot.slane %v3735, 4
        %v3787 = vsel %vm1541, %v3784, %v3786
        %v3788 = vrot.slane %v3736, 4
        %v3789 = vrot.slane %v3737, 4
        %v3790 = vsel %vm1541, %v3788, %v3789
        %v3791 = vrot.slane %v3738, 4
        %v3792 = vsel %vm1541, %v3789, %v3791
        %v3793 = vrot.slane %v3739, 4
        %v3794 = vrot.slane %v3740, 4
        %v3795 = vsel %vm1541, %v3793, %v3794
        %v3796 = vrot.slane %v3741, 4
        %v3797 = vsel %vm1541, %v3794, %v3796
        %v3798 = vrot.slane %v3742, 4
        %v3799 = vrot.slane %v3743, 4
        %v3800 = vsel %vm1541, %v3798, %v3799
        %v3801 = vrot.slane %v3744, 4
        %v3802 = vsel %vm1541, %v3799, %v3801
        %v3803 = vrot.slane %v3745, 4
        %v3804 = vrot.slane %v3746, 4
        %v3805 = vsel %vm1541, %v3803, %v3804
        %v3806 = vrot.slane %v3747, 4
        %v3807 = vsel %vm1541, %v3804, %v3806
        %v3808 = vrot.slane %v3748, 4
        %v3809 = vrot.slane %v3749, 4
        %v3810 = vsel %vm1541, %v3808, %v3809
        %v3811 = vrot.slane %v3750, 4
        %v3812 = vsel %vm1541, %v3809, %v3811
        %v3813 = vrot.slane %v3751, 4
        %v3814 = vrot.slane %v3752, 4
        %v3815 = vsel %vm1541, %v3813, %v3814
        %v3816 = vrot.slane %v3753, 4
        %v3817 = vsel %vm1541, %v3814, %v3816
        %v3834 = vadd.f32 %v3710, %v3780
        %v3835 = vadd.f32 %v3711, %v3782
        %v3836 = vadd.f32 %v3712, %v3785
        %v3837 = vadd.f32 %v3713, %v3787
        %v3838 = vadd.f32 %v3714, %v3790
        %v3839 = vadd.f32 %v3715, %v3792
        %v3840 = vadd.f32 %v3716, %v3795
        %v3841 = vadd.f32 %v3717, %v3797
        %v3842 = vadd.f32 %v3718, %v3800
        %v3843 = vadd.f32 %v3719, %v3802
        %v3844 = vadd.f32 %v3720, %v3805
        %v3845 = vadd.f32 %v3721, %v3807
        %v3846 = vadd.f32 %v3722, %v3810
        %v3847 = vadd.f32 %v3723, %v3812
        %v3848 = vadd.f32 %v3724, %v3815
        %v3849 = vadd.f32 %v3725, %v3817
        %v3850 = vld [vmem:[%s5] sm:$0x1]
        %v3852 = vlaneseq
        %v3853 = vshrl.u32 %v3852, 7
        %v3854 = vsub.s32 0, %v3853
        %v3855 = vrot.slane %v3850, %v3854
        %v3857 = vmul.f32 %v3834, %v3855
        %v3858 = vmul.f32 %v3835, %v3855
        %v3859 = vmul.f32 %v3836, %v3855
        %v3860 = vmul.f32 %v3837, %v3855
        %v3861 = vmul.f32 %v3838, %v3855
        %v3862 = vmul.f32 %v3839, %v3855
        %v3863 = vmul.f32 %v3840, %v3855
        %v3864 = vmul.f32 %v3841, %v3855
        %v3865 = vmul.f32 %v3842, %v3855
        %v3866 = vmul.f32 %v3843, %v3855
        %v3867 = vmul.f32 %v3844, %v3855
        %v3868 = vmul.f32 %v3845, %v3855
        %v3869 = vmul.f32 %v3846, %v3855
        %v3870 = vmul.f32 %v3847, %v3855
        %v3871 = vmul.f32 %v3848, %v3855
        %v3872 = vmul.f32 %v3849, %v3855
        %v3873 = vld [vmem:[%s6] sm:$0x1]
        %v3875 = vlaneseq
        %v3876 = vshrl.u32 %v3875, 7
        %v3877 = vsub.s32 0, %v3876
        %v3878 = vrot.slane %v3873, %v3877
        %v3880 = vadd.f32 %v3857, %v3878
        %v3881 = vadd.f32 %v3858, %v3878
        %v3882 = vadd.f32 %v3859, %v3878
        %v3883 = vadd.f32 %v3860, %v3878
        %v3884 = vadd.f32 %v3861, %v3878
        %v3885 = vadd.f32 %v3862, %v3878
        %v3886 = vadd.f32 %v3863, %v3878
        %v3887 = vadd.f32 %v3864, %v3878
        %v3888 = vadd.f32 %v3865, %v3878
        %v3889 = vadd.f32 %v3866, %v3878
        %v3890 = vadd.f32 %v3867, %v3878
        %v3891 = vadd.f32 %v3868, %v3878
        %v3892 = vadd.f32 %v3869, %v3878
        %v3893 = vadd.f32 %v3870, %v3878
        %v3894 = vadd.f32 %v3871, %v3878
        %v3895 = vadd.f32 %v3872, %v3878
        %v3896 = vxor.u32 %v3880, 2147483648
        %v3897 = vxor.u32 %v3881, 2147483648
        %v3898 = vxor.u32 %v3882, 2147483648
        %v3899 = vxor.u32 %v3883, 2147483648
        %v3900 = vxor.u32 %v3884, 2147483648
        %v3901 = vxor.u32 %v3885, 2147483648
        %v3902 = vxor.u32 %v3886, 2147483648
        %v3903 = vxor.u32 %v3887, 2147483648
        %v3904 = vxor.u32 %v3888, 2147483648
        %v3905 = vxor.u32 %v3889, 2147483648
        %v3906 = vxor.u32 %v3890, 2147483648
        %v3907 = vxor.u32 %v3891, 2147483648
        %v3908 = vxor.u32 %v3892, 2147483648
        %v3909 = vxor.u32 %v3893, 2147483648
        %v3910 = vxor.u32 %v3894, 2147483648
        %v3911 = vxor.u32 %v3895, 2147483648
        %v3912 = vmul.f32 %v3896, 1.442695
        %v3913 = vpow.pop %v3912
        %v3914 = vmul.f32 %v3897, 1.442695
        %v3915 = vpow.pop %v3914
        %v3916 = vmul.f32 %v3898, 1.442695
        %v3917 = vpow.pop %v3916
        %v3918 = vmul.f32 %v3899, 1.442695
        %v3919 = vpow.pop %v3918
        %v3920 = vmul.f32 %v3900, 1.442695
        %v3921 = vpow.pop %v3920
        %v3922 = vmul.f32 %v3901, 1.442695
        %v3923 = vpow.pop %v3922
        %v3924 = vmul.f32 %v3902, 1.442695
        %v3925 = vpow.pop %v3924
        %v3926 = vmul.f32 %v3903, 1.442695
        %v3927 = vpow.pop %v3926
        %v3928 = vmul.f32 %v3904, 1.442695
        %v3929 = vpow.pop %v3928
        %v3930 = vmul.f32 %v3905, 1.442695
        %v3931 = vpow.pop %v3930
        %v3932 = vmul.f32 %v3906, 1.442695
        %v3933 = vpow.pop %v3932
        %v3934 = vmul.f32 %v3907, 1.442695
        %v3935 = vpow.pop %v3934
        %v3936 = vmul.f32 %v3908, 1.442695
        %v3937 = vpow.pop %v3936
        %v3938 = vmul.f32 %v3909, 1.442695
        %v3939 = vpow.pop %v3938
        %v3940 = vmul.f32 %v3910, 1.442695
        %v3941 = vpow.pop %v3940
        %v3942 = vmul.f32 %v3911, 1.442695
        %v3943 = vpow.pop %v3942
        %v3944 = vadd.f32 %v3913, 1.0
        %v3945 = vadd.f32 %v3915, 1.0
        %v3946 = vadd.f32 %v3917, 1.0
        %v3947 = vadd.f32 %v3919, 1.0
        %v3948 = vadd.f32 %v3921, 1.0
        %v3949 = vadd.f32 %v3923, 1.0
        %v3950 = vadd.f32 %v3925, 1.0
        %v3951 = vadd.f32 %v3927, 1.0
        %v3952 = vadd.f32 %v3929, 1.0
        %v3953 = vadd.f32 %v3931, 1.0
        %v3954 = vadd.f32 %v3933, 1.0
        %v3955 = vadd.f32 %v3935, 1.0
        %v3956 = vadd.f32 %v3937, 1.0
        %v3957 = vadd.f32 %v3939, 1.0
        %v3958 = vadd.f32 %v3941, 1.0
        %v3959 = vadd.f32 %v3943, 1.0
        %v3960 = vrcp.pop %v3944
        %v3961 = vmul.f32 1.0, %v3960
        %v3962 = vrcp.pop %v3945
        %v3963 = vmul.f32 1.0, %v3962
        %v3964 = vrcp.pop %v3946
        %v3965 = vmul.f32 1.0, %v3964
        %v3966 = vrcp.pop %v3947
        %v3967 = vmul.f32 1.0, %v3966
        %v3968 = vrcp.pop %v3948
        %v3969 = vmul.f32 1.0, %v3968
        %v3970 = vrcp.pop %v3949
        %v3971 = vmul.f32 1.0, %v3970
        %v3972 = vrcp.pop %v3950
        %v3973 = vmul.f32 1.0, %v3972
        %v3974 = vrcp.pop %v3951
        %v3975 = vmul.f32 1.0, %v3974
        %v3976 = vrcp.pop %v3952
        %v3977 = vmul.f32 1.0, %v3976
        %v3978 = vrcp.pop %v3953
        %v3979 = vmul.f32 1.0, %v3978
        %v3980 = vrcp.pop %v3954
        %v3981 = vmul.f32 1.0, %v3980
        %v3982 = vrcp.pop %v3955
        %v3983 = vmul.f32 1.0, %v3982
        %v3984 = vrcp.pop %v3956
        %v3985 = vmul.f32 1.0, %v3984
        %v3986 = vrcp.pop %v3957
        %v3987 = vmul.f32 1.0, %v3986
        %v3988 = vrcp.pop %v3958
        %v3989 = vmul.f32 1.0, %v3988
        %v3990 = vrcp.pop %v3959
        %v3991 = vmul.f32 1.0, %v3990
        %v3992 = vmul.f32 %v3880, %v3961
        %v3993 = vmul.f32 %v3881, %v3963
        %v3994 = vmul.f32 %v3882, %v3965
        %v3995 = vmul.f32 %v3883, %v3967
        %v3996 = vmul.f32 %v3884, %v3969
        %v3997 = vmul.f32 %v3885, %v3971
        %v3998 = vmul.f32 %v3886, %v3973
        %v3999 = vmul.f32 %v3887, %v3975
        %v4000 = vmul.f32 %v3888, %v3977
        %v4001 = vmul.f32 %v3889, %v3979
        %v4002 = vmul.f32 %v3890, %v3981
        %v4003 = vmul.f32 %v3891, %v3983
        %v4004 = vmul.f32 %v3892, %v3985
        %v4005 = vmul.f32 %v3893, %v3987
        %v4006 = vmul.f32 %v3894, %v3989
        %v4007 = vmul.f32 %v3895, %v3991
        %v4008 = vld [vmem:[%s2175 + $0x2] sm:$0xff]
        %v4009 = vld [vmem:[%s2175 + $0xa] sm:$0xff]
        %v4010 = vld [vmem:[%s2175 + $0x1a] sm:$0xff]
        %v4011 = vld [vmem:[%s2175 + $0x22] sm:$0xff]
        %v4012 = vld [vmem:[%s2175 + $0x32] sm:$0xff]
        %v4013 = vld [vmem:[%s2175 + $0x3a] sm:$0xff]
        %v4014 = vld [vmem:[%s2175 + $0x4a] sm:$0xff]
        %v4015 = vld [vmem:[%s2175 + $0x52] sm:$0xff]
        %v4016 = vld [vmem:[%s2175 + $0x62] sm:$0xff]
        %v4017 = vld [vmem:[%s2175 + $0x6a] sm:$0xff]
        %v4018 = vld [vmem:[%s2175 + $0x7a] sm:$0xff]
        %v4019 = vld [vmem:[%s2175 + $0x82] sm:$0xff]
        %v4020 = vld [vmem:[%s2175 + $0x92] sm:$0xff]
        %v4021 = vld [vmem:[%s2175 + $0x9a] sm:$0xff]
        %v4022 = vld [vmem:[%s2175 + $0xaa] sm:$0xff]
        %v4023 = vld [vmem:[%s2175 + $0xb2] sm:$0xff]
        %vm4024 = vcmask 31744
        %4025 = vst.msk [vmem:[%s281] sm:$0xff] %vm4024, %v4008
        %4026 = vst.msk [vmem:[%s281 + $0x8] sm:$0xff] %vm4024, %v4009
        %4027 = vst.msk [vmem:[%s281 + $0x10] sm:$0xff] %vm4024, %v4010
        %4028 = vst.msk [vmem:[%s281 + $0x18] sm:$0xff] %vm4024, %v4011
        %4029 = vst.msk [vmem:[%s281 + $0x20] sm:$0xff] %vm4024, %v4012
        %4030 = vst.msk [vmem:[%s281 + $0x28] sm:$0xff] %vm4024, %v4013
        %4031 = vst.msk [vmem:[%s281 + $0x30] sm:$0xff] %vm4024, %v4014
        %4032 = vst.msk [vmem:[%s281 + $0x38] sm:$0xff] %vm4024, %v4015
        %4033 = vst.msk [vmem:[%s281 + $0x40] sm:$0xff] %vm4024, %v4016
        %4034 = vst.msk [vmem:[%s281 + $0x48] sm:$0xff] %vm4024, %v4017
        %4035 = vst.msk [vmem:[%s281 + $0x50] sm:$0xff] %vm4024, %v4018
        %4036 = vst.msk [vmem:[%s281 + $0x58] sm:$0xff] %vm4024, %v4019
        %4037 = vst.msk [vmem:[%s281 + $0x60] sm:$0xff] %vm4024, %v4020
        %4038 = vst.msk [vmem:[%s281 + $0x68] sm:$0xff] %vm4024, %v4021
        %4039 = vst.msk [vmem:[%s281 + $0x70] sm:$0xff] %vm4024, %v4022
        %4040 = vst.msk [vmem:[%s281 + $0x78] sm:$0xff] %vm4024, %v4023
        %s4041 = scalar_lea.vmem %s281, 128 [#allocation3]
        %4042 = vst.msk [vmem:[%s4041] sm:$0xff] %vm4024, %v3992
        %4043 = vst.msk [vmem:[%s4041 + $0x8] sm:$0xff] %vm4024, %v3993
        %4044 = vst.msk [vmem:[%s4041 + $0x10] sm:$0xff] %vm4024, %v3994
        %4045 = vst.msk [vmem:[%s4041 + $0x18] sm:$0xff] %vm4024, %v3995
        %4046 = vst.msk [vmem:[%s4041 + $0x20] sm:$0xff] %vm4024, %v3996
        %4047 = vst.msk [vmem:[%s4041 + $0x28] sm:$0xff] %vm4024, %v3997
        %4048 = vst.msk [vmem:[%s4041 + $0x30] sm:$0xff] %vm4024, %v3998
        %4049 = vst.msk [vmem:[%s4041 + $0x38] sm:$0xff] %vm4024, %v3999
        %4050 = vst.msk [vmem:[%s4041 + $0x40] sm:$0xff] %vm4024, %v4000
        %4051 = vst.msk [vmem:[%s4041 + $0x48] sm:$0xff] %vm4024, %v4001
        %4052 = vst.msk [vmem:[%s4041 + $0x50] sm:$0xff] %vm4024, %v4002
        %4053 = vst.msk [vmem:[%s4041 + $0x58] sm:$0xff] %vm4024, %v4003
        %4054 = vst.msk [vmem:[%s4041 + $0x60] sm:$0xff] %vm4024, %v4004
        %4055 = vst.msk [vmem:[%s4041 + $0x68] sm:$0xff] %vm4024, %v4005
        %4056 = vst.msk [vmem:[%s4041 + $0x70] sm:$0xff] %vm4024, %v4006
        %4057 = vst.msk [vmem:[%s4041 + $0x78] sm:$0xff] %vm4024, %v4007
        %s4058 = sand.u32 %s192, 1
        %s4059 = sand.u32 %s192, 1
        %s4060 = smul.addr %s4059, 256
        %s4061 = scalar_lea.vmem [#allocation3], %s4060
        // Predicated region
        $region53: #{ghostconv_forward.1} parent=47 // pred_check
          %p4062 = pneg %p202
        $region54: #{ghostconv_forward.1} parent=47 // pred_check_branch
          %4064 = sbr.rel (%p4062) target = $region56
        $region55: #{ghostconv_forward.1} parent=47 // pred_region
          %s4065 = smul.u32 8, %s23
          %s4066 = smul.addr %s4065, 2
          %s4067 = smul.addr %s22, 64
          %s4068 = sadd.s32 %s4066, %s4067
          %s4069 = smul.addr %s4068, 8
          %s4070 = scalar_lea.vmem %s7, %s4069
          // Predicated region
          $region57: #{ghostconv_forward.1} parent=55 // pred_check
            _
          $region58: #{ghostconv_forward.1} parent=55 // pred_check_branch
            %4072 = sbr.rel (0) target = $region60
          $region59: #{ghostconv_forward.1} parent=55 // pred_region
            // Predicated region
            $region61: #{ghostconv_forward.1} parent=59 // pred_check
              _
            $region62: #{ghostconv_forward.1} parent=59 // pred_check_branch
              %4074 = sbr.rel (0) target = $region64
            $region63: #{ghostconv_forward.1} parent=59 // pred_region
              // Predicated region
              $region76: #{ghostconv_forward.1} parent=63 // pred_check
                _
              $region77: #{ghostconv_forward.1} parent=63 // pred_check_branch
                %4152 = sbr.rel (0) target = $region79
              $region78: #{ghostconv_forward.1} parent=63 // pred_region
                loop: start=0, step=1, limit=1
                $region80: #{ghostconv_forward.1} parent=78 // loop_pre_header
                  _
                $region81: #{ghostconv_forward.1} parent=78 // loop_header
                  %s4154 = sphi 0, %s4158
                  %p4155 = scmp.ge.s32.totalorder %s4154, 1
                  %s4159 = sphi %s4061, %s4061
                  %s4160 = sphi %s4070, %s4070
                $region82: #{ghostconv_forward.1} parent=78 // loop_header_branch
                  %4157 = sbr.rel (%p4155) target = $region86
                $region83: #{ghostconv_forward.1} parent=78 // loop_body
                  %v4161 = vld [vmem:[%s4159] sm:$0xff]
                  %4162 = vst [vmem:[%s4160] sm:$0xff] %v4161
                  %v4163 = vld [vmem:[%s4159 + $0x8] sm:$0xff]
                  %4164 = vst [vmem:[%s4160 + $0x8] sm:$0xff] %v4163
                  %v4165 = vld [vmem:[%s4159 + $0x10] sm:$0xff]
                  %4166 = vst [vmem:[%s4160 + $0x10] sm:$0xff] %v4165
                  %v4167 = vld [vmem:[%s4159 + $0x18] sm:$0xff]
                  %4168 = vst [vmem:[%s4160 + $0x18] sm:$0xff] %v4167
                  %v4169 = vld [vmem:[%s4159 + $0x20] sm:$0xff]
                  %4170 = vst [vmem:[%s4160 + $0x20] sm:$0xff] %v4169
                  %v4171 = vld [vmem:[%s4159 + $0x28] sm:$0xff]
                  %4172 = vst [vmem:[%s4160 + $0x28] sm:$0xff] %v4171
                  %v4173 = vld [vmem:[%s4159 + $0x30] sm:$0xff]
                  %4174 = vst [vmem:[%s4160 + $0x30] sm:$0xff] %v4173
                  %v4175 = vld [vmem:[%s4159 + $0x38] sm:$0xff]
                  %4176 = vst [vmem:[%s4160 + $0x38] sm:$0xff] %v4175
                  %v4177 = vld [vmem:[%s4159 + $0x40] sm:$0xff]
                  %4178 = vst [vmem:[%s4160 + $0x40] sm:$0xff] %v4177
                  %v4179 = vld [vmem:[%s4159 + $0x48] sm:$0xff]
                  %4180 = vst [vmem:[%s4160 + $0x48] sm:$0xff] %v4179
                  %v4181 = vld [vmem:[%s4159 + $0x50] sm:$0xff]
                  %4182 = vst [vmem:[%s4160 + $0x50] sm:$0xff] %v4181
                  %v4183 = vld [vmem:[%s4159 + $0x58] sm:$0xff]
                  %4184 = vst [vmem:[%s4160 + $0x58] sm:$0xff] %v4183
                  %v4185 = vld [vmem:[%s4159 + $0x60] sm:$0xff]
                  %4186 = vst [vmem:[%s4160 + $0x60] sm:$0xff] %v4185
                  %v4187 = vld [vmem:[%s4159 + $0x68] sm:$0xff]
                  %4188 = vst [vmem:[%s4160 + $0x68] sm:$0xff] %v4187
                  %v4189 = vld [vmem:[%s4159 + $0x70] sm:$0xff]
                  %4190 = vst [vmem:[%s4160 + $0x70] sm:$0xff] %v4189
                  %v4191 = vld [vmem:[%s4159 + $0x78] sm:$0xff]
                  %4192 = vst [vmem:[%s4160 + $0x78] sm:$0xff] %v4191
                  %v4193 = vld [vmem:[%s4159 + $0x80] sm:$0xff]
                  %4194 = vst [vmem:[%s4160 + $0x100] sm:$0xff] %v4193
                  %v4195 = vld [vmem:[%s4159 + $0x88] sm:$0xff]
                  %4196 = vst [vmem:[%s4160 + $0x108] sm:$0xff] %v4195
                  %v4197 = vld [vmem:[%s4159 + $0x90] sm:$0xff]
                  %4198 = vst [vmem:[%s4160 + $0x110] sm:$0xff] %v4197
                  %v4199 = vld [vmem:[%s4159 + $0x98] sm:$0xff]
                  %4200 = vst [vmem:[%s4160 + $0x118] sm:$0xff] %v4199
                  %v4201 = vld [vmem:[%s4159 + $0xa0] sm:$0xff]
                  %4202 = vst [vmem:[%s4160 + $0x120] sm:$0xff] %v4201
                  %v4203 = vld [vmem:[%s4159 + $0xa8] sm:$0xff]
                  %4204 = vst [vmem:[%s4160 + $0x128] sm:$0xff] %v4203
                  %v4205 = vld [vmem:[%s4159 + $0xb0] sm:$0xff]
                  %4206 = vst [vmem:[%s4160 + $0x130] sm:$0xff] %v4205
                  %v4207 = vld [vmem:[%s4159 + $0xb8] sm:$0xff]
                  %4208 = vst [vmem:[%s4160 + $0x138] sm:$0xff] %v4207
                  %v4209 = vld [vmem:[%s4159 + $0xc0] sm:$0xff]
                  %4210 = vst [vmem:[%s4160 + $0x140] sm:$0xff] %v4209
                  %v4211 = vld [vmem:[%s4159 + $0xc8] sm:$0xff]
                  %4212 = vst [vmem:[%s4160 + $0x148] sm:$0xff] %v4211
                  %v4213 = vld [vmem:[%s4159 + $0xd0] sm:$0xff]
                  %4214 = vst [vmem:[%s4160 + $0x150] sm:$0xff] %v4213
                  %v4215 = vld [vmem:[%s4159 + $0xd8] sm:$0xff]
                  %4216 = vst [vmem:[%s4160 + $0x158] sm:$0xff] %v4215
                  %v4217 = vld [vmem:[%s4159 + $0xe0] sm:$0xff]
                  %4218 = vst [vmem:[%s4160 + $0x160] sm:$0xff] %v4217
                  %v4219 = vld [vmem:[%s4159 + $0xe8] sm:$0xff]
                  %4220 = vst [vmem:[%s4160 + $0x168] sm:$0xff] %v4219
                  %v4221 = vld [vmem:[%s4159 + $0xf0] sm:$0xff]
                  %4222 = vst [vmem:[%s4160 + $0x170] sm:$0xff] %v4221
                  %v4223 = vld [vmem:[%s4159 + $0xf8] sm:$0xff]
                  %4224 = vst [vmem:[%s4160 + $0x178] sm:$0xff] %v4223
                $region84: #{ghostconv_forward.1} parent=78 // loop_footer
                  %s4158 = sadd.s32 1, %s4154
                $region85: #{ghostconv_forward.1} parent=78 // loop_footer_branch
                  %4153 = sbr.rel target = $region81
                $region86: #{ghostconv_forward.1} parent=78 // loop_exit
                  _
              $region79: #{ghostconv_forward.1} parent=63 // pred_fallthru
                _
              // Predicated region
              $region87: #{ghostconv_forward.1} parent=63 // pred_check
                _
              $region88: #{ghostconv_forward.1} parent=63 // pred_check_branch
                %4226 = sbr.rel target = $region90
              $region89: #{ghostconv_forward.1} parent=63 // pred_region
                _
              $region90: #{ghostconv_forward.1} parent=63 // pred_fallthru
                _
            $region64: #{ghostconv_forward.1} parent=59 // pred_fallthru
              _
            // Predicated region
            $region65: #{ghostconv_forward.1} parent=59 // pred_check
              _
            $region66: #{ghostconv_forward.1} parent=59 // pred_check_branch
              %4076 = sbr.rel target = $region68
            $region67: #{ghostconv_forward.1} parent=59 // pred_region
              %s4078 = ssub.s32 256, 1
              loop: start=0, step=1, limit=1
              $region69: #{ghostconv_forward.1} parent=67 // loop_pre_header
                _
              $region70: #{ghostconv_forward.1} parent=67 // loop_header
                %s4080 = sphi 0, %s4084
                %p4081 = scmp.ge.s32.totalorder %s4080, 1
                %s4085 = sphi %s4061, %s4061
                %s4086 = sphi %s4070, %s4070
              $region71: #{ghostconv_forward.1} parent=67 // loop_header_branch
                %4083 = sbr.rel (%p4081) target = $region75
              $region72: #{ghostconv_forward.1} parent=67 // loop_body
                %v4087 = vld [vmem:[%s4085] sm:%s4078]
                %4088 = vst [vmem:[%s4086] sm:%s4078] %v4087
                %v4089 = vld [vmem:[%s4085 + $0x8] sm:%s4078]
                %4090 = vst [vmem:[%s4086 + $0x8] sm:%s4078] %v4089
                %v4091 = vld [vmem:[%s4085 + $0x10] sm:%s4078]
                %4092 = vst [vmem:[%s4086 + $0x10] sm:%s4078] %v4091
                %v4093 = vld [vmem:[%s4085 + $0x18] sm:%s4078]
                %4094 = vst [vmem:[%s4086 + $0x18] sm:%s4078] %v4093
                %v4095 = vld [vmem:[%s4085 + $0x20] sm:%s4078]
                %4096 = vst [vmem:[%s4086 + $0x20] sm:%s4078] %v4095
                %v4097 = vld [vmem:[%s4085 + $0x28] sm:%s4078]
                %4098 = vst [vmem:[%s4086 + $0x28] sm:%s4078] %v4097
                %v4099 = vld [vmem:[%s4085 + $0x30] sm:%s4078]
                %4100 = vst [vmem:[%s4086 + $0x30] sm:%s4078] %v4099
                %v4101 = vld [vmem:[%s4085 + $0x38] sm:%s4078]
                %4102 = vst [vmem:[%s4086 + $0x38] sm:%s4078] %v4101
                %v4103 = vld [vmem:[%s4085 + $0x40] sm:%s4078]
                %4104 = vst [vmem:[%s4086 + $0x40] sm:%s4078] %v4103
                %v4105 = vld [vmem:[%s4085 + $0x48] sm:%s4078]
                %4106 = vst [vmem:[%s4086 + $0x48] sm:%s4078] %v4105
                %v4107 = vld [vmem:[%s4085 + $0x50] sm:%s4078]
                %4108 = vst [vmem:[%s4086 + $0x50] sm:%s4078] %v4107
                %v4109 = vld [vmem:[%s4085 + $0x58] sm:%s4078]
                %4110 = vst [vmem:[%s4086 + $0x58] sm:%s4078] %v4109
                %v4111 = vld [vmem:[%s4085 + $0x60] sm:%s4078]
                %4112 = vst [vmem:[%s4086 + $0x60] sm:%s4078] %v4111
                %v4113 = vld [vmem:[%s4085 + $0x68] sm:%s4078]
                %4114 = vst [vmem:[%s4086 + $0x68] sm:%s4078] %v4113
                %v4115 = vld [vmem:[%s4085 + $0x70] sm:%s4078]
                %4116 = vst [vmem:[%s4086 + $0x70] sm:%s4078] %v4115
                %v4117 = vld [vmem:[%s4085 + $0x78] sm:%s4078]
                %4118 = vst [vmem:[%s4086 + $0x78] sm:%s4078] %v4117
                %v4119 = vld [vmem:[%s4085 + $0x80] sm:%s4078]
                %4120 = vst [vmem:[%s4086 + $0x100] sm:%s4078] %v4119
                %v4121 = vld [vmem:[%s4085 + $0x88] sm:%s4078]
                %4122 = vst [vmem:[%s4086 + $0x108] sm:%s4078] %v4121
                %v4123 = vld [vmem:[%s4085 + $0x90] sm:%s4078]
                %4124 = vst [vmem:[%s4086 + $0x110] sm:%s4078] %v4123
                %v4125 = vld [vmem:[%s4085 + $0x98] sm:%s4078]
                %4126 = vst [vmem:[%s4086 + $0x118] sm:%s4078] %v4125
                %v4127 = vld [vmem:[%s4085 + $0xa0] sm:%s4078]
                %4128 = vst [vmem:[%s4086 + $0x120] sm:%s4078] %v4127
                %v4129 = vld [vmem:[%s4085 + $0xa8] sm:%s4078]
                %4130 = vst [vmem:[%s4086 + $0x128] sm:%s4078] %v4129
                %v4131 = vld [vmem:[%s4085 + $0xb0] sm:%s4078]
                %4132 = vst [vmem:[%s4086 + $0x130] sm:%s4078] %v4131
                %v4133 = vld [vmem:[%s4085 + $0xb8] sm:%s4078]
                %4134 = vst [vmem:[%s4086 + $0x138] sm:%s4078] %v4133
                %v4135 = vld [vmem:[%s4085 + $0xc0] sm:%s4078]
                %4136 = vst [vmem:[%s4086 + $0x140] sm:%s4078] %v4135
                %v4137 = vld [vmem:[%s4085 + $0xc8] sm:%s4078]
                %4138 = vst [vmem:[%s4086 + $0x148] sm:%s4078] %v4137
                %v4139 = vld [vmem:[%s4085 + $0xd0] sm:%s4078]
                %4140 = vst [vmem:[%s4086 + $0x150] sm:%s4078] %v4139
                %v4141 = vld [vmem:[%s4085 + $0xd8] sm:%s4078]
                %4142 = vst [vmem:[%s4086 + $0x158] sm:%s4078] %v4141
                %v4143 = vld [vmem:[%s4085 + $0xe0] sm:%s4078]
                %4144 = vst [vmem:[%s4086 + $0x160] sm:%s4078] %v4143
                %v4145 = vld [vmem:[%s4085 + $0xe8] sm:%s4078]
                %4146 = vst [vmem:[%s4086 + $0x168] sm:%s4078] %v4145
                %v4147 = vld [vmem:[%s4085 + $0xf0] sm:%s4078]
                %4148 = vst [vmem:[%s4086 + $0x170] sm:%s4078] %v4147
                %v4149 = vld [vmem:[%s4085 + $0xf8] sm:%s4078]
                %4150 = vst [vmem:[%s4086 + $0x178] sm:%s4078] %v4149
              $region73: #{ghostconv_forward.1} parent=67 // loop_footer
                %s4084 = sadd.s32 1, %s4080
              $region74: #{ghostconv_forward.1} parent=67 // loop_footer_branch
                %4079 = sbr.rel target = $region70
              $region75: #{ghostconv_forward.1} parent=67 // loop_exit
                _
            $region68: #{ghostconv_forward.1} parent=59 // pred_fallthru
              _
          $region60: #{ghostconv_forward.1} parent=55 // pred_fallthru
            _
          %4227 = vnop
        $region56: #{ghostconv_forward.1} parent=47 // pred_fallthru
          _
      $region48: #{ghostconv_forward.1} parent=5 // pred_fallthru
        _
      %p4228 = scmp.le.s32.totalorder 2, %s13
      // Predicated region
      $region91: #{ghostconv_forward.1} parent=5 // pred_check
        %p4229 = pneg %p4228
      $region92: #{ghostconv_forward.1} parent=5 // pred_check_branch
        %4231 = sbr.rel (%p4229) target = $region94
      $region93: #{ghostconv_forward.1} parent=5 // pred_region
        %s4232 = ssub.s32 %s13, 2
        // Predicated region
        $region95: #{ghostconv_forward.1} parent=93 // pred_check
          %p4233 = pneg %p208
        $region96: #{ghostconv_forward.1} parent=93 // pred_check_branch
          %4235 = sbr.rel (%p4233) target = $region98
        $region97: #{ghostconv_forward.1} parent=93 // pred_region
          %s4236 = sand.u32 %s193, 1
          %s4237 = sand.u32 %s193, 1
          %s4238 = smul.addr %s4237, 256
          %s4239 = scalar_lea.vmem [#allocation3], %s4238
        $region98: #{ghostconv_forward.1} parent=93 // pred_fallthru
          _
      $region94: #{ghostconv_forward.1} parent=5 // pred_fallthru
        _
    $region6: #{ghostconv_forward.1} parent=1 // loop_footer
      %s17 = sadd.s32 1, %s13
    $region7: #{ghostconv_forward.1} parent=1 // loop_footer_branch
      %12 = sbr.rel target = $region3
    $region8: #{ghostconv_forward.1} parent=1 // loop_exit
      _

</llo_original>
